<compile_context>
chip_gen: v7x
topology: tpu7x:2x2x1
jax: 0.10.0
libtpu: 0.0.40
codegen_flags: <defaults>
</compile_context>

<pallas_src>
import functools
import math

import jax
import jax.numpy as jnp
from jax import lax
from jax.experimental import pallas as pl
from jax.experimental.pallas import tpu as pltpu


# ------------------------------ kernel helpers ------------------------------ #

def _layer_norm(h, gamma, beta, eps):
    mu = jnp.mean(h, axis=-1, keepdims=True)
    var = jnp.mean((h - mu) * (h - mu), axis=-1, keepdims=True)
    return (h - mu) * lax.rsqrt(var + eps) * gamma + beta


def _gelu(y):
    # TODO(synk): tanh-approx GELU; HF BERT uses exact erf GELU (~1e-3 diff).
    return 0.5 * y * (1.0 + jnp.tanh(0.7978845608028654 * (y + 0.044715 * y * y * y)))


# ------------------------------ fused kernel -------------------------------- #

def bert_layer_kernel(ids_ref, mask_ref,
                      wemb_ref, pemb_ref, temb_ref, eg_ref, eb_ref,
                      wqkv_ref, bqkv_ref, wo_ref, bo_ref, ln1g_ref, ln1b_ref,
                      wi_ref, bi_ref, wf_ref, bf_ref, ln2g_ref, ln2b_ref,
                      wp_ref, bp_ref, wc_ref, bc_ref,
                      out_ref,
                      x_ref,
                      *, n_heads, head_dim, batch, seq, vocab, max_pos, eps):
    """One encoder layer per grid step; embeddings at l==0, head at l==last.

    ids_ref:  (B*S, 1) int32 token ids (VMEM)
    mask_ref: (B, S)   float attention mask (1 = keep)
    per-layer weight refs arrive pre-sliced (leading layer axis squeezed)
    x_ref:    (B*S, H) f32 VMEM scratch — hidden-state carry across grid steps
    out_ref:  (B, n_classes) logits (written on the last grid step only)
    """
    l = pl.program_id(0)
    n_layers = pl.num_programs(0)
    H = n_heads * head_dim
    BS = batch * seq
    scale = 1.0 / math.sqrt(head_dim)

    # ---- layer 0 only: in-kernel embedding "gather" via one-hot MXU matmuls ----
    @pl.when(l == 0)
    def _():
        ids = ids_ref[...]                                           # (BS, 1) i32
        vcol = lax.broadcasted_iota(jnp.int32, (BS, vocab), 1)
        onehot_w = (vcol == ids).astype(jnp.float32)                 # (BS, V)
        emb = jnp.dot(onehot_w, wemb_ref[...],
                      preferred_element_type=jnp.float32)            # (BS, H)
        prow = lax.broadcasted_iota(jnp.int32, (BS, max_pos), 0) % seq
        pcol = lax.broadcasted_iota(jnp.int32, (BS, max_pos), 1)
        onehot_p = (prow == pcol).astype(jnp.float32)                # (BS, P)
        emb = emb + jnp.dot(onehot_p, pemb_ref[...],
                            preferred_element_type=jnp.float32)
        emb = emb + temb_ref[0:1, :]                                 # token_type=0
        # embedding dropout is identity (eval); LayerNorm in f32
        x_ref[...] = _layer_norm(emb, eg_ref[...], eb_ref[...], eps)

    # additive attention mask, computed in-kernel (trivial VPU work per step)
    add_mask = (1.0 - mask_ref[...]) * -10000.0                      # (B, S)

    # ---- fused QKV projection: one (B*S, H) @ (H, 3H) bf16 MXU matmul ----
    x = x_ref[...]                                                   # (BS, H) f32
    qkv = (jnp.dot(x.astype(jnp.bfloat16), wqkv_ref[...],
                   preferred_element_type=jnp.float32) + bqkv_ref[...])
    q = qkv[:, :H]
    k = qkv[:, H:2 * H]
    v = qkv[:, 2 * H:]
    wo = wo_ref[...]                                                 # (H, H) bf16
    bo = bo_ref[...]                                                 # (1, H) f32

    # ---- attention with the output projection fused per head ----
    for b in range(batch):
        r0 = b * seq
        m_b = add_mask[b:b + 1, :]                                   # (1, S)
        attn_b = jnp.zeros((seq, H), jnp.float32)                    # lane-dense acc
        for h in range(n_heads):
            c0 = h * head_dim
            q_bh = q[r0:r0 + seq, c0:c0 + head_dim]                  # (S, dH)
            k_bh = k[r0:r0 + seq, c0:c0 + head_dim]
            v_bh = v[r0:r0 + seq, c0:c0 + head_dim]
            s = lax.dot_general(q_bh, k_bh, (((1,), (1,)), ((), ())),
                                preferred_element_type=jnp.float32) * scale
            s = s + m_b
            s_max = jnp.max(s, axis=-1, keepdims=True)
            p = jnp.exp(s - s_max)
            denom = jnp.sum(p, axis=-1, keepdims=True)
            p = p * pl.reciprocal(denom, approx=True)                # EUP, not VALU
            ctx = jnp.dot(p, v_bh, preferred_element_type=jnp.float32)  # (S, dH)
            # fused per-head slice of the output projection (dH x H chunk of W_o)
            attn_b = attn_b + jnp.dot(ctx.astype(jnp.bfloat16),
                                      wo[c0:c0 + head_dim, :],
                                      preferred_element_type=jnp.float32)
        attn_b = attn_b + bo
        x_ref[r0:r0 + seq, :] = _layer_norm(
            attn_b + x[r0:r0 + seq, :], ln1g_ref[...], ln1b_ref[...], eps)

    # ---- feed-forward (bf16 MXU operands, f32 elementwise) + residual + LN ----
    x2 = x_ref[...]
    ff = _gelu(jnp.dot(x2.astype(jnp.bfloat16), wi_ref[...],
                       preferred_element_type=jnp.float32) + bi_ref[...])
    ff = (jnp.dot(ff.astype(jnp.bfloat16), wf_ref[...],
                  preferred_element_type=jnp.float32) + bf_ref[...])
    x_ref[...] = _layer_norm(ff + x2, ln2g_ref[...], ln2b_ref[...], eps)

    # ---- last layer only: CLS pooler + dropout(identity) + classifier ----
    @pl.when(l == n_layers - 1)
    def _():
        xf = x_ref[...]                                              # (BS, H)
        # pick CLS rows (row b*seq) with a tiny one-hot selection matmul
        rowb = lax.broadcasted_iota(jnp.int32, (batch, BS), 0)
        colr = lax.broadcasted_iota(jnp.int32, (batch, BS), 1)
        sel = (colr == rowb * seq).astype(jnp.float32)               # (B, BS)
        cls = jnp.dot(sel, xf, preferred_element_type=jnp.float32)   # (B, H)
        pooled = jnp.tanh(
            jnp.dot(cls.astype(jnp.bfloat16), wp_ref[...],
                    preferred_element_type=jnp.float32) + bp_ref[...])
        logits = (jnp.dot(pooled, wc_ref[...],
                          preferred_element_type=jnp.float32) + bc_ref[...])
        out_ref[...] = logits.astype(out_ref.dtype)


# ------------------------------- model (glue) -------------------------------- #

CFG = dict(
    vocab_size=100,
    max_position=32,
    type_vocab=2,
    hidden=128,
    n_heads=4,
    head_dim=32,
    intermediate=512,
    n_layers=2,
    n_classes=6,
)


def init_params(key, cfg):
    std = 0.02
    H, I = cfg["hidden"], cfg["intermediate"]
    L, C = cfg["n_layers"], cfg["n_classes"]
    keys = iter(jax.random.split(key, 32))
    bf16 = jnp.bfloat16

    def w(shape, dtype=jnp.float32):
        return (std * jax.random.normal(next(keys), shape)).astype(dtype)

    return {
        # embedding tables stay f32 (tiny DMA, exact one-hot gather)
        "word_emb": w((cfg["vocab_size"], H)),
        "pos_emb": w((cfg["max_position"], H)),
        "type_emb": w((cfg["type_vocab"], H)),
        "emb_ln_g": jnp.ones((1, H), jnp.float32),
        "emb_ln_b": jnp.zeros((1, H), jnp.float32),
        # per-layer encoder weights stacked along a leading layer axis;
        # matmul weights in bf16 (halves the dominant weight DMA), biases/LN f32.
        "wqkv": w((L, H, 3 * H), bf16),
        "bqkv": jnp.zeros((L, 1, 3 * H), jnp.float32),
        "wo": w((L, H, H), bf16),
        "bo": jnp.zeros((L, 1, H), jnp.float32),
        "ln1_g": jnp.ones((L, 1, H), jnp.float32),
        "ln1_b": jnp.zeros((L, 1, H), jnp.float32),
        "wi": w((L, H, I), bf16),
        "bi": jnp.zeros((L, 1, I), jnp.float32),
        "wf": w((L, I, H), bf16),
        "bf": jnp.zeros((L, 1, H), jnp.float32),
        "ln2_g": jnp.ones((L, 1, H), jnp.float32),
        "ln2_b": jnp.zeros((L, 1, H), jnp.float32),
        "pool_w": w((H, H), bf16),
        "pool_b": jnp.zeros((1, H), jnp.float32),
        "out_w": w((H, C)),                       # classifier kept f32 (logits)
        "out_b": jnp.zeros((1, C), jnp.float32),
    }


def emotion_classifier_forward(params, input_ids, attention_mask, cfg=CFG):
    B, S = input_ids.shape
    H, nH, dH = cfg["hidden"], cfg["n_heads"], cfg["head_dim"]
    I, L, C = cfg["intermediate"], cfg["n_layers"], cfg["n_classes"]
    V, P, T = cfg["vocab_size"], cfg["max_position"], cfg["type_vocab"]
    assert H == nH * dH
    BS = B * S

    # Only reshape/cast stays outside the kernel; embedding lookups, mask
    # arithmetic, both encoder layers, pooler and classifier are one pallas_call.
    ids = input_ids.reshape(BS, 1).astype(jnp.int32)
    mask = attention_mask.reshape(B, S).astype(jnp.float32)

    kernel = functools.partial(
        bert_layer_kernel, n_heads=nH, head_dim=dH, batch=B, seq=S,
        vocab=V, max_pos=P, eps=1e-12)

    def const(shape):
        return pl.BlockSpec(shape, lambda l, _n=len(shape): (0,) * _n)

    def perlayer(shape):
        return pl.BlockSpec((None,) + tuple(shape[1:]),
                            lambda l, _n=len(shape) - 1: (l,) + (0,) * _n)

    in_specs = [
        const((BS, 1)),                        # input ids
        const((B, S)),                         # attention mask
        const((V, H)), const((P, H)), const((T, H)),      # embedding tables
        const((1, H)), const((1, H)),                      # embedding LN
        perlayer((L, H, 3 * H)), perlayer((L, 1, 3 * H)),  # wqkv, bqkv
        perlayer((L, H, H)), perlayer((L, 1, H)),          # wo, bo
        perlayer((L, 1, H)), perlayer((L, 1, H)),          # ln1 g/b
        perlayer((L, H, I)), perlayer((L, 1, I)),          # wi, bi
        perlayer((L, I, H)), perlayer((L, 1, H)),          # wf, bf
        perlayer((L, 1, H)), perlayer((L, 1, H)),          # ln2 g/b
        const((H, H)), const((1, H)),                      # pooler
        const((H, C)), const((1, C)),                      # classifier
    ]

    flops = (2 * BS * (V + P) * H
             + L * 2 * BS * H * (3 * H + 2 * I)
             + L * 2 * B * nH * (2 * S * S * dH + S * dH * H)
             + 2 * B * H * (H + C) + 2 * B * BS * H)
    bytes_accessed = int(sum(int(x.size) * x.dtype.itemsize for x in params.values())
                         + ids.size * 4 + mask.size * 4 + B * C * 4)
    cost = pl.CostEstimate(flops=flops,
                           transcendentals=L * (BS * I + B * nH * S * S) + B * H,
                           bytes_accessed=bytes_accessed)

    return pl.pallas_call(
        kernel,
        out_shape=jax.ShapeDtypeStruct((B, C), jnp.float32),
        grid_spec=pltpu.PrefetchScalarGridSpec(
            num_scalar_prefetch=0,
            grid=(L,),
            in_specs=in_specs,
            out_specs=pl.BlockSpec((B, C), lambda l: (0, 0)),
            scratch_shapes=[pltpu.VMEM((BS, H), jnp.float32)],   # hidden-state carry
        ),
        compiler_params=pltpu.CompilerParams(
            dimension_semantics=("arbitrary",)),
        cost_estimate=cost,
    )(ids, mask,
      params["word_emb"], params["pos_emb"], params["type_emb"],
      params["emb_ln_g"], params["emb_ln_b"],
      params["wqkv"], params["bqkv"], params["wo"], params["bo"],
      params["ln1_g"], params["ln1_b"],
      params["wi"], params["bi"], params["wf"], params["bf"],
      params["ln2_g"], params["ln2_b"],
      params["pool_w"], params["pool_b"], params["out_w"], params["out_b"])


# ---------------------------------- main ------------------------------------- #

if __name__ == "__main__":
    key = jax.random.PRNGKey(0)
    pkey, ikey = jax.random.split(key)

    params = init_params(pkey, CFG)

    B, S = 2, 8
    input_ids = jax.random.randint(ikey, (B, S), 0, CFG["vocab_size"], dtype=jnp.int32)
    attention_mask = jnp.array(
        [[1, 1, 1, 1, 1, 1, 1, 1],
         [1, 1, 1, 1, 1, 0, 0, 0]], dtype=jnp.int32)

    logits = emotion_classifier_forward(params, input_ids, attention_mask)
    logits = jax.block_until_ready(logits)
    assert logits.shape == (B, CFG["n_classes"])
    assert bool(jnp.all(jnp.isfinite(logits)))
    print("KERNEL_OK")
</pallas_src>

<mosaic_0001>
module attributes {stable_mosaic.version = 11 : i64} {
  func.func @bert_layer_kernel(%arg0: i32, %arg1: memref<16x1xi32, #tpu.memory_space<vmem>>, %arg2: memref<2x8xf32, #tpu.memory_space<vmem>>, %arg3: memref<100x128xf32, #tpu.memory_space<vmem>>, %arg4: memref<32x128xf32, #tpu.memory_space<vmem>>, %arg5: memref<2x128xf32, #tpu.memory_space<vmem>>, %arg6: memref<1x128xf32, #tpu.memory_space<vmem>>, %arg7: memref<1x128xf32, #tpu.memory_space<vmem>>, %arg8: memref<1x128x384xbf16, #tpu.memory_space<vmem>>, %arg9: memref<1x1x384xf32, #tpu.memory_space<vmem>>, %arg10: memref<1x128x128xbf16, #tpu.memory_space<vmem>>, %arg11: memref<1x1x128xf32, #tpu.memory_space<vmem>>, %arg12: memref<1x1x128xf32, #tpu.memory_space<vmem>>, %arg13: memref<1x1x128xf32, #tpu.memory_space<vmem>>, %arg14: memref<1x128x512xbf16, #tpu.memory_space<vmem>>, %arg15: memref<1x1x512xf32, #tpu.memory_space<vmem>>, %arg16: memref<1x512x128xbf16, #tpu.memory_space<vmem>>, %arg17: memref<1x1x128xf32, #tpu.memory_space<vmem>>, %arg18: memref<1x1x128xf32, #tpu.memory_space<vmem>>, %arg19: memref<1x1x128xf32, #tpu.memory_space<vmem>>, %arg20: memref<128x128xbf16, #tpu.memory_space<vmem>>, %arg21: memref<1x128xf32, #tpu.memory_space<vmem>>, %arg22: memref<128x6xf32, #tpu.memory_space<vmem>>, %arg23: memref<1x6xf32, #tpu.memory_space<vmem>>, %arg24: memref<2x6xf32, #tpu.memory_space<vmem>>, %arg25: memref<16x128xf32, #tpu.memory_space<vmem>>) attributes {dimension_semantics = [#tpu.dimension_semantics<arbitrary>], iteration_bounds = array<i64: 2>, scalar_prefetch = 0 : i64, scratch_operands = 1 : i64, tpu.core_type = #tpu.core_type<tc>, window_params = [{pipeline_mode = #tpu.pipeline_mode<synchronous>, transform_indices = @transform_0, window_bounds = array<i64: 16, 1>}, {pipeline_mode = #tpu.pipeline_mode<synchronous>, transform_indices = @transform_1, window_bounds = array<i64: 2, 8>}, {pipeline_mode = #tpu.pipeline_mode<synchronous>, transform_indices = @transform_2, window_bounds = array<i64: 100, 128>}, {pipeline_mode = #tpu.pipeline_mode<synchronous>, transform_indices = @transform_3, window_bounds = array<i64: 32, 128>}, {pipeline_mode = #tpu.pipeline_mode<synchronous>, transform_indices = @transform_4, window_bounds = array<i64: 2, 128>}, {pipeline_mode = #tpu.pipeline_mode<synchronous>, transform_indices = @transform_5, window_bounds = array<i64: 1, 128>}, {pipeline_mode = #tpu.pipeline_mode<synchronous>, transform_indices = @transform_6, window_bounds = array<i64: 1, 128>}, {transform_indices = @transform_7, window_bounds = array<i64: 1, 128, 384>}, {transform_indices = @transform_8, window_bounds = array<i64: 1, 1, 384>}, {transform_indices = @transform_9, window_bounds = array<i64: 1, 128, 128>}, {transform_indices = @transform_10, window_bounds = array<i64: 1, 1, 128>}, {transform_indices = @transform_11, window_bounds = array<i64: 1, 1, 128>}, {transform_indices = @transform_12, window_bounds = array<i64: 1, 1, 128>}, {transform_indices = @transform_13, window_bounds = array<i64: 1, 128, 512>}, {transform_indices = @transform_14, window_bounds = array<i64: 1, 1, 512>}, {transform_indices = @transform_15, window_bounds = array<i64: 1, 512, 128>}, {transform_indices = @transform_16, window_bounds = array<i64: 1, 1, 128>}, {transform_indices = @transform_17, window_bounds = array<i64: 1, 1, 128>}, {transform_indices = @transform_18, window_bounds = array<i64: 1, 1, 128>}, {pipeline_mode = #tpu.pipeline_mode<synchronous>, transform_indices = @transform_19, window_bounds = array<i64: 128, 128>}, {pipeline_mode = #tpu.pipeline_mode<synchronous>, transform_indices = @transform_20, window_bounds = array<i64: 1, 128>}, {pipeline_mode = #tpu.pipeline_mode<synchronous>, transform_indices = @transform_21, window_bounds = array<i64: 128, 6>}, {pipeline_mode = #tpu.pipeline_mode<synchronous>, transform_indices = @transform_22, window_bounds = array<i64: 1, 6>}, {pipeline_mode = #tpu.pipeline_mode<synchronous>, transform_indices = @transform_23, window_bounds = array<i64: 2, 6>}]} {
    %c0_i32 = arith.constant 0 : i32
    %0 = arith.cmpi eq, %arg0, %c0_i32 : i32
    %1 = arith.extui %0 : i1 to i32
    %c0_i32_0 = arith.constant 0 : i32
    %2 = arith.cmpi ne, %1, %c0_i32_0 : i32
    scf.if %2 {
      %c0_127 = arith.constant 0 : index
      %c0_128 = arith.constant 0 : index
      %341 = vector.load %arg1[%c0_127, %c0_128] : memref<16x1xi32, #tpu.memory_space<vmem>>, vector<16x1xi32>
      %342 = tpu.iota {dimensions = array<i32: 1>} : vector<16x100xi32>
      %343 = vector.broadcast %341 : vector<16x1xi32> to vector<16x100xi32>
      %344 = arith.cmpi eq, %342, %343 : vector<16x100xi32>
      %345 = arith.extui %344 : vector<16x100xi1> to vector<16x100xi32>
      %346 = arith.sitofp %345 : vector<16x100xi32> to vector<16x100xf32>
      %c0_129 = arith.constant 0 : index
      %c0_130 = arith.constant 0 : index
      %347 = vector.load %arg3[%c0_129, %c0_130] : memref<100x128xf32, #tpu.memory_space<vmem>>, vector<100x128xf32>
      %cst_131 = arith.constant dense<0.000000e+00> : vector<16x128xf32>
      %348 = tpu.matmul %346, %347, %cst_131 {dimension_numbers = #tpu.dot_dimension_numbers<[1], [0], [0], [1], [0, 0, 1, 1], [], []>} : vector<16x100xf32>, vector<100x128xf32>, vector<16x128xf32> -> vector<16x128xf32>
      %349 = tpu.iota {dimensions = array<i32: 0>} : vector<16x32xi32>
      %c8_i32 = arith.constant 8 : i32
      %c0_i32_132 = arith.constant 0 : i32
      %350 = arith.cmpi eq, %c8_i32, %c0_i32_132 : i32
      %c1_i32_133 = arith.constant 1 : i32
      %351 = arith.select %350, %c1_i32_133, %c8_i32 : i32
      %352 = vector.broadcast %351 : i32 to vector<16x32xi32>
      %353 = arith.remsi %349, %352 : vector<16x32xi32>
      %c0_i32_134 = arith.constant 0 : i32
      %354 = vector.broadcast %c0_i32_134 : i32 to vector<16x32xi32>
      %355 = arith.cmpi ne, %353, %354 : vector<16x32xi32>
      %c0_i32_135 = arith.constant 0 : i32
      %356 = vector.broadcast %c0_i32_135 : i32 to vector<16x32xi32>
      %357 = arith.cmpi slt, %353, %356 : vector<16x32xi32>
      %c0_i32_136 = arith.constant 0 : i32
      %358 = arith.cmpi slt, %351, %c0_i32_136 : i32
      %359 = vector.broadcast %358 : i1 to vector<16x32xi1>
      %360 = vector.broadcast %359 : vector<16x32xi1> to vector<16x32xi1>
      %361 = arith.xori %357, %360 : vector<16x32xi1>
      %362 = arith.andi %361, %355 : vector<16x32xi1>
      %363 = vector.broadcast %351 : i32 to vector<16x32xi32>
      %364 = arith.addi %353, %363 : vector<16x32xi32>
      %365 = arith.select %362, %364, %353 : vector<16x32xi1>, vector<16x32xi32>
      %366 = tpu.iota {dimensions = array<i32: 1>} : vector<16x32xi32>
      %367 = arith.cmpi eq, %365, %366 : vector<16x32xi32>
      %368 = arith.extui %367 : vector<16x32xi1> to vector<16x32xi32>
      %369 = arith.sitofp %368 : vector<16x32xi32> to vector<16x32xf32>
      %c0_137 = arith.constant 0 : index
      %c0_138 = arith.constant 0 : index
      %370 = vector.load %arg4[%c0_137, %c0_138] : memref<32x128xf32, #tpu.memory_space<vmem>>, vector<32x128xf32>
      %cst_139 = arith.constant dense<0.000000e+00> : vector<16x128xf32>
      %371 = tpu.matmul %369, %370, %cst_139 {dimension_numbers = #tpu.dot_dimension_numbers<[1], [0], [0], [1], [0, 0, 1, 1], [], []>} : vector<16x32xf32>, vector<32x128xf32>, vector<16x128xf32> -> vector<16x128xf32>
      %372 = arith.addf %348, %371 : vector<16x128xf32>
      %c0_140 = arith.constant 0 : index
      %c0_141 = arith.constant 0 : index
      %373 = vector.load %arg5[%c0_140, %c0_141] : memref<2x128xf32, #tpu.memory_space<vmem>>, vector<1x128xf32>
      %374 = vector.broadcast %373 : vector<1x128xf32> to vector<16x128xf32>
      %375 = arith.addf %372, %374 : vector<16x128xf32>
      %c0_142 = arith.constant 0 : index
      %c0_143 = arith.constant 0 : index
      %376 = vector.load %arg6[%c0_142, %c0_143] : memref<1x128xf32, #tpu.memory_space<vmem>>, vector<1x128xf32>
      %c0_144 = arith.constant 0 : index
      %c0_145 = arith.constant 0 : index
      %377 = vector.load %arg7[%c0_144, %c0_145] : memref<1x128xf32, #tpu.memory_space<vmem>>, vector<1x128xf32>
      %cst_146 = arith.constant dense<0.000000e+00> : vector<16xf32>
      %378 = vector.multi_reduction <add>, %375, %cst_146 [1] : vector<16x128xf32> to vector<16xf32>
      %379 = vector.shape_cast %378 : vector<16xf32> to vector<16x1xf32>
      %cst_147 = arith.constant 1.280000e+02 : f32
      %380 = vector.broadcast %cst_147 : f32 to vector<16x1xf32>
      %381 = arith.divf %379, %380 : vector<16x1xf32>
      %382 = vector.broadcast %381 : vector<16x1xf32> to vector<16x128xf32>
      %383 = arith.subf %375, %382 : vector<16x128xf32>
      %384 = vector.broadcast %381 : vector<16x1xf32> to vector<16x128xf32>
      %385 = arith.subf %375, %384 : vector<16x128xf32>
      %386 = arith.mulf %383, %385 : vector<16x128xf32>
      %cst_148 = arith.constant dense<0.000000e+00> : vector<16xf32>
      %387 = vector.multi_reduction <add>, %386, %cst_148 [1] : vector<16x128xf32> to vector<16xf32>
      %388 = vector.shape_cast %387 : vector<16xf32> to vector<16x1xf32>
      %cst_149 = arith.constant 1.280000e+02 : f32
      %389 = vector.broadcast %cst_149 : f32 to vector<16x1xf32>
      %390 = arith.divf %388, %389 : vector<16x1xf32>
      %391 = vector.broadcast %381 : vector<16x1xf32> to vector<16x128xf32>
      %392 = arith.subf %375, %391 : vector<16x128xf32>
      %cst_150 = arith.constant 9.99999996E-13 : f32
      %393 = vector.broadcast %cst_150 : f32 to vector<16x1xf32>
      %394 = arith.addf %390, %393 : vector<16x1xf32>
      %395 = math.rsqrt %394 : vector<16x1xf32>
      %396 = vector.broadcast %395 : vector<16x1xf32> to vector<16x128xf32>
      %397 = arith.mulf %392, %396 : vector<16x128xf32>
      %398 = vector.broadcast %376 : vector<1x128xf32> to vector<16x128xf32>
      %399 = arith.mulf %397, %398 : vector<16x128xf32>
      %400 = vector.broadcast %377 : vector<1x128xf32> to vector<16x128xf32>
      %401 = arith.addf %399, %400 : vector<16x128xf32>
      %c0_151 = arith.constant 0 : index
      %c0_152 = arith.constant 0 : index
      %402 = vector.load %arg25[%c0_151, %c0_152] : memref<16x128xf32, #tpu.memory_space<vmem>>, vector<16x128xf32>
      tpu.vector_store %arg25[%c0_151, %c0_152], %401 {strides = array<i32>} : memref<16x128xf32, #tpu.memory_space<vmem>>, vector<16x128xf32>,
    } else {
    }
    %c0 = arith.constant 0 : index
    %c0_1 = arith.constant 0 : index
    %3 = vector.load %arg2[%c0, %c0_1] : memref<2x8xf32, #tpu.memory_space<vmem>>, vector<2x8xf32>
    %cst = arith.constant 1.000000e+00 : f32
    %4 = vector.broadcast %cst : f32 to vector<2x8xf32>
    %5 = arith.subf %4, %3 : vector<2x8xf32>
    %cst_2 = arith.constant -1.000000e+04 : f32
    %6 = vector.broadcast %cst_2 : f32 to vector<2x8xf32>
    %7 = arith.mulf %5, %6 : vector<2x8xf32>
    %c0_3 = arith.constant 0 : index
    %c0_4 = arith.constant 0 : index
    %8 = vector.load %arg25[%c0_3, %c0_4] : memref<16x128xf32, #tpu.memory_space<vmem>>, vector<16x128xf32>
    %9 = arith.truncf %8 : vector<16x128xf32> to vector<16x128xbf16>
    %c0_5 = arith.constant 0 : index
    %c0_6 = arith.constant 0 : index
    %c0_7 = arith.constant 0 : index
    %10 = vector.load %arg8[%c0_5, %c0_6, %c0_7] : memref<1x128x384xbf16, #tpu.memory_space<vmem>>, vector<1x128x384xbf16>
    %11 = vector.shape_cast %10 : vector<1x128x384xbf16> to vector<128x384xbf16>
    %cst_8 = arith.constant dense<0.000000e+00> : vector<16x384xf32>
    %12 = tpu.matmul %9, %11, %cst_8 {dimension_numbers = #tpu.dot_dimension_numbers<[1], [0], [0], [1], [0, 0, 1, 1], [], []>} : vector<16x128xbf16>, vector<128x384xbf16>, vector<16x384xf32> -> vector<16x384xf32>
    %c0_9 = arith.constant 0 : index
    %c0_10 = arith.constant 0 : index
    %c0_11 = arith.constant 0 : index
    %13 = vector.load %arg9[%c0_9, %c0_10, %c0_11] : memref<1x1x384xf32, #tpu.memory_space<vmem>>, vector<1x1x384xf32>
    %14 = vector.shape_cast %13 : vector<1x1x384xf32> to vector<1x384xf32>
    %15 = vector.broadcast %14 : vector<1x384xf32> to vector<16x384xf32>
    %16 = arith.addf %12, %15 : vector<16x384xf32>
    %17 = vector.extract_strided_slice %16 {offsets = [0, 0], sizes = [16, 128], strides = [1, 1]} : vector<16x384xf32> to vector<16x128xf32>
    %18 = vector.extract_strided_slice %16 {offsets = [0, 128], sizes = [16, 128], strides = [1, 1]} : vector<16x384xf32> to vector<16x128xf32>
    %19 = vector.extract_strided_slice %16 {offsets = [0, 256], sizes = [16, 128], strides = [1, 1]} : vector<16x384xf32> to vector<16x128xf32>
    %c0_12 = arith.constant 0 : index
    %c0_13 = arith.constant 0 : index
    %c0_14 = arith.constant 0 : index
    %20 = vector.load %arg10[%c0_12, %c0_13, %c0_14] : memref<1x128x128xbf16, #tpu.memory_space<vmem>>, vector<1x128x128xbf16>
    %21 = vector.shape_cast %20 : vector<1x128x128xbf16> to vector<128x128xbf16>
    %c0_15 = arith.constant 0 : index
    %c0_16 = arith.constant 0 : index
    %c0_17 = arith.constant 0 : index
    %22 = vector.load %arg11[%c0_15, %c0_16, %c0_17] : memref<1x1x128xf32, #tpu.memory_space<vmem>>, vector<1x1x128xf32>
    %23 = vector.shape_cast %22 : vector<1x1x128xf32> to vector<1x128xf32>
    %24 = vector.extract_strided_slice %7 {offsets = [0, 0], sizes = [1, 8], strides = [1, 1]} : vector<2x8xf32> to vector<1x8xf32>
    %cst_18 = arith.constant 0.000000e+00 : f32
    %25 = vector.broadcast %cst_18 : f32 to vector<8x128xf32>
    %26 = vector.extract_strided_slice %17 {offsets = [0, 0], sizes = [8, 32], strides = [1, 1]} : vector<16x128xf32> to vector<8x32xf32>
    %27 = vector.extract_strided_slice %18 {offsets = [0, 0], sizes = [8, 32], strides = [1, 1]} : vector<16x128xf32> to vector<8x32xf32>
    %28 = vector.extract_strided_slice %19 {offsets = [0, 0], sizes = [8, 32], strides = [1, 1]} : vector<16x128xf32> to vector<8x32xf32>
    %cst_19 = arith.constant dense<0.000000e+00> : vector<8x8xf32>
    %29 = tpu.matmul %26, %27, %cst_19 {dimension_numbers = #tpu.dot_dimension_numbers<[1], [1], [0], [0], [0, 0, 1, 0], [], []>} : vector<8x32xf32>, vector<8x32xf32>, vector<8x8xf32> -> vector<8x8xf32>
    %cst_20 = arith.constant 0.176776692 : f32
    %30 = vector.broadcast %cst_20 : f32 to vector<8x8xf32>
    %31 = arith.mulf %29, %30 : vector<8x8xf32>
    %32 = vector.broadcast %24 : vector<1x8xf32> to vector<8x8xf32>
    %33 = arith.addf %31, %32 : vector<8x8xf32>
    %cst_21 = arith.constant dense<0xFF800000> : vector<8xf32>
    %34 = vector.multi_reduction <maximumf>, %33, %cst_21 [1] : vector<8x8xf32> to vector<8xf32>
    %35 = vector.shape_cast %34 : vector<8xf32> to vector<8x1xf32>
    %36 = vector.broadcast %35 : vector<8x1xf32> to vector<8x8xf32>
    %37 = arith.subf %33, %36 : vector<8x8xf32>
    %38 = math.exp %37 : vector<8x8xf32>
    %cst_22 = arith.constant dense<0.000000e+00> : vector<8xf32>
    %39 = vector.multi_reduction <add>, %38, %cst_22 [1] : vector<8x8xf32> to vector<8xf32>
    %40 = vector.shape_cast %39 : vector<8xf32> to vector<8x1xf32>
    %41 = tpu.reciprocal %40 {approx = true} : vector<8x1xf32> -> vector<8x1xf32>
    %42 = vector.broadcast %41 : vector<8x1xf32> to vector<8x8xf32>
    %43 = arith.mulf %38, %42 : vector<8x8xf32>
    %cst_23 = arith.constant dense<0.000000e+00> : vector<8x32xf32>
    %44 = tpu.matmul %43, %28, %cst_23 {dimension_numbers = #tpu.dot_dimension_numbers<[1], [0], [0], [1], [0, 0, 1, 1], [], []>} : vector<8x8xf32>, vector<8x32xf32>, vector<8x32xf32> -> vector<8x32xf32>
    %45 = arith.truncf %44 : vector<8x32xf32> to vector<8x32xbf16>
    %46 = vector.extract_strided_slice %21 {offsets = [0, 0], sizes = [32, 128], strides = [1, 1]} : vector<128x128xbf16> to vector<32x128xbf16>
    %cst_24 = arith.constant dense<0.000000e+00> : vector<8x128xf32>
    %47 = tpu.matmul %45, %46, %cst_24 {dimension_numbers = #tpu.dot_dimension_numbers<[1], [0], [0], [1], [0, 0, 1, 1], [], []>} : vector<8x32xbf16>, vector<32x128xbf16>, vector<8x128xf32> -> vector<8x128xf32>
    %48 = arith.addf %25, %47 : vector<8x128xf32>
    %49 = vector.extract_strided_slice %17 {offsets = [0, 32], sizes = [8, 32], strides = [1, 1]} : vector<16x128xf32> to vector<8x32xf32>
    %50 = vector.extract_strided_slice %18 {offsets = [0, 32], sizes = [8, 32], strides = [1, 1]} : vector<16x128xf32> to vector<8x32xf32>
    %51 = vector.extract_strided_slice %19 {offsets = [0, 32], sizes = [8, 32], strides = [1, 1]} : vector<16x128xf32> to vector<8x32xf32>
    %cst_25 = arith.constant dense<0.000000e+00> : vector<8x8xf32>
    %52 = tpu.matmul %49, %50, %cst_25 {dimension_numbers = #tpu.dot_dimension_numbers<[1], [1], [0], [0], [0, 0, 1, 0], [], []>} : vector<8x32xf32>, vector<8x32xf32>, vector<8x8xf32> -> vector<8x8xf32>
    %cst_26 = arith.constant 0.176776692 : f32
    %53 = vector.broadcast %cst_26 : f32 to vector<8x8xf32>
    %54 = arith.mulf %52, %53 : vector<8x8xf32>
    %55 = vector.broadcast %24 : vector<1x8xf32> to vector<8x8xf32>
    %56 = arith.addf %54, %55 : vector<8x8xf32>
    %cst_27 = arith.constant dense<0xFF800000> : vector<8xf32>
    %57 = vector.multi_reduction <maximumf>, %56, %cst_27 [1] : vector<8x8xf32> to vector<8xf32>
    %58 = vector.shape_cast %57 : vector<8xf32> to vector<8x1xf32>
    %59 = vector.broadcast %58 : vector<8x1xf32> to vector<8x8xf32>
    %60 = arith.subf %56, %59 : vector<8x8xf32>
    %61 = math.exp %60 : vector<8x8xf32>
    %cst_28 = arith.constant dense<0.000000e+00> : vector<8xf32>
    %62 = vector.multi_reduction <add>, %61, %cst_28 [1] : vector<8x8xf32> to vector<8xf32>
    %63 = vector.shape_cast %62 : vector<8xf32> to vector<8x1xf32>
    %64 = tpu.reciprocal %63 {approx = true} : vector<8x1xf32> -> vector<8x1xf32>
    %65 = vector.broadcast %64 : vector<8x1xf32> to vector<8x8xf32>
    %66 = arith.mulf %61, %65 : vector<8x8xf32>
    %cst_29 = arith.constant dense<0.000000e+00> : vector<8x32xf32>
    %67 = tpu.matmul %66, %51, %cst_29 {dimension_numbers = #tpu.dot_dimension_numbers<[1], [0], [0], [1], [0, 0, 1, 1], [], []>} : vector<8x8xf32>, vector<8x32xf32>, vector<8x32xf32> -> vector<8x32xf32>
    %68 = arith.truncf %67 : vector<8x32xf32> to vector<8x32xbf16>
    %69 = vector.extract_strided_slice %21 {offsets = [32, 0], sizes = [32, 128], strides = [1, 1]} : vector<128x128xbf16> to vector<32x128xbf16>
    %cst_30 = arith.constant dense<0.000000e+00> : vector<8x128xf32>
    %70 = tpu.matmul %68, %69, %cst_30 {dimension_numbers = #tpu.dot_dimension_numbers<[1], [0], [0], [1], [0, 0, 1, 1], [], []>} : vector<8x32xbf16>, vector<32x128xbf16>, vector<8x128xf32> -> vector<8x128xf32>
    %71 = arith.addf %48, %70 : vector<8x128xf32>
    %72 = vector.extract_strided_slice %17 {offsets = [0, 64], sizes = [8, 32], strides = [1, 1]} : vector<16x128xf32> to vector<8x32xf32>
    %73 = vector.extract_strided_slice %18 {offsets = [0, 64], sizes = [8, 32], strides = [1, 1]} : vector<16x128xf32> to vector<8x32xf32>
    %74 = vector.extract_strided_slice %19 {offsets = [0, 64], sizes = [8, 32], strides = [1, 1]} : vector<16x128xf32> to vector<8x32xf32>
    %cst_31 = arith.constant dense<0.000000e+00> : vector<8x8xf32>
    %75 = tpu.matmul %72, %73, %cst_31 {dimension_numbers = #tpu.dot_dimension_numbers<[1], [1], [0], [0], [0, 0, 1, 0], [], []>} : vector<8x32xf32>, vector<8x32xf32>, vector<8x8xf32> -> vector<8x8xf32>
    %cst_32 = arith.constant 0.176776692 : f32
    %76 = vector.broadcast %cst_32 : f32 to vector<8x8xf32>
    %77 = arith.mulf %75, %76 : vector<8x8xf32>
    %78 = vector.broadcast %24 : vector<1x8xf32> to vector<8x8xf32>
    %79 = arith.addf %77, %78 : vector<8x8xf32>
    %cst_33 = arith.constant dense<0xFF800000> : vector<8xf32>
    %80 = vector.multi_reduction <maximumf>, %79, %cst_33 [1] : vector<8x8xf32> to vector<8xf32>
    %81 = vector.shape_cast %80 : vector<8xf32> to vector<8x1xf32>
    %82 = vector.broadcast %81 : vector<8x1xf32> to vector<8x8xf32>
    %83 = arith.subf %79, %82 : vector<8x8xf32>
    %84 = math.exp %83 : vector<8x8xf32>
    %cst_34 = arith.constant dense<0.000000e+00> : vector<8xf32>
    %85 = vector.multi_reduction <add>, %84, %cst_34 [1] : vector<8x8xf32> to vector<8xf32>
    %86 = vector.shape_cast %85 : vector<8xf32> to vector<8x1xf32>
    %87 = tpu.reciprocal %86 {approx = true} : vector<8x1xf32> -> vector<8x1xf32>
    %88 = vector.broadcast %87 : vector<8x1xf32> to vector<8x8xf32>
    %89 = arith.mulf %84, %88 : vector<8x8xf32>
    %cst_35 = arith.constant dense<0.000000e+00> : vector<8x32xf32>
    %90 = tpu.matmul %89, %74, %cst_35 {dimension_numbers = #tpu.dot_dimension_numbers<[1], [0], [0], [1], [0, 0, 1, 1], [], []>} : vector<8x8xf32>, vector<8x32xf32>, vector<8x32xf32> -> vector<8x32xf32>
    %91 = arith.truncf %90 : vector<8x32xf32> to vector<8x32xbf16>
    %92 = vector.extract_strided_slice %21 {offsets = [64, 0], sizes = [32, 128], strides = [1, 1]} : vector<128x128xbf16> to vector<32x128xbf16>
    %cst_36 = arith.constant dense<0.000000e+00> : vector<8x128xf32>
    %93 = tpu.matmul %91, %92, %cst_36 {dimension_numbers = #tpu.dot_dimension_numbers<[1], [0], [0], [1], [0, 0, 1, 1], [], []>} : vector<8x32xbf16>, vector<32x128xbf16>, vector<8x128xf32> -> vector<8x128xf32>
    %94 = arith.addf %71, %93 : vector<8x128xf32>
    %95 = vector.extract_strided_slice %17 {offsets = [0, 96], sizes = [8, 32], strides = [1, 1]} : vector<16x128xf32> to vector<8x32xf32>
    %96 = vector.extract_strided_slice %18 {offsets = [0, 96], sizes = [8, 32], strides = [1, 1]} : vector<16x128xf32> to vector<8x32xf32>
    %97 = vector.extract_strided_slice %19 {offsets = [0, 96], sizes = [8, 32], strides = [1, 1]} : vector<16x128xf32> to vector<8x32xf32>
    %cst_37 = arith.constant dense<0.000000e+00> : vector<8x8xf32>
    %98 = tpu.matmul %95, %96, %cst_37 {dimension_numbers = #tpu.dot_dimension_numbers<[1], [1], [0], [0], [0, 0, 1, 0], [], []>} : vector<8x32xf32>, vector<8x32xf32>, vector<8x8xf32> -> vector<8x8xf32>
    %cst_38 = arith.constant 0.176776692 : f32
    %99 = vector.broadcast %cst_38 : f32 to vector<8x8xf32>
    %100 = arith.mulf %98, %99 : vector<8x8xf32>
    %101 = vector.broadcast %24 : vector<1x8xf32> to vector<8x8xf32>
    %102 = arith.addf %100, %101 : vector<8x8xf32>
    %cst_39 = arith.constant dense<0xFF800000> : vector<8xf32>
    %103 = vector.multi_reduction <maximumf>, %102, %cst_39 [1] : vector<8x8xf32> to vector<8xf32>
    %104 = vector.shape_cast %103 : vector<8xf32> to vector<8x1xf32>
    %105 = vector.broadcast %104 : vector<8x1xf32> to vector<8x8xf32>
    %106 = arith.subf %102, %105 : vector<8x8xf32>
    %107 = math.exp %106 : vector<8x8xf32>
    %cst_40 = arith.constant dense<0.000000e+00> : vector<8xf32>
    %108 = vector.multi_reduction <add>, %107, %cst_40 [1] : vector<8x8xf32> to vector<8xf32>
    %109 = vector.shape_cast %108 : vector<8xf32> to vector<8x1xf32>
    %110 = tpu.reciprocal %109 {approx = true} : vector<8x1xf32> -> vector<8x1xf32>
    %111 = vector.broadcast %110 : vector<8x1xf32> to vector<8x8xf32>
    %112 = arith.mulf %107, %111 : vector<8x8xf32>
    %cst_41 = arith.constant dense<0.000000e+00> : vector<8x32xf32>
    %113 = tpu.matmul %112, %97, %cst_41 {dimension_numbers = #tpu.dot_dimension_numbers<[1], [0], [0], [1], [0, 0, 1, 1], [], []>} : vector<8x8xf32>, vector<8x32xf32>, vector<8x32xf32> -> vector<8x32xf32>
    %114 = arith.truncf %113 : vector<8x32xf32> to vector<8x32xbf16>
    %115 = vector.extract_strided_slice %21 {offsets = [96, 0], sizes = [32, 128], strides = [1, 1]} : vector<128x128xbf16> to vector<32x128xbf16>
    %cst_42 = arith.constant dense<0.000000e+00> : vector<8x128xf32>
    %116 = tpu.matmul %114, %115, %cst_42 {dimension_numbers = #tpu.dot_dimension_numbers<[1], [0], [0], [1], [0, 0, 1, 1], [], []>} : vector<8x32xbf16>, vector<32x128xbf16>, vector<8x128xf32> -> vector<8x128xf32>
    %117 = arith.addf %94, %116 : vector<8x128xf32>
    %118 = vector.broadcast %23 : vector<1x128xf32> to vector<8x128xf32>
    %119 = arith.addf %117, %118 : vector<8x128xf32>
    %120 = vector.extract_strided_slice %8 {offsets = [0, 0], sizes = [8, 128], strides = [1, 1]} : vector<16x128xf32> to vector<8x128xf32>
    %121 = arith.addf %119, %120 : vector<8x128xf32>
    %c0_43 = arith.constant 0 : index
    %c0_44 = arith.constant 0 : index
    %c0_45 = arith.constant 0 : index
    %122 = vector.load %arg12[%c0_43, %c0_44, %c0_45] : memref<1x1x128xf32, #tpu.memory_space<vmem>>, vector<1x1x128xf32>
    %123 = vector.shape_cast %122 : vector<1x1x128xf32> to vector<1x128xf32>
    %c0_46 = arith.constant 0 : index
    %c0_47 = arith.constant 0 : index
    %c0_48 = arith.constant 0 : index
    %124 = vector.load %arg13[%c0_46, %c0_47, %c0_48] : memref<1x1x128xf32, #tpu.memory_space<vmem>>, vector<1x1x128xf32>
    %125 = vector.shape_cast %124 : vector<1x1x128xf32> to vector<1x128xf32>
    %cst_49 = arith.constant dense<0.000000e+00> : vector<8xf32>
    %126 = vector.multi_reduction <add>, %121, %cst_49 [1] : vector<8x128xf32> to vector<8xf32>
    %127 = vector.shape_cast %126 : vector<8xf32> to vector<8x1xf32>
    %cst_50 = arith.constant 1.280000e+02 : f32
    %128 = vector.broadcast %cst_50 : f32 to vector<8x1xf32>
    %129 = arith.divf %127, %128 : vector<8x1xf32>
    %130 = vector.broadcast %129 : vector<8x1xf32> to vector<8x128xf32>
    %131 = arith.subf %121, %130 : vector<8x128xf32>
    %132 = vector.broadcast %129 : vector<8x1xf32> to vector<8x128xf32>
    %133 = arith.subf %121, %132 : vector<8x128xf32>
    %134 = arith.mulf %131, %133 : vector<8x128xf32>
    %cst_51 = arith.constant dense<0.000000e+00> : vector<8xf32>
    %135 = vector.multi_reduction <add>, %134, %cst_51 [1] : vector<8x128xf32> to vector<8xf32>
    %136 = vector.shape_cast %135 : vector<8xf32> to vector<8x1xf32>
    %cst_52 = arith.constant 1.280000e+02 : f32
    %137 = vector.broadcast %cst_52 : f32 to vector<8x1xf32>
    %138 = arith.divf %136, %137 : vector<8x1xf32>
    %139 = vector.broadcast %129 : vector<8x1xf32> to vector<8x128xf32>
    %140 = arith.subf %121, %139 : vector<8x128xf32>
    %cst_53 = arith.constant 9.99999996E-13 : f32
    %141 = vector.broadcast %cst_53 : f32 to vector<8x1xf32>
    %142 = arith.addf %138, %141 : vector<8x1xf32>
    %143 = math.rsqrt %142 : vector<8x1xf32>
    %144 = vector.broadcast %143 : vector<8x1xf32> to vector<8x128xf32>
    %145 = arith.mulf %140, %144 : vector<8x128xf32>
    %146 = vector.broadcast %123 : vector<1x128xf32> to vector<8x128xf32>
    %147 = arith.mulf %145, %146 : vector<8x128xf32>
    %148 = vector.broadcast %125 : vector<1x128xf32> to vector<8x128xf32>
    %149 = arith.addf %147, %148 : vector<8x128xf32>
    %c0_54 = arith.constant 0 : index
    %c0_55 = arith.constant 0 : index
    %150 = vector.load %arg25[%c0_54, %c0_55] : memref<16x128xf32, #tpu.memory_space<vmem>>, vector<8x128xf32>
    tpu.vector_store %arg25[%c0_54, %c0_55], %149 {strides = array<i32>} : memref<16x128xf32, #tpu.memory_space<vmem>>, vector<8x128xf32>,
    %151 = vector.extract_strided_slice %7 {offsets = [1, 0], sizes = [1, 8], strides = [1, 1]} : vector<2x8xf32> to vector<1x8xf32>
    %cst_56 = arith.constant 0.000000e+00 : f32
    %152 = vector.broadcast %cst_56 : f32 to vector<8x128xf32>
    %153 = vector.extract_strided_slice %17 {offsets = [8, 0], sizes = [8, 32], strides = [1, 1]} : vector<16x128xf32> to vector<8x32xf32>
    %154 = vector.extract_strided_slice %18 {offsets = [8, 0], sizes = [8, 32], strides = [1, 1]} : vector<16x128xf32> to vector<8x32xf32>
    %155 = vector.extract_strided_slice %19 {offsets = [8, 0], sizes = [8, 32], strides = [1, 1]} : vector<16x128xf32> to vector<8x32xf32>
    %cst_57 = arith.constant dense<0.000000e+00> : vector<8x8xf32>
    %156 = tpu.matmul %153, %154, %cst_57 {dimension_numbers = #tpu.dot_dimension_numbers<[1], [1], [0], [0], [0, 0, 1, 0], [], []>} : vector<8x32xf32>, vector<8x32xf32>, vector<8x8xf32> -> vector<8x8xf32>
    %cst_58 = arith.constant 0.176776692 : f32
    %157 = vector.broadcast %cst_58 : f32 to vector<8x8xf32>
    %158 = arith.mulf %156, %157 : vector<8x8xf32>
    %159 = vector.broadcast %151 : vector<1x8xf32> to vector<8x8xf32>
    %160 = arith.addf %158, %159 : vector<8x8xf32>
    %cst_59 = arith.constant dense<0xFF800000> : vector<8xf32>
    %161 = vector.multi_reduction <maximumf>, %160, %cst_59 [1] : vector<8x8xf32> to vector<8xf32>
    %162 = vector.shape_cast %161 : vector<8xf32> to vector<8x1xf32>
    %163 = vector.broadcast %162 : vector<8x1xf32> to vector<8x8xf32>
    %164 = arith.subf %160, %163 : vector<8x8xf32>
    %165 = math.exp %164 : vector<8x8xf32>
    %cst_60 = arith.constant dense<0.000000e+00> : vector<8xf32>
    %166 = vector.multi_reduction <add>, %165, %cst_60 [1] : vector<8x8xf32> to vector<8xf32>
    %167 = vector.shape_cast %166 : vector<8xf32> to vector<8x1xf32>
    %168 = tpu.reciprocal %167 {approx = true} : vector<8x1xf32> -> vector<8x1xf32>
    %169 = vector.broadcast %168 : vector<8x1xf32> to vector<8x8xf32>
    %170 = arith.mulf %165, %169 : vector<8x8xf32>
    %cst_61 = arith.constant dense<0.000000e+00> : vector<8x32xf32>
    %171 = tpu.matmul %170, %155, %cst_61 {dimension_numbers = #tpu.dot_dimension_numbers<[1], [0], [0], [1], [0, 0, 1, 1], [], []>} : vector<8x8xf32>, vector<8x32xf32>, vector<8x32xf32> -> vector<8x32xf32>
    %172 = arith.truncf %171 : vector<8x32xf32> to vector<8x32xbf16>
    %173 = vector.extract_strided_slice %21 {offsets = [0, 0], sizes = [32, 128], strides = [1, 1]} : vector<128x128xbf16> to vector<32x128xbf16>
    %cst_62 = arith.constant dense<0.000000e+00> : vector<8x128xf32>
    %174 = tpu.matmul %172, %173, %cst_62 {dimension_numbers = #tpu.dot_dimension_numbers<[1], [0], [0], [1], [0, 0, 1, 1], [], []>} : vector<8x32xbf16>, vector<32x128xbf16>, vector<8x128xf32> -> vector<8x128xf32>
    %175 = arith.addf %152, %174 : vector<8x128xf32>
    %176 = vector.extract_strided_slice %17 {offsets = [8, 32], sizes = [8, 32], strides = [1, 1]} : vector<16x128xf32> to vector<8x32xf32>
    %177 = vector.extract_strided_slice %18 {offsets = [8, 32], sizes = [8, 32], strides = [1, 1]} : vector<16x128xf32> to vector<8x32xf32>
    %178 = vector.extract_strided_slice %19 {offsets = [8, 32], sizes = [8, 32], strides = [1, 1]} : vector<16x128xf32> to vector<8x32xf32>
    %cst_63 = arith.constant dense<0.000000e+00> : vector<8x8xf32>
    %179 = tpu.matmul %176, %177, %cst_63 {dimension_numbers = #tpu.dot_dimension_numbers<[1], [1], [0], [0], [0, 0, 1, 0], [], []>} : vector<8x32xf32>, vector<8x32xf32>, vector<8x8xf32> -> vector<8x8xf32>
    %cst_64 = arith.constant 0.176776692 : f32
    %180 = vector.broadcast %cst_64 : f32 to vector<8x8xf32>
    %181 = arith.mulf %179, %180 : vector<8x8xf32>
    %182 = vector.broadcast %151 : vector<1x8xf32> to vector<8x8xf32>
    %183 = arith.addf %181, %182 : vector<8x8xf32>
    %cst_65 = arith.constant dense<0xFF800000> : vector<8xf32>
    %184 = vector.multi_reduction <maximumf>, %183, %cst_65 [1] : vector<8x8xf32> to vector<8xf32>
    %185 = vector.shape_cast %184 : vector<8xf32> to vector<8x1xf32>
    %186 = vector.broadcast %185 : vector<8x1xf32> to vector<8x8xf32>
    %187 = arith.subf %183, %186 : vector<8x8xf32>
    %188 = math.exp %187 : vector<8x8xf32>
    %cst_66 = arith.constant dense<0.000000e+00> : vector<8xf32>
    %189 = vector.multi_reduction <add>, %188, %cst_66 [1] : vector<8x8xf32> to vector<8xf32>
    %190 = vector.shape_cast %189 : vector<8xf32> to vector<8x1xf32>
    %191 = tpu.reciprocal %190 {approx = true} : vector<8x1xf32> -> vector<8x1xf32>
    %192 = vector.broadcast %191 : vector<8x1xf32> to vector<8x8xf32>
    %193 = arith.mulf %188, %192 : vector<8x8xf32>
    %cst_67 = arith.constant dense<0.000000e+00> : vector<8x32xf32>
    %194 = tpu.matmul %193, %178, %cst_67 {dimension_numbers = #tpu.dot_dimension_numbers<[1], [0], [0], [1], [0, 0, 1, 1], [], []>} : vector<8x8xf32>, vector<8x32xf32>, vector<8x32xf32> -> vector<8x32xf32>
    %195 = arith.truncf %194 : vector<8x32xf32> to vector<8x32xbf16>
    %196 = vector.extract_strided_slice %21 {offsets = [32, 0], sizes = [32, 128], strides = [1, 1]} : vector<128x128xbf16> to vector<32x128xbf16>
    %cst_68 = arith.constant dense<0.000000e+00> : vector<8x128xf32>
    %197 = tpu.matmul %195, %196, %cst_68 {dimension_numbers = #tpu.dot_dimension_numbers<[1], [0], [0], [1], [0, 0, 1, 1], [], []>} : vector<8x32xbf16>, vector<32x128xbf16>, vector<8x128xf32> -> vector<8x128xf32>
    %198 = arith.addf %175, %197 : vector<8x128xf32>
    %199 = vector.extract_strided_slice %17 {offsets = [8, 64], sizes = [8, 32], strides = [1, 1]} : vector<16x128xf32> to vector<8x32xf32>
    %200 = vector.extract_strided_slice %18 {offsets = [8, 64], sizes = [8, 32], strides = [1, 1]} : vector<16x128xf32> to vector<8x32xf32>
    %201 = vector.extract_strided_slice %19 {offsets = [8, 64], sizes = [8, 32], strides = [1, 1]} : vector<16x128xf32> to vector<8x32xf32>
    %cst_69 = arith.constant dense<0.000000e+00> : vector<8x8xf32>
    %202 = tpu.matmul %199, %200, %cst_69 {dimension_numbers = #tpu.dot_dimension_numbers<[1], [1], [0], [0], [0, 0, 1, 0], [], []>} : vector<8x32xf32>, vector<8x32xf32>, vector<8x8xf32> -> vector<8x8xf32>
    %cst_70 = arith.constant 0.176776692 : f32
    %203 = vector.broadcast %cst_70 : f32 to vector<8x8xf32>
    %204 = arith.mulf %202, %203 : vector<8x8xf32>
    %205 = vector.broadcast %151 : vector<1x8xf32> to vector<8x8xf32>
    %206 = arith.addf %204, %205 : vector<8x8xf32>
    %cst_71 = arith.constant dense<0xFF800000> : vector<8xf32>
    %207 = vector.multi_reduction <maximumf>, %206, %cst_71 [1] : vector<8x8xf32> to vector<8xf32>
    %208 = vector.shape_cast %207 : vector<8xf32> to vector<8x1xf32>
    %209 = vector.broadcast %208 : vector<8x1xf32> to vector<8x8xf32>
    %210 = arith.subf %206, %209 : vector<8x8xf32>
    %211 = math.exp %210 : vector<8x8xf32>
    %cst_72 = arith.constant dense<0.000000e+00> : vector<8xf32>
    %212 = vector.multi_reduction <add>, %211, %cst_72 [1] : vector<8x8xf32> to vector<8xf32>
    %213 = vector.shape_cast %212 : vector<8xf32> to vector<8x1xf32>
    %214 = tpu.reciprocal %213 {approx = true} : vector<8x1xf32> -> vector<8x1xf32>
    %215 = vector.broadcast %214 : vector<8x1xf32> to vector<8x8xf32>
    %216 = arith.mulf %211, %215 : vector<8x8xf32>
    %cst_73 = arith.constant dense<0.000000e+00> : vector<8x32xf32>
    %217 = tpu.matmul %216, %201, %cst_73 {dimension_numbers = #tpu.dot_dimension_numbers<[1], [0], [0], [1], [0, 0, 1, 1], [], []>} : vector<8x8xf32>, vector<8x32xf32>, vector<8x32xf32> -> vector<8x32xf32>
    %218 = arith.truncf %217 : vector<8x32xf32> to vector<8x32xbf16>
    %219 = vector.extract_strided_slice %21 {offsets = [64, 0], sizes = [32, 128], strides = [1, 1]} : vector<128x128xbf16> to vector<32x128xbf16>
    %cst_74 = arith.constant dense<0.000000e+00> : vector<8x128xf32>
    %220 = tpu.matmul %218, %219, %cst_74 {dimension_numbers = #tpu.dot_dimension_numbers<[1], [0], [0], [1], [0, 0, 1, 1], [], []>} : vector<8x32xbf16>, vector<32x128xbf16>, vector<8x128xf32> -> vector<8x128xf32>
    %221 = arith.addf %198, %220 : vector<8x128xf32>
    %222 = vector.extract_strided_slice %17 {offsets = [8, 96], sizes = [8, 32], strides = [1, 1]} : vector<16x128xf32> to vector<8x32xf32>
    %223 = vector.extract_strided_slice %18 {offsets = [8, 96], sizes = [8, 32], strides = [1, 1]} : vector<16x128xf32> to vector<8x32xf32>
    %224 = vector.extract_strided_slice %19 {offsets = [8, 96], sizes = [8, 32], strides = [1, 1]} : vector<16x128xf32> to vector<8x32xf32>
    %cst_75 = arith.constant dense<0.000000e+00> : vector<8x8xf32>
    %225 = tpu.matmul %222, %223, %cst_75 {dimension_numbers = #tpu.dot_dimension_numbers<[1], [1], [0], [0], [0, 0, 1, 0], [], []>} : vector<8x32xf32>, vector<8x32xf32>, vector<8x8xf32> -> vector<8x8xf32>
    %cst_76 = arith.constant 0.176776692 : f32
    %226 = vector.broadcast %cst_76 : f32 to vector<8x8xf32>
    %227 = arith.mulf %225, %226 : vector<8x8xf32>
    %228 = vector.broadcast %151 : vector<1x8xf32> to vector<8x8xf32>
    %229 = arith.addf %227, %228 : vector<8x8xf32>
    %cst_77 = arith.constant dense<0xFF800000> : vector<8xf32>
    %230 = vector.multi_reduction <maximumf>, %229, %cst_77 [1] : vector<8x8xf32> to vector<8xf32>
    %231 = vector.shape_cast %230 : vector<8xf32> to vector<8x1xf32>
    %232 = vector.broadcast %231 : vector<8x1xf32> to vector<8x8xf32>
    %233 = arith.subf %229, %232 : vector<8x8xf32>
    %234 = math.exp %233 : vector<8x8xf32>
    %cst_78 = arith.constant dense<0.000000e+00> : vector<8xf32>
    %235 = vector.multi_reduction <add>, %234, %cst_78 [1] : vector<8x8xf32> to vector<8xf32>
    %236 = vector.shape_cast %235 : vector<8xf32> to vector<8x1xf32>
    %237 = tpu.reciprocal %236 {approx = true} : vector<8x1xf32> -> vector<8x1xf32>
    %238 = vector.broadcast %237 : vector<8x1xf32> to vector<8x8xf32>
    %239 = arith.mulf %234, %238 : vector<8x8xf32>
    %cst_79 = arith.constant dense<0.000000e+00> : vector<8x32xf32>
    %240 = tpu.matmul %239, %224, %cst_79 {dimension_numbers = #tpu.dot_dimension_numbers<[1], [0], [0], [1], [0, 0, 1, 1], [], []>} : vector<8x8xf32>, vector<8x32xf32>, vector<8x32xf32> -> vector<8x32xf32>
    %241 = arith.truncf %240 : vector<8x32xf32> to vector<8x32xbf16>
    %242 = vector.extract_strided_slice %21 {offsets = [96, 0], sizes = [32, 128], strides = [1, 1]} : vector<128x128xbf16> to vector<32x128xbf16>
    %cst_80 = arith.constant dense<0.000000e+00> : vector<8x128xf32>
    %243 = tpu.matmul %241, %242, %cst_80 {dimension_numbers = #tpu.dot_dimension_numbers<[1], [0], [0], [1], [0, 0, 1, 1], [], []>} : vector<8x32xbf16>, vector<32x128xbf16>, vector<8x128xf32> -> vector<8x128xf32>
    %244 = arith.addf %221, %243 : vector<8x128xf32>
    %245 = vector.broadcast %23 : vector<1x128xf32> to vector<8x128xf32>
    %246 = arith.addf %244, %245 : vector<8x128xf32>
    %247 = vector.extract_strided_slice %8 {offsets = [8, 0], sizes = [8, 128], strides = [1, 1]} : vector<16x128xf32> to vector<8x128xf32>
    %248 = arith.addf %246, %247 : vector<8x128xf32>
    %c0_81 = arith.constant 0 : index
    %c0_82 = arith.constant 0 : index
    %c0_83 = arith.constant 0 : index
    %249 = vector.load %arg12[%c0_81, %c0_82, %c0_83] : memref<1x1x128xf32, #tpu.memory_space<vmem>>, vector<1x1x128xf32>
    %250 = vector.shape_cast %249 : vector<1x1x128xf32> to vector<1x128xf32>
    %c0_84 = arith.constant 0 : index
    %c0_85 = arith.constant 0 : index
    %c0_86 = arith.constant 0 : index
    %251 = vector.load %arg13[%c0_84, %c0_85, %c0_86] : memref<1x1x128xf32, #tpu.memory_space<vmem>>, vector<1x1x128xf32>
    %252 = vector.shape_cast %251 : vector<1x1x128xf32> to vector<1x128xf32>
    %cst_87 = arith.constant dense<0.000000e+00> : vector<8xf32>
    %253 = vector.multi_reduction <add>, %248, %cst_87 [1] : vector<8x128xf32> to vector<8xf32>
    %254 = vector.shape_cast %253 : vector<8xf32> to vector<8x1xf32>
    %cst_88 = arith.constant 1.280000e+02 : f32
    %255 = vector.broadcast %cst_88 : f32 to vector<8x1xf32>
    %256 = arith.divf %254, %255 : vector<8x1xf32>
    %257 = vector.broadcast %256 : vector<8x1xf32> to vector<8x128xf32>
    %258 = arith.subf %248, %257 : vector<8x128xf32>
    %259 = vector.broadcast %256 : vector<8x1xf32> to vector<8x128xf32>
    %260 = arith.subf %248, %259 : vector<8x128xf32>
    %261 = arith.mulf %258, %260 : vector<8x128xf32>
    %cst_89 = arith.constant dense<0.000000e+00> : vector<8xf32>
    %262 = vector.multi_reduction <add>, %261, %cst_89 [1] : vector<8x128xf32> to vector<8xf32>
    %263 = vector.shape_cast %262 : vector<8xf32> to vector<8x1xf32>
    %cst_90 = arith.constant 1.280000e+02 : f32
    %264 = vector.broadcast %cst_90 : f32 to vector<8x1xf32>
    %265 = arith.divf %263, %264 : vector<8x1xf32>
    %266 = vector.broadcast %256 : vector<8x1xf32> to vector<8x128xf32>
    %267 = arith.subf %248, %266 : vector<8x128xf32>
    %cst_91 = arith.constant 9.99999996E-13 : f32
    %268 = vector.broadcast %cst_91 : f32 to vector<8x1xf32>
    %269 = arith.addf %265, %268 : vector<8x1xf32>
    %270 = math.rsqrt %269 : vector<8x1xf32>
    %271 = vector.broadcast %270 : vector<8x1xf32> to vector<8x128xf32>
    %272 = arith.mulf %267, %271 : vector<8x128xf32>
    %273 = vector.broadcast %250 : vector<1x128xf32> to vector<8x128xf32>
    %274 = arith.mulf %272, %273 : vector<8x128xf32>
    %275 = vector.broadcast %252 : vector<1x128xf32> to vector<8x128xf32>
    %276 = arith.addf %274, %275 : vector<8x128xf32>
    %c8 = arith.constant 8 : index
    %c0_92 = arith.constant 0 : index
    %277 = vector.load %arg25[%c8, %c0_92] : memref<16x128xf32, #tpu.memory_space<vmem>>, vector<8x128xf32>
    tpu.vector_store %arg25[%c8, %c0_92], %276 {strides = array<i32>} : memref<16x128xf32, #tpu.memory_space<vmem>>, vector<8x128xf32>,
    %c0_93 = arith.constant 0 : index
    %c0_94 = arith.constant 0 : index
    %278 = vector.load %arg25[%c0_93, %c0_94] : memref<16x128xf32, #tpu.memory_space<vmem>>, vector<16x128xf32>
    %279 = arith.truncf %278 : vector<16x128xf32> to vector<16x128xbf16>
    %c0_95 = arith.constant 0 : index
    %c0_96 = arith.constant 0 : index
    %c0_97 = arith.constant 0 : index
    %280 = vector.load %arg14[%c0_95, %c0_96, %c0_97] : memref<1x128x512xbf16, #tpu.memory_space<vmem>>, vector<1x128x512xbf16>
    %281 = vector.shape_cast %280 : vector<1x128x512xbf16> to vector<128x512xbf16>
    %cst_98 = arith.constant dense<0.000000e+00> : vector<16x512xf32>
    %282 = tpu.matmul %279, %281, %cst_98 {dimension_numbers = #tpu.dot_dimension_numbers<[1], [0], [0], [1], [0, 0, 1, 1], [], []>} : vector<16x128xbf16>, vector<128x512xbf16>, vector<16x512xf32> -> vector<16x512xf32>
    %c0_99 = arith.constant 0 : index
    %c0_100 = arith.constant 0 : index
    %c0_101 = arith.constant 0 : index
    %283 = vector.load %arg15[%c0_99, %c0_100, %c0_101] : memref<1x1x512xf32, #tpu.memory_space<vmem>>, vector<1x1x512xf32>
    %284 = vector.shape_cast %283 : vector<1x1x512xf32> to vector<1x512xf32>
    %285 = vector.broadcast %284 : vector<1x512xf32> to vector<16x512xf32>
    %286 = arith.addf %282, %285 : vector<16x512xf32>
    %cst_102 = arith.constant 5.000000e-01 : f32
    %287 = vector.broadcast %cst_102 : f32 to vector<16x512xf32>
    %288 = arith.mulf %287, %286 : vector<16x512xf32>
    %cst_103 = arith.constant 4.471500e-02 : f32
    %289 = vector.broadcast %cst_103 : f32 to vector<16x512xf32>
    %290 = arith.mulf %289, %286 : vector<16x512xf32>
    %291 = arith.mulf %290, %286 : vector<16x512xf32>
    %292 = arith.mulf %291, %286 : vector<16x512xf32>
    %293 = arith.addf %286, %292 : vector<16x512xf32>
    %cst_104 = arith.constant 0.797884583 : f32
    %294 = vector.broadcast %cst_104 : f32 to vector<16x512xf32>
    %295 = arith.mulf %294, %293 : vector<16x512xf32>
    %296 = math.tanh %295 : vector<16x512xf32>
    %cst_105 = arith.constant 1.000000e+00 : f32
    %297 = vector.broadcast %cst_105 : f32 to vector<16x512xf32>
    %298 = arith.addf %297, %296 : vector<16x512xf32>
    %299 = arith.mulf %288, %298 : vector<16x512xf32>
    %300 = arith.truncf %299 : vector<16x512xf32> to vector<16x512xbf16>
    %c0_106 = arith.constant 0 : index
    %c0_107 = arith.constant 0 : index
    %c0_108 = arith.constant 0 : index
    %301 = vector.load %arg16[%c0_106, %c0_107, %c0_108] : memref<1x512x128xbf16, #tpu.memory_space<vmem>>, vector<1x512x128xbf16>
    %302 = vector.shape_cast %301 : vector<1x512x128xbf16> to vector<512x128xbf16>
    %cst_109 = arith.constant dense<0.000000e+00> : vector<16x128xf32>
    %303 = tpu.matmul %300, %302, %cst_109 {dimension_numbers = #tpu.dot_dimension_numbers<[1], [0], [0], [1], [0, 0, 1, 1], [], []>} : vector<16x512xbf16>, vector<512x128xbf16>, vector<16x128xf32> -> vector<16x128xf32>
    %c0_110 = arith.constant 0 : index
    %c0_111 = arith.constant 0 : index
    %c0_112 = arith.constant 0 : index
    %304 = vector.load %arg17[%c0_110, %c0_111, %c0_112] : memref<1x1x128xf32, #tpu.memory_space<vmem>>, vector<1x1x128xf32>
    %305 = vector.shape_cast %304 : vector<1x1x128xf32> to vector<1x128xf32>
    %306 = vector.broadcast %305 : vector<1x128xf32> to vector<16x128xf32>
    %307 = arith.addf %303, %306 : vector<16x128xf32>
    %308 = arith.addf %307, %278 : vector<16x128xf32>
    %c0_113 = arith.constant 0 : index
    %c0_114 = arith.constant 0 : index
    %c0_115 = arith.constant 0 : index
    %309 = vector.load %arg18[%c0_113, %c0_114, %c0_115] : memref<1x1x128xf32, #tpu.memory_space<vmem>>, vector<1x1x128xf32>
    %310 = vector.shape_cast %309 : vector<1x1x128xf32> to vector<1x128xf32>
    %c0_116 = arith.constant 0 : index
    %c0_117 = arith.constant 0 : index
    %c0_118 = arith.constant 0 : index
    %311 = vector.load %arg19[%c0_116, %c0_117, %c0_118] : memref<1x1x128xf32, #tpu.memory_space<vmem>>, vector<1x1x128xf32>
    %312 = vector.shape_cast %311 : vector<1x1x128xf32> to vector<1x128xf32>
    %cst_119 = arith.constant dense<0.000000e+00> : vector<16xf32>
    %313 = vector.multi_reduction <add>, %308, %cst_119 [1] : vector<16x128xf32> to vector<16xf32>
    %314 = vector.shape_cast %313 : vector<16xf32> to vector<16x1xf32>
    %cst_120 = arith.constant 1.280000e+02 : f32
    %315 = vector.broadcast %cst_120 : f32 to vector<16x1xf32>
    %316 = arith.divf %314, %315 : vector<16x1xf32>
    %317 = vector.broadcast %316 : vector<16x1xf32> to vector<16x128xf32>
    %318 = arith.subf %308, %317 : vector<16x128xf32>
    %319 = vector.broadcast %316 : vector<16x1xf32> to vector<16x128xf32>
    %320 = arith.subf %308, %319 : vector<16x128xf32>
    %321 = arith.mulf %318, %320 : vector<16x128xf32>
    %cst_121 = arith.constant dense<0.000000e+00> : vector<16xf32>
    %322 = vector.multi_reduction <add>, %321, %cst_121 [1] : vector<16x128xf32> to vector<16xf32>
    %323 = vector.shape_cast %322 : vector<16xf32> to vector<16x1xf32>
    %cst_122 = arith.constant 1.280000e+02 : f32
    %324 = vector.broadcast %cst_122 : f32 to vector<16x1xf32>
    %325 = arith.divf %323, %324 : vector<16x1xf32>
    %326 = vector.broadcast %316 : vector<16x1xf32> to vector<16x128xf32>
    %327 = arith.subf %308, %326 : vector<16x128xf32>
    %cst_123 = arith.constant 9.99999996E-13 : f32
    %328 = vector.broadcast %cst_123 : f32 to vector<16x1xf32>
    %329 = arith.addf %325, %328 : vector<16x1xf32>
    %330 = math.rsqrt %329 : vector<16x1xf32>
    %331 = vector.broadcast %330 : vector<16x1xf32> to vector<16x128xf32>
    %332 = arith.mulf %327, %331 : vector<16x128xf32>
    %333 = vector.broadcast %310 : vector<1x128xf32> to vector<16x128xf32>
    %334 = arith.mulf %332, %333 : vector<16x128xf32>
    %335 = vector.broadcast %312 : vector<1x128xf32> to vector<16x128xf32>
    %336 = arith.addf %334, %335 : vector<16x128xf32>
    %c0_124 = arith.constant 0 : index
    %c0_125 = arith.constant 0 : index
    %337 = vector.load %arg25[%c0_124, %c0_125] : memref<16x128xf32, #tpu.memory_space<vmem>>, vector<16x128xf32>
    tpu.vector_store %arg25[%c0_124, %c0_125], %336 {strides = array<i32>} : memref<16x128xf32, #tpu.memory_space<vmem>>, vector<16x128xf32>,
    %c1_i32 = arith.constant 1 : i32
    %338 = arith.cmpi eq, %arg0, %c1_i32 : i32
    %339 = arith.extui %338 : i1 to i32
    %c0_i32_126 = arith.constant 0 : i32
    %340 = arith.cmpi ne, %339, %c0_i32_126 : i32
    scf.if %340 {
      %c0_127 = arith.constant 0 : index
      %c0_128 = arith.constant 0 : index
      %341 = vector.load %arg25[%c0_127, %c0_128] : memref<16x128xf32, #tpu.memory_space<vmem>>, vector<16x128xf32>
      %342 = tpu.iota {dimensions = array<i32: 0>} : vector<2x16xi32>
      %343 = tpu.iota {dimensions = array<i32: 1>} : vector<2x16xi32>
      %c8_i32 = arith.constant 8 : i32
      %344 = vector.broadcast %c8_i32 : i32 to vector<2x16xi32>
      %345 = arith.muli %342, %344 : vector<2x16xi32>
      %346 = arith.cmpi eq, %343, %345 : vector<2x16xi32>
      %347 = arith.extui %346 : vector<2x16xi1> to vector<2x16xi32>
      %348 = arith.sitofp %347 : vector<2x16xi32> to vector<2x16xf32>
      %cst_129 = arith.constant dense<0.000000e+00> : vector<2x128xf32>
      %349 = tpu.matmul %348, %341, %cst_129 {dimension_numbers = #tpu.dot_dimension_numbers<[1], [0], [0], [1], [0, 0, 1, 1], [], []>} : vector<2x16xf32>, vector<16x128xf32>, vector<2x128xf32> -> vector<2x128xf32>
      %350 = arith.truncf %349 : vector<2x128xf32> to vector<2x128xbf16>
      %c0_130 = arith.constant 0 : index
      %c0_131 = arith.constant 0 : index
      %351 = vector.load %arg20[%c0_130, %c0_131] : memref<128x128xbf16, #tpu.memory_space<vmem>>, vector<128x128xbf16>
      %cst_132 = arith.constant dense<0.000000e+00> : vector<2x128xf32>
      %352 = tpu.matmul %350, %351, %cst_132 {dimension_numbers = #tpu.dot_dimension_numbers<[1], [0], [0], [1], [0, 0, 1, 1], [], []>} : vector<2x128xbf16>, vector<128x128xbf16>, vector<2x128xf32> -> vector<2x128xf32>
      %c0_133 = arith.constant 0 : index
      %c0_134 = arith.constant 0 : index
      %353 = vector.load %arg21[%c0_133, %c0_134] : memref<1x128xf32, #tpu.memory_space<vmem>>, vector<1x128xf32>
      %354 = vector.broadcast %353 : vector<1x128xf32> to vector<2x128xf32>
      %355 = arith.addf %352, %354 : vector<2x128xf32>
      %356 = math.tanh %355 : vector<2x128xf32>
      %c0_135 = arith.constant 0 : index
      %c0_136 = arith.constant 0 : index
      %357 = vector.load %arg22[%c0_135, %c0_136] : memref<128x6xf32, #tpu.memory_space<vmem>>, vector<128x6xf32>
      %cst_137 = arith.constant dense<0.000000e+00> : vector<2x6xf32>
      %358 = tpu.matmul %356, %357, %cst_137 {dimension_numbers = #tpu.dot_dimension_numbers<[1], [0], [0], [1], [0, 0, 1, 1], [], []>} : vector<2x128xf32>, vector<128x6xf32>, vector<2x6xf32> -> vector<2x6xf32>
      %c0_138 = arith.constant 0 : index
      %c0_139 = arith.constant 0 : index
      %359 = vector.load %arg23[%c0_138, %c0_139] : memref<1x6xf32, #tpu.memory_space<vmem>>, vector<1x6xf32>
      %360 = vector.broadcast %359 : vector<1x6xf32> to vector<2x6xf32>
      %361 = arith.addf %358, %360 : vector<2x6xf32>
      %c0_140 = arith.constant 0 : index
      %c0_141 = arith.constant 0 : index
      %362 = vector.load %arg24[%c0_140, %c0_141] : memref<2x6xf32, #tpu.memory_space<vmem>>, vector<2x6xf32>
      tpu.vector_store %arg24[%c0_140, %c0_141], %361 {strides = array<i32>} : memref<2x6xf32, #tpu.memory_space<vmem>>, vector<2x6xf32>,
    } else {
    }
    return
  }
  func.func @transform_0(%arg0: i32) -> (i32, i32) {
    %c0_i32 = arith.constant 0 : i32
    %c0_i32_0 = arith.constant 0 : i32
    %c0_i32_1 = arith.constant 0 : i32
    return %c0_i32, %c0_i32_0 : i32, i32
  }
  func.func @transform_1(%arg0: i32) -> (i32, i32) {
    %c0_i32 = arith.constant 0 : i32
    %c0_i32_0 = arith.constant 0 : i32
    %c0_i32_1 = arith.constant 0 : i32
    return %c0_i32, %c0_i32_0 : i32, i32
  }
  func.func @transform_2(%arg0: i32) -> (i32, i32) {
    %c0_i32 = arith.constant 0 : i32
    %c0_i32_0 = arith.constant 0 : i32
    %c0_i32_1 = arith.constant 0 : i32
    return %c0_i32, %c0_i32_0 : i32, i32
  }
  func.func @transform_3(%arg0: i32) -> (i32, i32) {
    %c0_i32 = arith.constant 0 : i32
    %c0_i32_0 = arith.constant 0 : i32
    %c0_i32_1 = arith.constant 0 : i32
    return %c0_i32, %c0_i32_0 : i32, i32
  }
  func.func @transform_4(%arg0: i32) -> (i32, i32) {
    %c0_i32 = arith.constant 0 : i32
    %c0_i32_0 = arith.constant 0 : i32
    %c0_i32_1 = arith.constant 0 : i32
    return %c0_i32, %c0_i32_0 : i32, i32
  }
  func.func @transform_5(%arg0: i32) -> (i32, i32) {
    %c0_i32 = arith.constant 0 : i32
    %c0_i32_0 = arith.constant 0 : i32
    %c0_i32_1 = arith.constant 0 : i32
    return %c0_i32, %c0_i32_0 : i32, i32
  }
  func.func @transform_6(%arg0: i32) -> (i32, i32) {
    %c0_i32 = arith.constant 0 : i32
    %c0_i32_0 = arith.constant 0 : i32
    %c0_i32_1 = arith.constant 0 : i32
    return %c0_i32, %c0_i32_0 : i32, i32
  }
  func.func @transform_7(%arg0: i32) -> (i32, i32, i32) {
    %c0_i32 = arith.constant 0 : i32
    %c0_i32_0 = arith.constant 0 : i32
    %c0_i32_1 = arith.constant 0 : i32
    return %arg0, %c0_i32, %c0_i32_0 : i32, i32, i32
  }
  func.func @transform_8(%arg0: i32) -> (i32, i32, i32) {
    %c0_i32 = arith.constant 0 : i32
    %c0_i32_0 = arith.constant 0 : i32
    %c0_i32_1 = arith.constant 0 : i32
    return %arg0, %c0_i32, %c0_i32_0 : i32, i32, i32
  }
  func.func @transform_9(%arg0: i32) -> (i32, i32, i32) {
    %c0_i32 = arith.constant 0 : i32
    %c0_i32_0 = arith.constant 0 : i32
    %c0_i32_1 = arith.constant 0 : i32
    return %arg0, %c0_i32, %c0_i32_0 : i32, i32, i32
  }
  func.func @transform_10(%arg0: i32) -> (i32, i32, i32) {
    %c0_i32 = arith.constant 0 : i32
    %c0_i32_0 = arith.constant 0 : i32
    %c0_i32_1 = arith.constant 0 : i32
    return %arg0, %c0_i32, %c0_i32_0 : i32, i32, i32
  }
  func.func @transform_11(%arg0: i32) -> (i32, i32, i32) {
    %c0_i32 = arith.constant 0 : i32
    %c0_i32_0 = arith.constant 0 : i32
    %c0_i32_1 = arith.constant 0 : i32
    return %arg0, %c0_i32, %c0_i32_0 : i32, i32, i32
  }
  func.func @transform_12(%arg0: i32) -> (i32, i32, i32) {
    %c0_i32 = arith.constant 0 : i32
    %c0_i32_0 = arith.constant 0 : i32
    %c0_i32_1 = arith.constant 0 : i32
    return %arg0, %c0_i32, %c0_i32_0 : i32, i32, i32
  }
  func.func @transform_13(%arg0: i32) -> (i32, i32, i32) {
    %c0_i32 = arith.constant 0 : i32
    %c0_i32_0 = arith.constant 0 : i32
    %c0_i32_1 = arith.constant 0 : i32
    return %arg0, %c0_i32, %c0_i32_0 : i32, i32, i32
  }
  func.func @transform_14(%arg0: i32) -> (i32, i32, i32) {
    %c0_i32 = arith.constant 0 : i32
    %c0_i32_0 = arith.constant 0 : i32
    %c0_i32_1 = arith.constant 0 : i32
    return %arg0, %c0_i32, %c0_i32_0 : i32, i32, i32
  }
  func.func @transform_15(%arg0: i32) -> (i32, i32, i32) {
    %c0_i32 = arith.constant 0 : i32
    %c0_i32_0 = arith.constant 0 : i32
    %c0_i32_1 = arith.constant 0 : i32
    return %arg0, %c0_i32, %c0_i32_0 : i32, i32, i32
  }
  func.func @transform_16(%arg0: i32) -> (i32, i32, i32) {
    %c0_i32 = arith.constant 0 : i32
    %c0_i32_0 = arith.constant 0 : i32
    %c0_i32_1 = arith.constant 0 : i32
    return %arg0, %c0_i32, %c0_i32_0 : i32, i32, i32
  }
  func.func @transform_17(%arg0: i32) -> (i32, i32, i32) {
    %c0_i32 = arith.constant 0 : i32
    %c0_i32_0 = arith.constant 0 : i32
    %c0_i32_1 = arith.constant 0 : i32
    return %arg0, %c0_i32, %c0_i32_0 : i32, i32, i32
  }
  func.func @transform_18(%arg0: i32) -> (i32, i32, i32) {
    %c0_i32 = arith.constant 0 : i32
    %c0_i32_0 = arith.constant 0 : i32
    %c0_i32_1 = arith.constant 0 : i32
    return %arg0, %c0_i32, %c0_i32_0 : i32, i32, i32
  }
  func.func @transform_19(%arg0: i32) -> (i32, i32) {
    %c0_i32 = arith.constant 0 : i32
    %c0_i32_0 = arith.constant 0 : i32
    %c0_i32_1 = arith.constant 0 : i32
    return %c0_i32, %c0_i32_0 : i32, i32
  }
  func.func @transform_20(%arg0: i32) -> (i32, i32) {
    %c0_i32 = arith.constant 0 : i32
    %c0_i32_0 = arith.constant 0 : i32
    %c0_i32_1 = arith.constant 0 : i32
    return %c0_i32, %c0_i32_0 : i32, i32
  }
  func.func @transform_21(%arg0: i32) -> (i32, i32) {
    %c0_i32 = arith.constant 0 : i32
    %c0_i32_0 = arith.constant 0 : i32
    %c0_i32_1 = arith.constant 0 : i32
    return %c0_i32, %c0_i32_0 : i32, i32
  }
  func.func @transform_22(%arg0: i32) -> (i32, i32) {
    %c0_i32 = arith.constant 0 : i32
    %c0_i32_0 = arith.constant 0 : i32
    %c0_i32_1 = arith.constant 0 : i32
    return %c0_i32, %c0_i32_0 : i32, i32
  }
  func.func @transform_23(%arg0: i32) -> (i32, i32) {
    %c0_i32 = arith.constant 0 : i32
    %c0_i32_0 = arith.constant 0 : i32
    %c0_i32_1 = arith.constant 0 : i32
    return %c0_i32, %c0_i32_0 : i32, i32
  }
}

</mosaic_0001>

<llo_original>
// kernel: tpu_custom_call.1
$region0: #{tpu_custom_call.1}
  #allocation0 [shape = 'u32[]', space=smem, size = 0x4, offset = 0x4, fixed_abs, tag = 'smem constant byte address 0x4 - core index']
  #allocation1 [shape = 'u32[144,128]{1,0:T(1,128)}', space=vmem, size = 0x12000, scoped, tag = 'internal scratch']
  #allocation2 [shape = 'f32[16,128]{1,0:T(8,128)}', space=vmem, size = 0x2000, scoped, tag = 'scratch operand']
  %s0 = inlined_call_operand.vmem [shape: s32[16,1], index: 0, kind: input, shape index: {}]
  %s1 = inlined_call_operand.hbm [shape: f32[2,8], index: 1, kind: input, shape index: {}]
  %s2 = inlined_call_operand.hbm [shape: f32[100,128], index: 2, kind: input, shape index: {}]
  %s3 = inlined_call_operand.hbm [shape: f32[32,128], index: 3, kind: input, shape index: {}]
  %s4 = inlined_call_operand.hbm [shape: f32[2,128], index: 4, kind: input, shape index: {}]
  %s5 = inlined_call_operand.vmem [shape: f32[1,128], index: 5, kind: input, shape index: {}]
  %s6 = inlined_call_operand.hbm [shape: f32[1,128], index: 6, kind: input, shape index: {}]
  %s7 = inlined_call_operand.hbm [shape: bf16[2,128,384], index: 7, kind: input, shape index: {}]
  %s8 = inlined_call_operand.hbm [shape: f32[2,1,384], index: 8, kind: input, shape index: {}]
  %s9 = inlined_call_operand.vmem [shape: bf16[2,128,128], index: 9, kind: input, shape index: {}]
  %s10 = inlined_call_operand.hbm [shape: f32[2,1,128], index: 10, kind: input, shape index: {}]
  %s11 = inlined_call_operand.hbm [shape: f32[2,1,128], index: 11, kind: input, shape index: {}]
  %s12 = inlined_call_operand.hbm [shape: f32[2,1,128], index: 12, kind: input, shape index: {}]
  %s13 = inlined_call_operand.hbm [shape: bf16[2,128,512], index: 13, kind: input, shape index: {}]
  %s14 = inlined_call_operand.vmem [shape: f32[2,1,512], index: 14, kind: input, shape index: {}]
  %s15 = inlined_call_operand.hbm [shape: bf16[2,512,128], index: 15, kind: input, shape index: {}]
  %s16 = inlined_call_operand.vmem [shape: f32[2,1,128], index: 16, kind: input, shape index: {}]
  %s17 = inlined_call_operand.vmem [shape: f32[2,1,128], index: 17, kind: input, shape index: {}]
  %s18 = inlined_call_operand.vmem [shape: f32[2,1,128], index: 18, kind: input, shape index: {}]
  %s19 = inlined_call_operand.vmem [shape: bf16[128,128], index: 19, kind: input, shape index: {}]
  %s20 = inlined_call_operand.vmem [shape: f32[1,128], index: 20, kind: input, shape index: {}]
  %s21 = inlined_call_operand.vmem [shape: f32[128,6], index: 21, kind: input, shape index: {}]
  %s22 = inlined_call_operand.vmem [shape: f32[1,6], index: 22, kind: input, shape index: {}]
  %s23 = inlined_call_operand.hbm [shape: f32[2,6], index: 23, kind: output, shape index: {}]
  %s24 = sld [smem:[#allocation0]]
  $region181: #{tpu_custom_call.1} parent=0
    _
  %s26 = ssub.s32 1, %s24
  %s27 = scalar_select 0, %s26, %s24
  $region1: #{tpu_custom_call.1} parent=0
    #allocation3 [shape = 'u8[1024]{0}', space=vmem, size = 0x400, scoped, tag = 'input window, operand 1, single buffered']
    #allocation4 [shape = 's32[2]{0}', space=sflag, size = 0x8, scoped, tag = 'scoped memory for tpu_custom_call.1']
    #allocation5 [shape = 's32[2]{0}', space=sflag, size = 0x8, scoped, tag = 'scoped memory for tpu_custom_call.1']
    #allocation6 [shape = 'u8[53248]{0}', space=vmem, size = 0xd000, scoped, tag = 'input window, operand 2, single buffered']
    #allocation7 [shape = 's32[1]{0}', space=sflag, size = 0x4, scoped, tag = 'scoped memory for tpu_custom_call.1']
    #allocation8 [shape = 'u8[16384]{0}', space=vmem, size = 0x4000, scoped, tag = 'input window, operand 3, single buffered']
    #allocation9 [shape = 'u8[1024]{0}', space=vmem, size = 0x400, scoped, tag = 'input window, operand 4, single buffered']
    #allocation10 [shape = 's32[1]{0}', space=sflag, size = 0x4, scoped, tag = 'scoped memory for tpu_custom_call.1']
    #allocation11 [shape = 'u8[512]{0}', space=vmem, size = 0x400, scoped, tag = 'input window, operand 6, single buffered']
    #allocation12 [shape = 'u8[196608]{0}', space=vmem, size = 0x30000, scoped, tag = 'input window, operand 7']
    #allocation13 [shape = 's32[2]{0}', space=sflag, size = 0x8, scoped, tag = 'scoped memory for tpu_custom_call.1']
    #allocation14 [shape = 'u8[3072]{0}', space=vmem, size = 0xc00, scoped, tag = 'input window, operand 8']
    #allocation15 [shape = 'u8[1024]{0}', space=vmem, size = 0x400, scoped, tag = 'input window, operand 10']
    #allocation16 [shape = 's32[2]{0}', space=sflag, size = 0x8, scoped, tag = 'scoped memory for tpu_custom_call.1']
    #allocation17 [shape = 'u8[1024]{0}', space=vmem, size = 0x400, scoped, tag = 'input window, operand 11']
    #allocation18 [shape = 'u8[1024]{0}', space=vmem, size = 0x400, scoped, tag = 'input window, operand 12']
    #allocation19 [shape = 's32[2]{0}', space=sflag, size = 0x8, scoped, tag = 'scoped memory for tpu_custom_call.1']
    #allocation20 [shape = 'u8[262144]{0}', space=vmem, size = 0x40000, scoped, tag = 'input window, operand 13']
    #allocation21 [shape = 'u8[262144]{0}', space=vmem, size = 0x40000, scoped, tag = 'input window, operand 15']
    #allocation22 [shape = 's32[2]{0}', space=sflag, size = 0x8, scoped, tag = 'scoped memory for tpu_custom_call.1']
    #allocation23 [shape = 'u8[1024]{0}', space=vmem, size = 0x400, scoped, tag = 'output window, operand 0, single buffered']
    %28 = vsyncpa [#allocation4], 0
    %29 = vsyncpa [#allocation7], 0
    %30 = vsyncpa [#allocation10], 0
    %31 = vsyncpa [#allocation13], 0
    %s32 = scalar_lea.sflag [#allocation13], 1
    %33 = vsyncpa %s32, 0
    %34 = vsyncpa [#allocation16], 0
    %s35 = scalar_lea.sflag [#allocation16], 1
    %36 = vsyncpa %s35, 0
    %37 = vsyncpa [#allocation19], 0
    %s38 = scalar_lea.sflag [#allocation19], 1
    %39 = vsyncpa %s38, 0
    %40 = vsyncpa [#allocation22], 0
    %s41 = scalar_lea.sflag [#allocation22], 1
    %42 = vsyncpa %s41, 0
    %43 = vsyncpa [#allocation5], 0
    loop: start=0, step=1, limit=4
    $region2: #{tpu_custom_call.1} parent=1 // loop_pre_header
      _
    $region3: #{tpu_custom_call.1} parent=1 // loop_header
      %s45 = sphi 0, %s49
      %p46 = scmp.ge.s32.totalorder %s45, 4
      %s53 = sphi 0, %s53
      %s55 = sphi 0, %s53
      %s56 = sphi 0, %s55
      %s70 = sphi 0, %s56
      %s74 = sphi 0, %s74
      %s76 = sphi 0, %s74
      %s77 = sphi 0, %s76
      %s91 = sphi 0, %s77
      %s95 = sphi 0, %s95
      %s97 = sphi 0, %s95
      %s98 = sphi 0, %s97
      %s112 = sphi 0, %s98
      %s116 = sphi 0, %s116
      %s118 = sphi 0, %s116
      %s119 = sphi 0, %s118
      %s133 = sphi 0, %s119
      %s137 = sphi 0, %s137
      %s139 = sphi 0, %s137
      %s140 = sphi 0, %s139
      %s154 = sphi 0, %s140
      %s158 = sphi 0, %s158
      %s160 = sphi 0, %s158
      %s161 = sphi 0, %s160
      %s175 = sphi 0, %s161
      %s179 = sphi 0, %s179
      %s181 = sphi 0, %s179
      %s182 = sphi 0, %s181
      %s196 = sphi 0, %s182
      %s202 = sphi 0, %s204
      %s205 = sphi 0, %s202
      %s206 = sphi 0, %s205
      %s222 = sphi 0, %s206
      %s228 = sphi 0, %s230
      %s231 = sphi 0, %s228
      %s232 = sphi 0, %s231
      %s248 = sphi 0, %s232
      %s254 = sphi 0, %s256
      %s257 = sphi 0, %s254
      %s258 = sphi 0, %s257
      %s274 = sphi 0, %s258
      %s280 = sphi 0, %s282
      %s283 = sphi 0, %s280
      %s284 = sphi 0, %s283
      %s300 = sphi 0, %s284
      %s306 = sphi 0, %s308
      %s309 = sphi 0, %s306
      %s310 = sphi 0, %s309
      %s326 = sphi 0, %s310
      %s332 = sphi 0, %s334
      %s335 = sphi 0, %s332
      %s336 = sphi 0, %s335
      %s352 = sphi 0, %s336
      %s358 = sphi 0, %s360
      %s361 = sphi 0, %s358
      %s362 = sphi 0, %s361
      %s378 = sphi 0, %s362
      %s384 = sphi 0, %s386
      %s387 = sphi 0, %s384
      %s388 = sphi 0, %s387
      %s404 = sphi 0, %s388
      %s410 = sphi 0, %s412
      %s413 = sphi 0, %s410
      %s414 = sphi 0, %s413
      %s430 = sphi 0, %s414
      %s436 = sphi 0, %s438
      %s439 = sphi 0, %s436
      %s440 = sphi 0, %s439
      %s456 = sphi 0, %s440
      %s462 = sphi 0, %s464
      %s465 = sphi 0, %s462
      %s466 = sphi 0, %s465
      %s482 = sphi 0, %s466
      %s488 = sphi 0, %s490
      %s491 = sphi 0, %s488
      %s492 = sphi 0, %s491
      %s508 = sphi 0, %s492
      %s512 = sphi 0, %s512
      %s514 = sphi 0, %s512
      %s515 = sphi 0, %s514
      %s529 = sphi 0, %s515
      %s533 = sphi 0, %s533
      %s535 = sphi 0, %s533
      %s536 = sphi 0, %s535
      %s550 = sphi 0, %s536
      %s554 = sphi 0, %s554
      %s556 = sphi 0, %s554
      %s557 = sphi 0, %s556
      %s571 = sphi 0, %s557
      %s575 = sphi 0, %s575
      %s577 = sphi 0, %s575
      %s578 = sphi 0, %s577
      %s592 = sphi 0, %s578
      %s596 = sphi 0, %s596
      %s598 = sphi 0, %s596
      %s599 = sphi 0, %s598
      %s613 = sphi 0, %s599
    $region4: #{tpu_custom_call.1} parent=1 // loop_header_branch
      %48 = sbr.rel (%p46) target = $region8
    $region5: #{tpu_custom_call.1} parent=1 // loop_body
      %s50 = ssub.s32 %s45, 1
      %s51 = ssub.s32 %s45, 2
      %s52 = sadd.s32 %s45, 1
      %s54 = sadd.s32 %s53, 1
      %p57 = scmp.eq.s32.totalorder %s45, 1
      %p58 = scmp.ne.s32.totalorder %s53, %s55
      %p59 = scmp.eq.s32.totalorder %s45, 0
      %p60 = por %p58, %p59
      %p61 = scmp.ne.s32.totalorder %s53, %s55
      %p62 = scmp.eq.s32.totalorder %s50, 1
      %p63 = por %p61, %p62
      %p64 = scmp.ne.s32.totalorder %s55, %s56
      %p65 = scmp.eq.s32.totalorder %s50, 0
      %p66 = por %p64, %p65
      %p67 = scmp.ne.s32.totalorder %s55, %s56
      %p68 = scmp.eq.s32.totalorder %s51, 1
      %p69 = por %p67, %p68
      %p71 = scmp.ne.s32.totalorder %s56, %s70
      %p72 = scmp.eq.s32.totalorder %s51, 0
      %p73 = por %p71, %p72
      %s75 = sadd.s32 %s74, 1
      %p78 = scmp.eq.s32.totalorder %s45, 1
      %p79 = scmp.ne.s32.totalorder %s74, %s76
      %p80 = scmp.eq.s32.totalorder %s45, 0
      %p81 = por %p79, %p80
      %p82 = scmp.ne.s32.totalorder %s74, %s76
      %p83 = scmp.eq.s32.totalorder %s50, 1
      %p84 = por %p82, %p83
      %p85 = scmp.ne.s32.totalorder %s76, %s77
      %p86 = scmp.eq.s32.totalorder %s50, 0
      %p87 = por %p85, %p86
      %p88 = scmp.ne.s32.totalorder %s76, %s77
      %p89 = scmp.eq.s32.totalorder %s51, 1
      %p90 = por %p88, %p89
      %p92 = scmp.ne.s32.totalorder %s77, %s91
      %p93 = scmp.eq.s32.totalorder %s51, 0
      %p94 = por %p92, %p93
      %s96 = sadd.s32 %s95, 1
      %p99 = scmp.eq.s32.totalorder %s45, 1
      %p100 = scmp.ne.s32.totalorder %s95, %s97
      %p101 = scmp.eq.s32.totalorder %s45, 0
      %p102 = por %p100, %p101
      %p103 = scmp.ne.s32.totalorder %s95, %s97
      %p104 = scmp.eq.s32.totalorder %s50, 1
      %p105 = por %p103, %p104
      %p106 = scmp.ne.s32.totalorder %s97, %s98
      %p107 = scmp.eq.s32.totalorder %s50, 0
      %p108 = por %p106, %p107
      %p109 = scmp.ne.s32.totalorder %s97, %s98
      %p110 = scmp.eq.s32.totalorder %s51, 1
      %p111 = por %p109, %p110
      %p113 = scmp.ne.s32.totalorder %s98, %s112
      %p114 = scmp.eq.s32.totalorder %s51, 0
      %p115 = por %p113, %p114
      %s117 = sadd.s32 %s116, 1
      %p120 = scmp.eq.s32.totalorder %s45, 1
      %p121 = scmp.ne.s32.totalorder %s116, %s118
      %p122 = scmp.eq.s32.totalorder %s45, 0
      %p123 = por %p121, %p122
      %p124 = scmp.ne.s32.totalorder %s116, %s118
      %p125 = scmp.eq.s32.totalorder %s50, 1
      %p126 = por %p124, %p125
      %p127 = scmp.ne.s32.totalorder %s118, %s119
      %p128 = scmp.eq.s32.totalorder %s50, 0
      %p129 = por %p127, %p128
      %p130 = scmp.ne.s32.totalorder %s118, %s119
      %p131 = scmp.eq.s32.totalorder %s51, 1
      %p132 = por %p130, %p131
      %p134 = scmp.ne.s32.totalorder %s119, %s133
      %p135 = scmp.eq.s32.totalorder %s51, 0
      %p136 = por %p134, %p135
      %s138 = sadd.s32 %s137, 1
      %p141 = scmp.eq.s32.totalorder %s45, 1
      %p142 = scmp.ne.s32.totalorder %s137, %s139
      %p143 = scmp.eq.s32.totalorder %s45, 0
      %p144 = por %p142, %p143
      %p145 = scmp.ne.s32.totalorder %s137, %s139
      %p146 = scmp.eq.s32.totalorder %s50, 1
      %p147 = por %p145, %p146
      %p148 = scmp.ne.s32.totalorder %s139, %s140
      %p149 = scmp.eq.s32.totalorder %s50, 0
      %p150 = por %p148, %p149
      %p151 = scmp.ne.s32.totalorder %s139, %s140
      %p152 = scmp.eq.s32.totalorder %s51, 1
      %p153 = por %p151, %p152
      %p155 = scmp.ne.s32.totalorder %s140, %s154
      %p156 = scmp.eq.s32.totalorder %s51, 0
      %p157 = por %p155, %p156
      %s159 = sadd.s32 %s158, 1
      %p162 = scmp.eq.s32.totalorder %s45, 1
      %p163 = scmp.ne.s32.totalorder %s158, %s160
      %p164 = scmp.eq.s32.totalorder %s45, 0
      %p165 = por %p163, %p164
      %p166 = scmp.ne.s32.totalorder %s158, %s160
      %p167 = scmp.eq.s32.totalorder %s50, 1
      %p168 = por %p166, %p167
      %p169 = scmp.ne.s32.totalorder %s160, %s161
      %p170 = scmp.eq.s32.totalorder %s50, 0
      %p171 = por %p169, %p170
      %p172 = scmp.ne.s32.totalorder %s160, %s161
      %p173 = scmp.eq.s32.totalorder %s51, 1
      %p174 = por %p172, %p173
      %p176 = scmp.ne.s32.totalorder %s161, %s175
      %p177 = scmp.eq.s32.totalorder %s51, 0
      %p178 = por %p176, %p177
      %s180 = sadd.s32 %s179, 1
      %p183 = scmp.eq.s32.totalorder %s45, 1
      %p184 = scmp.ne.s32.totalorder %s179, %s181
      %p185 = scmp.eq.s32.totalorder %s45, 0
      %p186 = por %p184, %p185
      %p187 = scmp.ne.s32.totalorder %s179, %s181
      %p188 = scmp.eq.s32.totalorder %s50, 1
      %p189 = por %p187, %p188
      %p190 = scmp.ne.s32.totalorder %s181, %s182
      %p191 = scmp.eq.s32.totalorder %s50, 0
      %p192 = por %p190, %p191
      %p193 = scmp.ne.s32.totalorder %s181, %s182
      %p194 = scmp.eq.s32.totalorder %s51, 1
      %p195 = por %p193, %p194
      %p197 = scmp.ne.s32.totalorder %s182, %s196
      %p198 = scmp.eq.s32.totalorder %s51, 0
      %p199 = por %p197, %p198
      %s200 = ssub.s32 %s45, %s52
      %p201 = scmp.eq.s32.totalorder %s200, 0
      %s203 = sadd.s32 %s202, 1
      %s204 = scalar_select %p201, %s202, %s203
      %p207 = pneg %p201
      %p208 = scmp.eq.s32.totalorder %s45, 1
      %p209 = por %p207, %p208
      %p210 = scmp.ne.s32.totalorder %s202, %s205
      %p211 = scmp.eq.s32.totalorder %s45, 0
      %p212 = por %p210, %p211
      %p213 = scmp.ne.s32.totalorder %s202, %s205
      %p214 = scmp.eq.s32.totalorder %s50, 1
      %p215 = por %p213, %p214
      %p216 = scmp.ne.s32.totalorder %s205, %s206
      %p217 = scmp.eq.s32.totalorder %s50, 0
      %p218 = por %p216, %p217
      %p219 = scmp.ne.s32.totalorder %s205, %s206
      %p220 = scmp.eq.s32.totalorder %s51, 1
      %p221 = por %p219, %p220
      %p223 = scmp.ne.s32.totalorder %s206, %s222
      %p224 = scmp.eq.s32.totalorder %s51, 0
      %p225 = por %p223, %p224
      %s226 = ssub.s32 %s45, %s52
      %p227 = scmp.eq.s32.totalorder %s226, 0
      %s229 = sadd.s32 %s228, 1
      %s230 = scalar_select %p227, %s228, %s229
      %p233 = pneg %p227
      %p234 = scmp.eq.s32.totalorder %s45, 1
      %p235 = por %p233, %p234
      %p236 = scmp.ne.s32.totalorder %s228, %s231
      %p237 = scmp.eq.s32.totalorder %s45, 0
      %p238 = por %p236, %p237
      %p239 = scmp.ne.s32.totalorder %s228, %s231
      %p240 = scmp.eq.s32.totalorder %s50, 1
      %p241 = por %p239, %p240
      %p242 = scmp.ne.s32.totalorder %s231, %s232
      %p243 = scmp.eq.s32.totalorder %s50, 0
      %p244 = por %p242, %p243
      %p245 = scmp.ne.s32.totalorder %s231, %s232
      %p246 = scmp.eq.s32.totalorder %s51, 1
      %p247 = por %p245, %p246
      %p249 = scmp.ne.s32.totalorder %s232, %s248
      %p250 = scmp.eq.s32.totalorder %s51, 0
      %p251 = por %p249, %p250
      %s252 = ssub.s32 %s45, %s52
      %p253 = scmp.eq.s32.totalorder %s252, 0
      %s255 = sadd.s32 %s254, 1
      %s256 = scalar_select %p253, %s254, %s255
      %p259 = pneg %p253
      %p260 = scmp.eq.s32.totalorder %s45, 1
      %p261 = por %p259, %p260
      %p262 = scmp.ne.s32.totalorder %s254, %s257
      %p263 = scmp.eq.s32.totalorder %s45, 0
      %p264 = por %p262, %p263
      %p265 = scmp.ne.s32.totalorder %s254, %s257
      %p266 = scmp.eq.s32.totalorder %s50, 1
      %p267 = por %p265, %p266
      %p268 = scmp.ne.s32.totalorder %s257, %s258
      %p269 = scmp.eq.s32.totalorder %s50, 0
      %p270 = por %p268, %p269
      %p271 = scmp.ne.s32.totalorder %s257, %s258
      %p272 = scmp.eq.s32.totalorder %s51, 1
      %p273 = por %p271, %p272
      %p275 = scmp.ne.s32.totalorder %s258, %s274
      %p276 = scmp.eq.s32.totalorder %s51, 0
      %p277 = por %p275, %p276
      %s278 = ssub.s32 %s45, %s52
      %p279 = scmp.eq.s32.totalorder %s278, 0
      %s281 = sadd.s32 %s280, 1
      %s282 = scalar_select %p279, %s280, %s281
      %p285 = pneg %p279
      %p286 = scmp.eq.s32.totalorder %s45, 1
      %p287 = por %p285, %p286
      %p288 = scmp.ne.s32.totalorder %s280, %s283
      %p289 = scmp.eq.s32.totalorder %s45, 0
      %p290 = por %p288, %p289
      %p291 = scmp.ne.s32.totalorder %s280, %s283
      %p292 = scmp.eq.s32.totalorder %s50, 1
      %p293 = por %p291, %p292
      %p294 = scmp.ne.s32.totalorder %s283, %s284
      %p295 = scmp.eq.s32.totalorder %s50, 0
      %p296 = por %p294, %p295
      %p297 = scmp.ne.s32.totalorder %s283, %s284
      %p298 = scmp.eq.s32.totalorder %s51, 1
      %p299 = por %p297, %p298
      %p301 = scmp.ne.s32.totalorder %s284, %s300
      %p302 = scmp.eq.s32.totalorder %s51, 0
      %p303 = por %p301, %p302
      %s304 = ssub.s32 %s45, %s52
      %p305 = scmp.eq.s32.totalorder %s304, 0
      %s307 = sadd.s32 %s306, 1
      %s308 = scalar_select %p305, %s306, %s307
      %p311 = pneg %p305
      %p312 = scmp.eq.s32.totalorder %s45, 1
      %p313 = por %p311, %p312
      %p314 = scmp.ne.s32.totalorder %s306, %s309
      %p315 = scmp.eq.s32.totalorder %s45, 0
      %p316 = por %p314, %p315
      %p317 = scmp.ne.s32.totalorder %s306, %s309
      %p318 = scmp.eq.s32.totalorder %s50, 1
      %p319 = por %p317, %p318
      %p320 = scmp.ne.s32.totalorder %s309, %s310
      %p321 = scmp.eq.s32.totalorder %s50, 0
      %p322 = por %p320, %p321
      %p323 = scmp.ne.s32.totalorder %s309, %s310
      %p324 = scmp.eq.s32.totalorder %s51, 1
      %p325 = por %p323, %p324
      %p327 = scmp.ne.s32.totalorder %s310, %s326
      %p328 = scmp.eq.s32.totalorder %s51, 0
      %p329 = por %p327, %p328
      %s330 = ssub.s32 %s45, %s52
      %p331 = scmp.eq.s32.totalorder %s330, 0
      %s333 = sadd.s32 %s332, 1
      %s334 = scalar_select %p331, %s332, %s333
      %p337 = pneg %p331
      %p338 = scmp.eq.s32.totalorder %s45, 1
      %p339 = por %p337, %p338
      %p340 = scmp.ne.s32.totalorder %s332, %s335
      %p341 = scmp.eq.s32.totalorder %s45, 0
      %p342 = por %p340, %p341
      %p343 = scmp.ne.s32.totalorder %s332, %s335
      %p344 = scmp.eq.s32.totalorder %s50, 1
      %p345 = por %p343, %p344
      %p346 = scmp.ne.s32.totalorder %s335, %s336
      %p347 = scmp.eq.s32.totalorder %s50, 0
      %p348 = por %p346, %p347
      %p349 = scmp.ne.s32.totalorder %s335, %s336
      %p350 = scmp.eq.s32.totalorder %s51, 1
      %p351 = por %p349, %p350
      %p353 = scmp.ne.s32.totalorder %s336, %s352
      %p354 = scmp.eq.s32.totalorder %s51, 0
      %p355 = por %p353, %p354
      %s356 = ssub.s32 %s45, %s52
      %p357 = scmp.eq.s32.totalorder %s356, 0
      %s359 = sadd.s32 %s358, 1
      %s360 = scalar_select %p357, %s358, %s359
      %p363 = pneg %p357
      %p364 = scmp.eq.s32.totalorder %s45, 1
      %p365 = por %p363, %p364
      %p366 = scmp.ne.s32.totalorder %s358, %s361
      %p367 = scmp.eq.s32.totalorder %s45, 0
      %p368 = por %p366, %p367
      %p369 = scmp.ne.s32.totalorder %s358, %s361
      %p370 = scmp.eq.s32.totalorder %s50, 1
      %p371 = por %p369, %p370
      %p372 = scmp.ne.s32.totalorder %s361, %s362
      %p373 = scmp.eq.s32.totalorder %s50, 0
      %p374 = por %p372, %p373
      %p375 = scmp.ne.s32.totalorder %s361, %s362
      %p376 = scmp.eq.s32.totalorder %s51, 1
      %p377 = por %p375, %p376
      %p379 = scmp.ne.s32.totalorder %s362, %s378
      %p380 = scmp.eq.s32.totalorder %s51, 0
      %p381 = por %p379, %p380
      %s382 = ssub.s32 %s45, %s52
      %p383 = scmp.eq.s32.totalorder %s382, 0
      %s385 = sadd.s32 %s384, 1
      %s386 = scalar_select %p383, %s384, %s385
      %p389 = pneg %p383
      %p390 = scmp.eq.s32.totalorder %s45, 1
      %p391 = por %p389, %p390
      %p392 = scmp.ne.s32.totalorder %s384, %s387
      %p393 = scmp.eq.s32.totalorder %s45, 0
      %p394 = por %p392, %p393
      %p395 = scmp.ne.s32.totalorder %s384, %s387
      %p396 = scmp.eq.s32.totalorder %s50, 1
      %p397 = por %p395, %p396
      %p398 = scmp.ne.s32.totalorder %s387, %s388
      %p399 = scmp.eq.s32.totalorder %s50, 0
      %p400 = por %p398, %p399
      %p401 = scmp.ne.s32.totalorder %s387, %s388
      %p402 = scmp.eq.s32.totalorder %s51, 1
      %p403 = por %p401, %p402
      %p405 = scmp.ne.s32.totalorder %s388, %s404
      %p406 = scmp.eq.s32.totalorder %s51, 0
      %p407 = por %p405, %p406
      %s408 = ssub.s32 %s45, %s52
      %p409 = scmp.eq.s32.totalorder %s408, 0
      %s411 = sadd.s32 %s410, 1
      %s412 = scalar_select %p409, %s410, %s411
      %p415 = pneg %p409
      %p416 = scmp.eq.s32.totalorder %s45, 1
      %p417 = por %p415, %p416
      %p418 = scmp.ne.s32.totalorder %s410, %s413
      %p419 = scmp.eq.s32.totalorder %s45, 0
      %p420 = por %p418, %p419
      %p421 = scmp.ne.s32.totalorder %s410, %s413
      %p422 = scmp.eq.s32.totalorder %s50, 1
      %p423 = por %p421, %p422
      %p424 = scmp.ne.s32.totalorder %s413, %s414
      %p425 = scmp.eq.s32.totalorder %s50, 0
      %p426 = por %p424, %p425
      %p427 = scmp.ne.s32.totalorder %s413, %s414
      %p428 = scmp.eq.s32.totalorder %s51, 1
      %p429 = por %p427, %p428
      %p431 = scmp.ne.s32.totalorder %s414, %s430
      %p432 = scmp.eq.s32.totalorder %s51, 0
      %p433 = por %p431, %p432
      %s434 = ssub.s32 %s45, %s52
      %p435 = scmp.eq.s32.totalorder %s434, 0
      %s437 = sadd.s32 %s436, 1
      %s438 = scalar_select %p435, %s436, %s437
      %p441 = pneg %p435
      %p442 = scmp.eq.s32.totalorder %s45, 1
      %p443 = por %p441, %p442
      %p444 = scmp.ne.s32.totalorder %s436, %s439
      %p445 = scmp.eq.s32.totalorder %s45, 0
      %p446 = por %p444, %p445
      %p447 = scmp.ne.s32.totalorder %s436, %s439
      %p448 = scmp.eq.s32.totalorder %s50, 1
      %p449 = por %p447, %p448
      %p450 = scmp.ne.s32.totalorder %s439, %s440
      %p451 = scmp.eq.s32.totalorder %s50, 0
      %p452 = por %p450, %p451
      %p453 = scmp.ne.s32.totalorder %s439, %s440
      %p454 = scmp.eq.s32.totalorder %s51, 1
      %p455 = por %p453, %p454
      %p457 = scmp.ne.s32.totalorder %s440, %s456
      %p458 = scmp.eq.s32.totalorder %s51, 0
      %p459 = por %p457, %p458
      %s460 = ssub.s32 %s45, %s52
      %p461 = scmp.eq.s32.totalorder %s460, 0
      %s463 = sadd.s32 %s462, 1
      %s464 = scalar_select %p461, %s462, %s463
      %p467 = pneg %p461
      %p468 = scmp.eq.s32.totalorder %s45, 1
      %p469 = por %p467, %p468
      %p470 = scmp.ne.s32.totalorder %s462, %s465
      %p471 = scmp.eq.s32.totalorder %s45, 0
      %p472 = por %p470, %p471
      %p473 = scmp.ne.s32.totalorder %s462, %s465
      %p474 = scmp.eq.s32.totalorder %s50, 1
      %p475 = por %p473, %p474
      %p476 = scmp.ne.s32.totalorder %s465, %s466
      %p477 = scmp.eq.s32.totalorder %s50, 0
      %p478 = por %p476, %p477
      %p479 = scmp.ne.s32.totalorder %s465, %s466
      %p480 = scmp.eq.s32.totalorder %s51, 1
      %p481 = por %p479, %p480
      %p483 = scmp.ne.s32.totalorder %s466, %s482
      %p484 = scmp.eq.s32.totalorder %s51, 0
      %p485 = por %p483, %p484
      %s486 = ssub.s32 %s45, %s52
      %p487 = scmp.eq.s32.totalorder %s486, 0
      %s489 = sadd.s32 %s488, 1
      %s490 = scalar_select %p487, %s488, %s489
      %p493 = pneg %p487
      %p494 = scmp.eq.s32.totalorder %s45, 1
      %p495 = por %p493, %p494
      %p496 = scmp.ne.s32.totalorder %s488, %s491
      %p497 = scmp.eq.s32.totalorder %s45, 0
      %p498 = por %p496, %p497
      %p499 = scmp.ne.s32.totalorder %s488, %s491
      %p500 = scmp.eq.s32.totalorder %s50, 1
      %p501 = por %p499, %p500
      %p502 = scmp.ne.s32.totalorder %s491, %s492
      %p503 = scmp.eq.s32.totalorder %s50, 0
      %p504 = por %p502, %p503
      %p505 = scmp.ne.s32.totalorder %s491, %s492
      %p506 = scmp.eq.s32.totalorder %s51, 1
      %p507 = por %p505, %p506
      %p509 = scmp.ne.s32.totalorder %s492, %s508
      %p510 = scmp.eq.s32.totalorder %s51, 0
      %p511 = por %p509, %p510
      %s513 = sadd.s32 %s512, 1
      %p516 = scmp.eq.s32.totalorder %s45, 1
      %p517 = scmp.ne.s32.totalorder %s512, %s514
      %p518 = scmp.eq.s32.totalorder %s45, 0
      %p519 = por %p517, %p518
      %p520 = scmp.ne.s32.totalorder %s512, %s514
      %p521 = scmp.eq.s32.totalorder %s50, 1
      %p522 = por %p520, %p521
      %p523 = scmp.ne.s32.totalorder %s514, %s515
      %p524 = scmp.eq.s32.totalorder %s50, 0
      %p525 = por %p523, %p524
      %p526 = scmp.ne.s32.totalorder %s514, %s515
      %p527 = scmp.eq.s32.totalorder %s51, 1
      %p528 = por %p526, %p527
      %p530 = scmp.ne.s32.totalorder %s515, %s529
      %p531 = scmp.eq.s32.totalorder %s51, 0
      %p532 = por %p530, %p531
      %s534 = sadd.s32 %s533, 1
      %p537 = scmp.eq.s32.totalorder %s45, 1
      %p538 = scmp.ne.s32.totalorder %s533, %s535
      %p539 = scmp.eq.s32.totalorder %s45, 0
      %p540 = por %p538, %p539
      %p541 = scmp.ne.s32.totalorder %s533, %s535
      %p542 = scmp.eq.s32.totalorder %s50, 1
      %p543 = por %p541, %p542
      %p544 = scmp.ne.s32.totalorder %s535, %s536
      %p545 = scmp.eq.s32.totalorder %s50, 0
      %p546 = por %p544, %p545
      %p547 = scmp.ne.s32.totalorder %s535, %s536
      %p548 = scmp.eq.s32.totalorder %s51, 1
      %p549 = por %p547, %p548
      %p551 = scmp.ne.s32.totalorder %s536, %s550
      %p552 = scmp.eq.s32.totalorder %s51, 0
      %p553 = por %p551, %p552
      %s555 = sadd.s32 %s554, 1
      %p558 = scmp.eq.s32.totalorder %s45, 1
      %p559 = scmp.ne.s32.totalorder %s554, %s556
      %p560 = scmp.eq.s32.totalorder %s45, 0
      %p561 = por %p559, %p560
      %p562 = scmp.ne.s32.totalorder %s554, %s556
      %p563 = scmp.eq.s32.totalorder %s50, 1
      %p564 = por %p562, %p563
      %p565 = scmp.ne.s32.totalorder %s556, %s557
      %p566 = scmp.eq.s32.totalorder %s50, 0
      %p567 = por %p565, %p566
      %p568 = scmp.ne.s32.totalorder %s556, %s557
      %p569 = scmp.eq.s32.totalorder %s51, 1
      %p570 = por %p568, %p569
      %p572 = scmp.ne.s32.totalorder %s557, %s571
      %p573 = scmp.eq.s32.totalorder %s51, 0
      %p574 = por %p572, %p573
      %s576 = sadd.s32 %s575, 1
      %p579 = scmp.eq.s32.totalorder %s45, 1
      %p580 = scmp.ne.s32.totalorder %s575, %s577
      %p581 = scmp.eq.s32.totalorder %s45, 0
      %p582 = por %p580, %p581
      %p583 = scmp.ne.s32.totalorder %s575, %s577
      %p584 = scmp.eq.s32.totalorder %s50, 1
      %p585 = por %p583, %p584
      %p586 = scmp.ne.s32.totalorder %s577, %s578
      %p587 = scmp.eq.s32.totalorder %s50, 0
      %p588 = por %p586, %p587
      %p589 = scmp.ne.s32.totalorder %s577, %s578
      %p590 = scmp.eq.s32.totalorder %s51, 1
      %p591 = por %p589, %p590
      %p593 = scmp.ne.s32.totalorder %s578, %s592
      %p594 = scmp.eq.s32.totalorder %s51, 0
      %p595 = por %p593, %p594
      %s597 = sadd.s32 %s596, 1
      %p600 = scmp.eq.s32.totalorder %s45, 1
      %p601 = scmp.ne.s32.totalorder %s596, %s598
      %p602 = scmp.eq.s32.totalorder %s45, 0
      %p603 = por %p601, %p602
      %p604 = scmp.ne.s32.totalorder %s596, %s598
      %p605 = scmp.eq.s32.totalorder %s50, 1
      %p606 = por %p604, %p605
      %p607 = scmp.ne.s32.totalorder %s598, %s599
      %p608 = scmp.eq.s32.totalorder %s50, 0
      %p609 = por %p607, %p608
      %p610 = scmp.ne.s32.totalorder %s598, %s599
      %p611 = scmp.eq.s32.totalorder %s51, 1
      %p612 = por %p610, %p611
      %p614 = scmp.ne.s32.totalorder %s599, %s613
      %p615 = scmp.eq.s32.totalorder %s51, 0
      %p616 = por %p614, %p615
      %p617 = scmp.le.s32.totalorder 1, %s45
      %p618 = scmp.lt.s32.totalorder %s45, 3
      %p619 = pnand %p617, %p618
      %p620 = pneg %p619
      // Predicated region
      $region9: #{tpu_custom_call.1} parent=5 // pred_check
        _
      $region10: #{tpu_custom_call.1} parent=5 // pred_check_branch
        %622 = sbr.rel (%p619) target = $region12
      $region11: #{tpu_custom_call.1} parent=5 // pred_region
        %s623 = ssub.s32 %s45, 1
        // Predicated region
        $region13: #{tpu_custom_call.1} parent=11 // pred_check
          %p624 = pneg %p66
        $region14: #{tpu_custom_call.1} parent=11 // pred_check_branch
          %626 = sbr.rel (%p624) target = $region16
        $region15: #{tpu_custom_call.1} parent=11 // pred_region
          _
        $region16: #{tpu_custom_call.1} parent=11 // pred_fallthru
          _
        // Predicated region
        $region17: #{tpu_custom_call.1} parent=11 // pred_check
          %p627 = pneg %p87
        $region18: #{tpu_custom_call.1} parent=11 // pred_check_branch
          %629 = sbr.rel (%p627) target = $region20
        $region19: #{tpu_custom_call.1} parent=11 // pred_region
          %s631 = ssub.s32 32, 32
          %632 = vsyncadd [#allocation4], %s631
          %s634 = sshll.u32 [#allocation3], 4
          %s635 = int_to_ptr.vmem [resolvable:$true] %s634
          %637 = dma.hbm_to_vmem [thread:$0]  %s1, 32, %s635, [#allocation4]
        $region20: #{tpu_custom_call.1} parent=11 // pred_fallthru
          _
        // Predicated region
        $region21: #{tpu_custom_call.1} parent=11 // pred_check
          %p638 = pneg %p108
        $region22: #{tpu_custom_call.1} parent=11 // pred_check_branch
          %640 = sbr.rel (%p638) target = $region24
        $region23: #{tpu_custom_call.1} parent=11 // pred_region
          %s642 = ssub.s32 1664, 1664
          %643 = vsyncadd [#allocation7], %s642
          %s644 = sshll.u32 [#allocation6], 4
          %s645 = int_to_ptr.vmem [resolvable:$true] %s644
          %650 = dma.hbm_to_vmem [thread:$0]  %s2, 1664, %s645, [#allocation7], 128, 128, 8
        $region24: #{tpu_custom_call.1} parent=11 // pred_fallthru
          _
        // Predicated region
        $region25: #{tpu_custom_call.1} parent=11 // pred_check
          %p651 = pneg %p129
        $region26: #{tpu_custom_call.1} parent=11 // pred_check_branch
          %653 = sbr.rel (%p651) target = $region28
        $region27: #{tpu_custom_call.1} parent=11 // pred_region
          %s655 = ssub.s32 512, 512
          %656 = vsyncadd [#allocation7], %s655
          %s657 = sshll.u32 [#allocation8], 4
          %s658 = int_to_ptr.vmem [resolvable:$true] %s657
          %663 = dma.hbm_to_vmem [thread:$0]  %s3, 512, %s658, [#allocation7], 128, 128, 8
        $region28: #{tpu_custom_call.1} parent=11 // pred_fallthru
          _
        // Predicated region
        $region29: #{tpu_custom_call.1} parent=11 // pred_check
          %p664 = pneg %p150
        $region30: #{tpu_custom_call.1} parent=11 // pred_check_branch
          %666 = sbr.rel (%p664) target = $region32
        $region31: #{tpu_custom_call.1} parent=11 // pred_region
          %s668 = ssub.s32 32, 32
          %669 = vsyncadd [#allocation10], %s668
          %s671 = sshll.u32 [#allocation9], 4
          %s672 = int_to_ptr.vmem [resolvable:$true] %s671
          %674 = dma.hbm_to_vmem [thread:$0]  %s4, 32, %s672, [#allocation10]
        $region32: #{tpu_custom_call.1} parent=11 // pred_fallthru
          _
        // Predicated region
        $region33: #{tpu_custom_call.1} parent=11 // pred_check
          %p675 = pneg %p171
        $region34: #{tpu_custom_call.1} parent=11 // pred_check_branch
          %677 = sbr.rel (%p675) target = $region36
        $region35: #{tpu_custom_call.1} parent=11 // pred_region
          _
        $region36: #{tpu_custom_call.1} parent=11 // pred_fallthru
          _
        // Predicated region
        $region37: #{tpu_custom_call.1} parent=11 // pred_check
          %p678 = pneg %p192
        $region38: #{tpu_custom_call.1} parent=11 // pred_check_branch
          %680 = sbr.rel (%p678) target = $region40
        $region39: #{tpu_custom_call.1} parent=11 // pred_region
          %s682 = ssub.s32 16, 16
          %683 = vsyncadd [#allocation10], %s682
          %s685 = sshll.u32 [#allocation11], 4
          %s686 = int_to_ptr.vmem [resolvable:$true] %s685
          %688 = dma.hbm_to_vmem [thread:$0]  %s6, 16, %s686, [#allocation10]
        $region40: #{tpu_custom_call.1} parent=11 // pred_fallthru
          _
        // Predicated region
        $region41: #{tpu_custom_call.1} parent=11 // pred_check
          %p689 = pneg %p525
        $region42: #{tpu_custom_call.1} parent=11 // pred_check_branch
          %691 = sbr.rel (%p689) target = $region44
        $region43: #{tpu_custom_call.1} parent=11 // pred_region
          _
        $region44: #{tpu_custom_call.1} parent=11 // pred_fallthru
          _
        // Predicated region
        $region45: #{tpu_custom_call.1} parent=11 // pred_check
          %p692 = pneg %p546
        $region46: #{tpu_custom_call.1} parent=11 // pred_check_branch
          %694 = sbr.rel (%p692) target = $region48
        $region47: #{tpu_custom_call.1} parent=11 // pred_region
          _
        $region48: #{tpu_custom_call.1} parent=11 // pred_fallthru
          _
        // Predicated region
        $region49: #{tpu_custom_call.1} parent=11 // pred_check
          %p695 = pneg %p567
        $region50: #{tpu_custom_call.1} parent=11 // pred_check_branch
          %697 = sbr.rel (%p695) target = $region52
        $region51: #{tpu_custom_call.1} parent=11 // pred_region
          _
        $region52: #{tpu_custom_call.1} parent=11 // pred_fallthru
          _
        // Predicated region
        $region53: #{tpu_custom_call.1} parent=11 // pred_check
          %p698 = pneg %p588
        $region54: #{tpu_custom_call.1} parent=11 // pred_check_branch
          %700 = sbr.rel (%p698) target = $region56
        $region55: #{tpu_custom_call.1} parent=11 // pred_region
          _
        $region56: #{tpu_custom_call.1} parent=11 // pred_fallthru
          _
      $region12: #{tpu_custom_call.1} parent=5 // pred_fallthru
        _
      %p701 = scmp.lt.s32.totalorder %s45, 2
      // Predicated region
      $region57: #{tpu_custom_call.1} parent=5 // pred_check
        %p702 = pneg %p701
      $region58: #{tpu_custom_call.1} parent=5 // pred_check_branch
        %704 = sbr.rel (%p702) target = $region60
      $region59: #{tpu_custom_call.1} parent=5 // pred_region
        // Predicated region
        $region61: #{tpu_custom_call.1} parent=59 // pred_check
          %p705 = pneg %p212
        $region62: #{tpu_custom_call.1} parent=59 // pred_check_branch
          %707 = sbr.rel (%p705) target = $region64
        $region63: #{tpu_custom_call.1} parent=59 // pred_region
          %s708 = sand.u32 %s45, 1
          %s709 = scalar_lea.sflag [#allocation13], %s708
          %s710 = sand.u32 %s202, 1
          %s711 = smul.addr %s710, 192
          %s712 = scalar_lea.vmem [#allocation12], %s711
          %s714 = ssub.s32 3072, 3072
          %715 = vsyncadd %s709, %s714
          %s716 = smul.addr %s45, 48
          %s717 = smul.addr %s716, 64
          %s718 = scalar_lea.hbm %s7, %s717
          %s719 = sshll.u32 %s712, 4
          %s720 = int_to_ptr.vmem [resolvable:$true] %s719
          %725 = dma.hbm_to_vmem [thread:$0]  %s718, 3072, %s720, %s709, 192, 192, 12
        $region64: #{tpu_custom_call.1} parent=59 // pred_fallthru
          _
        // Predicated region
        $region65: #{tpu_custom_call.1} parent=59 // pred_check
          %p726 = pneg %p238
        $region66: #{tpu_custom_call.1} parent=59 // pred_check_branch
          %728 = sbr.rel (%p726) target = $region68
        $region67: #{tpu_custom_call.1} parent=59 // pred_region
          %s729 = sand.u32 %s45, 1
          %s730 = scalar_lea.sflag [#allocation13], %s729
          %s731 = sand.u32 %s228, 1
          %s732 = smul.addr %s731, 3
          %s733 = scalar_lea.vmem [#allocation14], %s732
          %s735 = ssub.s32 48, 48
          %736 = vsyncadd %s730, %s735
          %s737 = smul.addr %s45, 3
          %s738 = smul.addr %s737, 16
          %s739 = scalar_lea.hbm %s8, %s738
          %s741 = sshll.u32 %s733, 4
          %s742 = int_to_ptr.vmem [resolvable:$true] %s741
          %744 = dma.hbm_to_vmem [thread:$0]  %s739, 48, %s742, %s730
        $region68: #{tpu_custom_call.1} parent=59 // pred_fallthru
          _
        // Predicated region
        $region69: #{tpu_custom_call.1} parent=59 // pred_check
          %p745 = pneg %p264
        $region70: #{tpu_custom_call.1} parent=59 // pred_check_branch
          %747 = sbr.rel (%p745) target = $region72
        $region71: #{tpu_custom_call.1} parent=59 // pred_region
          %p748 = scmp.lt.s32.totalorder %s45, 1
          %s749 = scalar_select %p748, %s45, 1
          %s750 = smul.addr %s749, 16
          %s751 = smul.addr %s750, 4
          %s752 = scalar_lea.vmem %s9, %s751
        $region72: #{tpu_custom_call.1} parent=59 // pred_fallthru
          _
        // Predicated region
        $region73: #{tpu_custom_call.1} parent=59 // pred_check
          %p753 = pneg %p290
        $region74: #{tpu_custom_call.1} parent=59 // pred_check_branch
          %755 = sbr.rel (%p753) target = $region76
        $region75: #{tpu_custom_call.1} parent=59 // pred_region
          %s756 = sand.u32 %s45, 1
          %s757 = scalar_lea.sflag [#allocation16], %s756
          %s758 = sand.u32 %s280, 1
          %s759 = scalar_lea.vmem [#allocation15], %s758
          %s761 = ssub.s32 16, 16
          %762 = vsyncadd %s757, %s761
          %s763 = smul.addr %s45, 16
          %s764 = scalar_lea.hbm %s10, %s763
          %s766 = sshll.u32 %s759, 4
          %s767 = int_to_ptr.vmem [resolvable:$true] %s766
          %769 = dma.hbm_to_vmem [thread:$0]  %s764, 16, %s767, %s757
        $region76: #{tpu_custom_call.1} parent=59 // pred_fallthru
          _
        // Predicated region
        $region77: #{tpu_custom_call.1} parent=59 // pred_check
          %p770 = pneg %p316
        $region78: #{tpu_custom_call.1} parent=59 // pred_check_branch
          %772 = sbr.rel (%p770) target = $region80
        $region79: #{tpu_custom_call.1} parent=59 // pred_region
          %s773 = sand.u32 %s45, 1
          %s774 = scalar_lea.sflag [#allocation16], %s773
          %s775 = sand.u32 %s306, 1
          %s776 = scalar_lea.vmem [#allocation17], %s775
          %s778 = ssub.s32 16, 16
          %779 = vsyncadd %s774, %s778
          %s780 = smul.addr %s45, 16
          %s781 = scalar_lea.hbm %s11, %s780
          %s783 = sshll.u32 %s776, 4
          %s784 = int_to_ptr.vmem [resolvable:$true] %s783
          %786 = dma.hbm_to_vmem [thread:$0]  %s781, 16, %s784, %s774
        $region80: #{tpu_custom_call.1} parent=59 // pred_fallthru
          _
        // Predicated region
        $region81: #{tpu_custom_call.1} parent=59 // pred_check
          %p787 = pneg %p342
        $region82: #{tpu_custom_call.1} parent=59 // pred_check_branch
          %789 = sbr.rel (%p787) target = $region84
        $region83: #{tpu_custom_call.1} parent=59 // pred_region
          %s790 = sand.u32 %s45, 1
          %s791 = scalar_lea.sflag [#allocation19], %s790
          %s792 = sand.u32 %s332, 1
          %s793 = scalar_lea.vmem [#allocation18], %s792
          %s795 = ssub.s32 16, 16
          %796 = vsyncadd %s791, %s795
          %s797 = smul.addr %s45, 16
          %s798 = scalar_lea.hbm %s12, %s797
          %s800 = sshll.u32 %s793, 4
          %s801 = int_to_ptr.vmem [resolvable:$true] %s800
          %803 = dma.hbm_to_vmem [thread:$0]  %s798, 16, %s801, %s791
        $region84: #{tpu_custom_call.1} parent=59 // pred_fallthru
          _
        // Predicated region
        $region85: #{tpu_custom_call.1} parent=59 // pred_check
          %p804 = pneg %p368
        $region86: #{tpu_custom_call.1} parent=59 // pred_check_branch
          %806 = sbr.rel (%p804) target = $region88
        $region87: #{tpu_custom_call.1} parent=59 // pred_region
          %s807 = sand.u32 %s45, 1
          %s808 = scalar_lea.sflag [#allocation19], %s807
          %s809 = sand.u32 %s358, 1
          %s810 = smul.addr %s809, 256
          %s811 = scalar_lea.vmem [#allocation20], %s810
          %s813 = ssub.s32 4096, 4096
          %814 = vsyncadd %s808, %s813
          %s815 = smul.addr %s45, 64
          %s816 = smul.addr %s815, 64
          %s817 = scalar_lea.hbm %s13, %s816
          %s818 = sshll.u32 %s811, 4
          %s819 = int_to_ptr.vmem [resolvable:$true] %s818
          %824 = dma.hbm_to_vmem [thread:$0]  %s817, 4096, %s819, %s808, 256, 256, 16
        $region88: #{tpu_custom_call.1} parent=59 // pred_fallthru
          _
        // Predicated region
        $region89: #{tpu_custom_call.1} parent=59 // pred_check
          %p825 = pneg %p394
        $region90: #{tpu_custom_call.1} parent=59 // pred_check_branch
          %827 = sbr.rel (%p825) target = $region92
        $region91: #{tpu_custom_call.1} parent=59 // pred_region
          %p828 = scmp.lt.s32.totalorder %s45, 1
          %s829 = scalar_select %p828, %s45, 1
          %s830 = smul.addr %s829, 4
          %s831 = scalar_lea.vmem %s14, %s830
        $region92: #{tpu_custom_call.1} parent=59 // pred_fallthru
          _
        // Predicated region
        $region93: #{tpu_custom_call.1} parent=59 // pred_check
          %p832 = pneg %p420
        $region94: #{tpu_custom_call.1} parent=59 // pred_check_branch
          %834 = sbr.rel (%p832) target = $region96
        $region95: #{tpu_custom_call.1} parent=59 // pred_region
          %s835 = sand.u32 %s410, 1
          %s836 = scalar_lea.sflag [#allocation22], %s835
          %s837 = sand.u32 %s410, 1
          %s838 = smul.addr %s837, 256
          %s839 = scalar_lea.vmem [#allocation21], %s838
          %s841 = ssub.s32 4096, 4096
          %842 = vsyncadd %s836, %s841
          %s843 = smul.addr %s45, 64
          %s844 = smul.addr %s843, 64
          %s845 = scalar_lea.hbm %s15, %s844
          %s846 = sshll.u32 %s839, 4
          %s847 = int_to_ptr.vmem [resolvable:$true] %s846
          %852 = dma.hbm_to_vmem [thread:$0]  %s845, 4096, %s847, %s836, 64, 64, 4
        $region96: #{tpu_custom_call.1} parent=59 // pred_fallthru
          _
        // Predicated region
        $region97: #{tpu_custom_call.1} parent=59 // pred_check
          %p853 = pneg %p446
        $region98: #{tpu_custom_call.1} parent=59 // pred_check_branch
          %855 = sbr.rel (%p853) target = $region100
        $region99: #{tpu_custom_call.1} parent=59 // pred_region
          %p856 = scmp.lt.s32.totalorder %s45, 1
          %s857 = scalar_select %p856, %s45, 1
          %s858 = scalar_lea.vmem %s16, %s857
        $region100: #{tpu_custom_call.1} parent=59 // pred_fallthru
          _
        // Predicated region
        $region101: #{tpu_custom_call.1} parent=59 // pred_check
          %p859 = pneg %p472
        $region102: #{tpu_custom_call.1} parent=59 // pred_check_branch
          %861 = sbr.rel (%p859) target = $region104
        $region103: #{tpu_custom_call.1} parent=59 // pred_region
          %p862 = scmp.lt.s32.totalorder %s45, 1
          %s863 = scalar_select %p862, %s45, 1
          %s864 = scalar_lea.vmem %s17, %s863
        $region104: #{tpu_custom_call.1} parent=59 // pred_fallthru
          _
        // Predicated region
        $region105: #{tpu_custom_call.1} parent=59 // pred_check
          %p865 = pneg %p498
        $region106: #{tpu_custom_call.1} parent=59 // pred_check_branch
          %867 = sbr.rel (%p865) target = $region108
        $region107: #{tpu_custom_call.1} parent=59 // pred_region
          %p868 = scmp.lt.s32.totalorder %s45, 1
          %s869 = scalar_select %p868, %s45, 1
          %s870 = scalar_lea.vmem %s18, %s869
        $region108: #{tpu_custom_call.1} parent=59 // pred_fallthru
          _
      $region60: #{tpu_custom_call.1} parent=5 // pred_fallthru
        _
      %p871 = scmp.le.s32.totalorder 1, %s45
      %p872 = scmp.lt.s32.totalorder %s45, 3
      %p873 = pnand %p871, %p872
      %p874 = pneg %p873
      // Predicated region
      $region109: #{tpu_custom_call.1} parent=5 // pred_check
        _
      $region110: #{tpu_custom_call.1} parent=5 // pred_check_branch
        %876 = sbr.rel (%p873) target = $region112
      $region111: #{tpu_custom_call.1} parent=5 // pred_region
        %s877 = ssub.s32 %s45, 1
        // Predicated region
        $region113: #{tpu_custom_call.1} parent=111 // pred_check
          %p878 = pneg %p87
        $region114: #{tpu_custom_call.1} parent=111 // pred_check_branch
          %880 = sbr.rel (%p878) target = $region116
        $region115: #{tpu_custom_call.1} parent=111 // pred_region
          %881 = dma.done [#allocation4], 32
        $region116: #{tpu_custom_call.1} parent=111 // pred_fallthru
          _
        // Predicated region
        $region117: #{tpu_custom_call.1} parent=111 // pred_check
          %p882 = pneg %p108
        $region118: #{tpu_custom_call.1} parent=111 // pred_check_branch
          %884 = sbr.rel (%p882) target = $region120
        $region119: #{tpu_custom_call.1} parent=111 // pred_region
          %885 = dma.done [#allocation7], 1664
        $region120: #{tpu_custom_call.1} parent=111 // pred_fallthru
          _
        // Predicated region
        $region121: #{tpu_custom_call.1} parent=111 // pred_check
          %p886 = pneg %p129
        $region122: #{tpu_custom_call.1} parent=111 // pred_check_branch
          %888 = sbr.rel (%p886) target = $region124
        $region123: #{tpu_custom_call.1} parent=111 // pred_region
          %889 = dma.done [#allocation7], 512
        $region124: #{tpu_custom_call.1} parent=111 // pred_fallthru
          _
        // Predicated region
        $region125: #{tpu_custom_call.1} parent=111 // pred_check
          %p890 = pneg %p150
        $region126: #{tpu_custom_call.1} parent=111 // pred_check_branch
          %892 = sbr.rel (%p890) target = $region128
        $region127: #{tpu_custom_call.1} parent=111 // pred_region
          %893 = dma.done [#allocation10], 32
        $region128: #{tpu_custom_call.1} parent=111 // pred_fallthru
          _
        // Predicated region
        $region129: #{tpu_custom_call.1} parent=111 // pred_check
          %p894 = pneg %p192
        $region130: #{tpu_custom_call.1} parent=111 // pred_check_branch
          %896 = sbr.rel (%p894) target = $region132
        $region131: #{tpu_custom_call.1} parent=111 // pred_region
          %897 = dma.done [#allocation10], 16
        $region132: #{tpu_custom_call.1} parent=111 // pred_fallthru
          _
        %s898 = sand.u32 %s50, 1
        %s899 = scalar_lea.sflag [#allocation13], %s898
        %s900 = sand.u32 %s205, 1
        %s901 = smul.addr %s900, 192
        %s902 = scalar_lea.vmem [#allocation12], %s901
        // Predicated region
        $region133: #{tpu_custom_call.1} parent=111 // pred_check
          %p903 = pneg %p218
        $region134: #{tpu_custom_call.1} parent=111 // pred_check_branch
          %905 = sbr.rel (%p903) target = $region136
        $region135: #{tpu_custom_call.1} parent=111 // pred_region
          %906 = dma.done %s899, 3072
        $region136: #{tpu_custom_call.1} parent=111 // pred_fallthru
          _
        %s907 = sand.u32 %s50, 1
        %s908 = scalar_lea.sflag [#allocation13], %s907
        %s909 = sand.u32 %s231, 1
        %s910 = smul.addr %s909, 3
        %s911 = scalar_lea.vmem [#allocation14], %s910
        // Predicated region
        $region137: #{tpu_custom_call.1} parent=111 // pred_check
          %p912 = pneg %p244
        $region138: #{tpu_custom_call.1} parent=111 // pred_check_branch
          %914 = sbr.rel (%p912) target = $region140
        $region139: #{tpu_custom_call.1} parent=111 // pred_region
          %915 = dma.done %s908, 48
        $region140: #{tpu_custom_call.1} parent=111 // pred_fallthru
          _
        %s916 = sand.u32 %s50, 1
        %s917 = scalar_lea.sflag [#allocation16], %s916
        %s918 = sand.u32 %s283, 1
        %s919 = scalar_lea.vmem [#allocation15], %s918
        // Predicated region
        $region141: #{tpu_custom_call.1} parent=111 // pred_check
          %p920 = pneg %p296
        $region142: #{tpu_custom_call.1} parent=111 // pred_check_branch
          %922 = sbr.rel (%p920) target = $region144
        $region143: #{tpu_custom_call.1} parent=111 // pred_region
          %923 = dma.done %s917, 16
        $region144: #{tpu_custom_call.1} parent=111 // pred_fallthru
          _
        %s924 = sand.u32 %s50, 1
        %s925 = scalar_lea.sflag [#allocation16], %s924
        %s926 = sand.u32 %s309, 1
        %s927 = scalar_lea.vmem [#allocation17], %s926
        // Predicated region
        $region145: #{tpu_custom_call.1} parent=111 // pred_check
          %p928 = pneg %p322
        $region146: #{tpu_custom_call.1} parent=111 // pred_check_branch
          %930 = sbr.rel (%p928) target = $region148
        $region147: #{tpu_custom_call.1} parent=111 // pred_region
          %931 = dma.done %s925, 16
        $region148: #{tpu_custom_call.1} parent=111 // pred_fallthru
          _
        %s932 = sand.u32 %s50, 1
        %s933 = scalar_lea.sflag [#allocation19], %s932
        %s934 = sand.u32 %s335, 1
        %s935 = scalar_lea.vmem [#allocation18], %s934
        // Predicated region
        $region149: #{tpu_custom_call.1} parent=111 // pred_check
          %p936 = pneg %p348
        $region150: #{tpu_custom_call.1} parent=111 // pred_check_branch
          %938 = sbr.rel (%p936) target = $region152
        $region151: #{tpu_custom_call.1} parent=111 // pred_region
          %939 = dma.done %s933, 16
        $region152: #{tpu_custom_call.1} parent=111 // pred_fallthru
          _
        %s940 = sand.u32 %s50, 1
        %s941 = scalar_lea.sflag [#allocation19], %s940
        %s942 = sand.u32 %s361, 1
        %s943 = smul.addr %s942, 256
        %s944 = scalar_lea.vmem [#allocation20], %s943
        // Predicated region
        $region153: #{tpu_custom_call.1} parent=111 // pred_check
          %p945 = pneg %p374
        $region154: #{tpu_custom_call.1} parent=111 // pred_check_branch
          %947 = sbr.rel (%p945) target = $region156
        $region155: #{tpu_custom_call.1} parent=111 // pred_region
          %948 = dma.done %s941, 4096
        $region156: #{tpu_custom_call.1} parent=111 // pred_fallthru
          _
        %s949 = sand.u32 %s413, 1
        %s950 = scalar_lea.sflag [#allocation22], %s949
        %s951 = sand.u32 %s413, 1
        %s952 = smul.addr %s951, 256
        %s953 = scalar_lea.vmem [#allocation21], %s952
        // Predicated region
        $region157: #{tpu_custom_call.1} parent=111 // pred_check
          %p954 = pneg %p426
        $region158: #{tpu_custom_call.1} parent=111 // pred_check_branch
          %956 = sbr.rel (%p954) target = $region160
        $region159: #{tpu_custom_call.1} parent=111 // pred_region
          %957 = dma.done %s950, 4096
        $region160: #{tpu_custom_call.1} parent=111 // pred_fallthru
          _
        %p958 = pneg %p66
        %p959 = pneg %p63
        %p960 = pneg %p87
        %p961 = pneg %p84
        %p962 = pneg %p108
        %p963 = pneg %p105
        %p964 = pneg %p129
        %p965 = pneg %p126
        %p966 = pneg %p150
        %p967 = pneg %p147
        %p968 = pneg %p171
        %p969 = pneg %p168
        %p970 = pneg %p192
        %p971 = pneg %p189
        %s972 = sand.u32 %s50, 1
        %s973 = scalar_lea.sflag [#allocation13], %s972
        %s974 = sand.u32 %s205, 1
        %s975 = smul.addr %s974, 192
        %s976 = scalar_lea.vmem [#allocation12], %s975
        %p977 = pneg %p218
        %p978 = pneg %p215
        %s979 = sand.u32 %s50, 1
        %s980 = scalar_lea.sflag [#allocation13], %s979
        %s981 = sand.u32 %s231, 1
        %s982 = smul.addr %s981, 3
        %s983 = scalar_lea.vmem [#allocation14], %s982
        %p984 = pneg %p244
        %p985 = pneg %p241
        %p986 = scmp.lt.s32.totalorder %s50, 1
        %s987 = scalar_select %p986, %s50, 1
        %s988 = smul.addr %s987, 16
        %s989 = smul.addr %s988, 4
        %s990 = scalar_lea.vmem %s9, %s989
        %p991 = pneg %p270
        %p992 = pneg %p267
        %s993 = sand.u32 %s50, 1
        %s994 = scalar_lea.sflag [#allocation16], %s993
        %s995 = sand.u32 %s283, 1
        %s996 = scalar_lea.vmem [#allocation15], %s995
        %p997 = pneg %p296
        %p998 = pneg %p293
        %s999 = sand.u32 %s50, 1
        %s1000 = scalar_lea.sflag [#allocation16], %s999
        %s1001 = sand.u32 %s309, 1
        %s1002 = scalar_lea.vmem [#allocation17], %s1001
        %p1003 = pneg %p322
        %p1004 = pneg %p319
        %s1005 = sand.u32 %s50, 1
        %s1006 = scalar_lea.sflag [#allocation19], %s1005
        %s1007 = sand.u32 %s335, 1
        %s1008 = scalar_lea.vmem [#allocation18], %s1007
        %p1009 = pneg %p348
        %p1010 = pneg %p345
        %s1011 = sand.u32 %s50, 1
        %s1012 = scalar_lea.sflag [#allocation19], %s1011
        %s1013 = sand.u32 %s361, 1
        %s1014 = smul.addr %s1013, 256
        %s1015 = scalar_lea.vmem [#allocation20], %s1014
        %p1016 = pneg %p374
        %p1017 = pneg %p371
        %p1018 = scmp.lt.s32.totalorder %s50, 1
        %s1019 = scalar_select %p1018, %s50, 1
        %s1020 = smul.addr %s1019, 4
        %s1021 = scalar_lea.vmem %s14, %s1020
        %p1022 = pneg %p400
        %p1023 = pneg %p397
        %s1024 = sand.u32 %s413, 1
        %s1025 = scalar_lea.sflag [#allocation22], %s1024
        %s1026 = sand.u32 %s413, 1
        %s1027 = smul.addr %s1026, 256
        %s1028 = scalar_lea.vmem [#allocation21], %s1027
        %p1029 = pneg %p426
        %p1030 = pneg %p423
        %p1031 = scmp.lt.s32.totalorder %s50, 1
        %s1032 = scalar_select %p1031, %s50, 1
        %s1033 = scalar_lea.vmem %s16, %s1032
        %p1034 = pneg %p452
        %p1035 = pneg %p449
        %p1036 = scmp.lt.s32.totalorder %s50, 1
        %s1037 = scalar_select %p1036, %s50, 1
        %s1038 = scalar_lea.vmem %s17, %s1037
        %p1039 = pneg %p478
        %p1040 = pneg %p475
        %p1041 = scmp.lt.s32.totalorder %s50, 1
        %s1042 = scalar_select %p1041, %s50, 1
        %s1043 = scalar_lea.vmem %s18, %s1042
        %p1044 = pneg %p504
        %p1045 = pneg %p501
        %p1046 = pneg %p525
        %p1047 = pneg %p522
        %p1048 = pneg %p546
        %p1049 = pneg %p543
        %p1050 = pneg %p567
        %p1051 = pneg %p564
        %p1052 = pneg %p588
        %p1053 = pneg %p585
        %p1054 = pneg %p609
        %p1055 = pneg %p606
        %p1056 = scmp.lt.s32.totalorder %s50, 1
        %s1057 = scalar_select %p1056, %s50, 1
        %s1058 = smul.addr %s1057, 16
        %s1059 = smul.addr %s1058, 4
        %s1060 = scalar_lea.vmem %s9, %s1059
        %p1061 = scmp.lt.s32.totalorder %s50, 1
        %s1062 = scalar_select %p1061, %s50, 1
        %s1063 = smul.addr %s1062, 4
        %s1064 = scalar_lea.vmem %s14, %s1063
        %p1065 = scmp.lt.s32.totalorder %s50, 1
        %s1066 = scalar_select %p1065, %s50, 1
        %s1067 = scalar_lea.vmem %s16, %s1066
        %p1068 = scmp.lt.s32.totalorder %s50, 1
        %s1069 = scalar_select %p1068, %s50, 1
        %s1070 = scalar_lea.vmem %s17, %s1069
        %p1071 = scmp.lt.s32.totalorder %s50, 1
        %s1072 = scalar_select %p1071, %s50, 1
        %s1073 = scalar_lea.vmem %s18, %s1072
        %p1075 = scmp.eq.s32.totalorder %s50, 0
        // Predicated region
        $region161: #{tpu_custom_call.1} parent=111 // pred_check
          %p1076 = pneg %p1075
        $region162: #{tpu_custom_call.1} parent=111 // pred_check_branch
          %1078 = sbr.rel (%p1076) target = $region164
        $region163: #{tpu_custom_call.1} parent=111 // pred_region
          %v1079 = vld [vmem:[%s0] sm:$0xff]
          %v1080 = vld [vmem:[%s0 + $0x8] sm:$0xff]
          %v1081 = vlaneseq
          %v1082 = vand.u32 %v1081, 127
          %1083 = vset.pattern.permute.xlu0 0
          %1084 = vperm.xlu0 %1083, %v1079
          %v1085 = vpop.permute.xlu0 %1084
          %1086 = vset.pattern.permute.xlu0 0
          %1087 = vperm.xlu0 %1086, %v1080
          %v1088 = vpop.permute.xlu0 %1087
          %vm1089 = vcmp.eq.s32.totalorder %v1082, %v1085
          %vm1090 = vcmp.eq.s32.totalorder %v1082, %v1088
          %v1091 = vsel %vm1089, 1, 0
          %v1092 = vsel %vm1090, 1, 0
          %v1093 = vcvt.s32.f32 %v1091
          %v1094 = vcvt.s32.f32 %v1092
          %v1095 = vld [vmem:[#allocation6] sm:$0xff]
          %v1096 = vld [vmem:[#allocation6 + $0x8] sm:$0xff]
          %v1097 = vld [vmem:[#allocation6 + $0x10] sm:$0xff]
          %v1098 = vld [vmem:[#allocation6 + $0x18] sm:$0xff]
          %v1099 = vld [vmem:[#allocation6 + $0x20] sm:$0xff]
          %v1100 = vld [vmem:[#allocation6 + $0x28] sm:$0xff]
          %v1101 = vld [vmem:[#allocation6 + $0x30] sm:$0xff]
          %v1102 = vld [vmem:[#allocation6 + $0x38] sm:$0xff]
          %v1103 = vld [vmem:[#allocation6 + $0x40] sm:$0xff]
          %v1104 = vld [vmem:[#allocation6 + $0x48] sm:$0xff]
          %v1105 = vld [vmem:[#allocation6 + $0x50] sm:$0xff]
          %v1106 = vld [vmem:[#allocation6 + $0x58] sm:$0xff]
          %v1107 = vld [vmem:[#allocation6 + $0x60] sm:$0xf]
          %v1108 = vlaneseq
          %v1109 = vshrl.u32 %v1108, 7
          %v1110 = vadd.s32 %v1109, 8
          %vm1111 = vcmp.lt.s32.totalorder %v1109, 0
          %v1112 = vsub.s32 0, %v1109
          %v1113 = vsel %vm1111, %v1112, %v1109
          %v1114 = vshrl.u32 %v1113, 3
          %v1115 = vand.u32 %v1113, 7
          %v1116 = vsub.s32 0, %v1115
          %v1117 = vsel %vm1111, %v1116, %v1115
          %vm1118 = vcmp.lt.s32.totalorder %v1110, 0
          %v1119 = vsub.s32 0, %v1110
          %v1120 = vsel %vm1118, %v1119, %v1110
          %v1121 = vshrl.u32 %v1120, 3
          %v1122 = vand.u32 %v1120, 7
          %v1123 = vsub.s32 0, %v1122
          %v1124 = vsel %vm1118, %v1123, %v1122
          %vm1125 = vcmp.ne.s32.totalorder %v1117, 0
          %vm1126 = vcmp.ne.s32.totalorder %v1124, 0
          %vm1127 = vcmp.lt.s32.totalorder %v1117, 0
          %vm1128 = vcmp.lt.s32.totalorder %v1124, 0
          %vm1129 = vmand %vm1127, %vm1125
          %vm1130 = vmand %vm1128, %vm1126
          %v1131 = vadd.s32 %v1117, 8
          %v1132 = vadd.s32 %v1124, 8
          %v1133 = vsel %vm1129, %v1131, %v1117
          %v1134 = vsel %vm1130, %v1132, %v1124
          %vm1135 = vcmp.eq.s32.totalorder %v1133, %v1082
          %vm1136 = vcmp.eq.s32.totalorder %v1134, %v1082
          %v1137 = vsel %vm1135, 1, 0
          %v1138 = vsel %vm1136, 1, 0
          %v1139 = vcvt.s32.f32 %v1137
          %v1140 = vcvt.s32.f32 %v1138
          %v1141 = vld [vmem:[#allocation8] sm:$0xff]
          %v1142 = vld [vmem:[#allocation8 + $0x8] sm:$0xff]
          %v1143 = vld [vmem:[#allocation8 + $0x10] sm:$0xff]
          %v1144 = vld [vmem:[#allocation8 + $0x18] sm:$0xff]
          %vm1145 = vcmask 261120
          %v1147 = vsel %vm1145, %v1139, 0
          %v1150 = vsel %vm1145, %v1140, 0
          %1152 = vmatprep.subr.mxu0 0.0
          %1153 = vmatpush1.msra.mxu0 %v1141
          %1154 = vmatprep.subr.mxu0 0.0
          %1155 = vmatpush1.msra.mxu0 %v1142
          %1156 = vmatprep.subr.mxu0 0.0
          %1157 = vmatpush1.msra.mxu0 %v1143
          %1158 = vmatprep.subr.mxu0 0.0
          %1159 = vmatpush1.msra.mxu0 %v1144
          %1160 = vmatprep.subr.mxu0 0.0
          %1161 = vmatpush1.msra.mxu0 0.0
          %1162 = vmatprep.subr.mxu0 0.0
          %1163 = vmatpush1.msra.mxu0 0.0
          %1164 = vmatprep.subr.mxu0 0.0
          %1165 = vmatpush1.msra.mxu0 0.0
          %1166 = vmatprep.subr.mxu0 0.0
          %1167 = vmatpush1.msra.mxu0 0.0
          %1168 = vmatprep.subr.mxu0 0.0
          %1169 = vmatpush1.msra.mxu0 0.0
          %1170 = vmatprep.subr.mxu0 0.0
          %1171 = vmatpush1.msra.mxu0 0.0
          %1172 = vmatprep.subr.mxu0 0.0
          %1173 = vmatpush1.msra.mxu0 0.0
          %1174 = vmatprep.subr.mxu0 0.0
          %1175 = vmatpush1.msra.mxu0 0.0
          %1176 = vmatprep.subr.mxu0 0.0
          %1177 = vmatpush1.msra.mxu0 0.0
          %1178 = vmatprep.subr.mxu0 0.0
          %1179 = vmatpush1.msra.mxu0 0.0
          %1180 = vmatprep.subr.mxu0 0.0
          %1181 = vmatpush1.msra.mxu0 0.0
          %1182 = vmatprep.subr.mxu0 0.0
          %1183 = vmatpush1.msra.mxu0 0.0
          %1184 = vmatprep.subr.mxu0 0.0
          %1185 = vmatpush1.msra.mxu0 0.0
          %1186 = vmatprep.subr.mxu0 0.0
          %1187 = vmatpush1.msra.mxu0 0.0
          %1188 = vmatprep.subr.mxu0 0.0
          %1189 = vmatpush1.msra.mxu0 0.0
          %1190 = vmatprep.subr.mxu0 0.0
          %1191 = vmatpush1.msra.mxu0 0.0
          %1192 = vmatprep.subr.mxu0 0.0
          %1193 = vmatpush1.msra.mxu0 0.0
          %1194 = vmatprep.subr.mxu0 0.0
          %1195 = vmatpush1.msra.mxu0 0.0
          %1196 = vmatprep.subr.mxu0 0.0
          %1197 = vmatpush1.msra.mxu0 0.0
          %1198 = vmatprep.subr.mxu0 0.0
          %1199 = vmatpush1.msra.mxu0 0.0
          %1200 = vmatprep.subr.mxu0 0.0
          %1201 = vmatpush1.msra.mxu0 0.0
          %1202 = vmatprep.subr.mxu0 0.0
          %1203 = vmatpush1.msra.mxu0 0.0
          %1204 = vmatprep.subr.mxu0 0.0
          %1205 = vmatpush1.msra.mxu0 0.0
          %1206 = vmatprep.subr.mxu0 0.0
          %1207 = vmatpush1.msra.mxu0 0.0
          %1208 = vmatprep.subr.mxu0 0.0
          %1209 = vmatpush1.msra.mxu0 0.0
          %1210 = vmatprep.subr.mxu0 0.0
          %1211 = vmatpush1.msra.mxu0 0.0
          %1212 = vmatprep.subr.mxu0 0.0
          %1213 = vmatpush1.msra.mxu0 0.0
          %1214 = vmatprep.subr.mxu0 0.0
          %1215 = vmatpush1.msra.mxu0 0.0
          %1216 = vmatprep.mubr.f32.mxu0 0.0
          %1217 = vmatmul.mubr.f32.gmra.mrb[0].mxu0 %v1147
          %v1218 = vpop.f32.mrb[0].mxu0
          %v1219 = vadd.f32 0.0, %v1218
          %v1220 = vpop.f32.mrb[0].mxu0
          %1221 = vmatprep.mubr.f32.mxu0 0.0
          %1222 = vmatmul.mubr.f32.gmra.mrb[0].mxu0 %v1150
          %v1223 = vpop.f32.mrb[0].mxu0
          %v1224 = vadd.f32 0.0, %v1223
          %v1225 = vpop.f32.mrb[0].mxu0
          %1226 = vdwg.mxu0
          %vm1227 = vcmask 818176
          %v1229 = vsel %vm1227, %v1093, 0
          %v1232 = vsel %vm1227, %v1094, 0
          %vm1234 = vcmask 1043456
          %v1236 = vsel %vm1234, %v1107, 0
          %1238 = vmatprep.subr.mxu0 0.0
          %1239 = vmatpush1.msra.mxu0 %v1095
          %1240 = vmatprep.subr.mxu0 0.0
          %1241 = vmatpush1.msra.mxu0 %v1096
          %1242 = vmatprep.subr.mxu0 0.0
          %1243 = vmatpush1.msra.mxu0 %v1097
          %1244 = vmatprep.subr.mxu0 0.0
          %1245 = vmatpush1.msra.mxu0 %v1098
          %1246 = vmatprep.subr.mxu0 0.0
          %1247 = vmatpush1.msra.mxu0 %v1099
          %1248 = vmatprep.subr.mxu0 0.0
          %1249 = vmatpush1.msra.mxu0 %v1100
          %1250 = vmatprep.subr.mxu0 0.0
          %1251 = vmatpush1.msra.mxu0 %v1101
          %1252 = vmatprep.subr.mxu0 0.0
          %1253 = vmatpush1.msra.mxu0 %v1102
          %1254 = vmatprep.subr.mxu0 0.0
          %1255 = vmatpush1.msra.mxu0 %v1103
          %1256 = vmatprep.subr.mxu0 0.0
          %1257 = vmatpush1.msra.mxu0 %v1104
          %1258 = vmatprep.subr.mxu0 0.0
          %1259 = vmatpush1.msra.mxu0 %v1105
          %1260 = vmatprep.subr.mxu0 0.0
          %1261 = vmatpush1.msra.mxu0 %v1106
          %1262 = vmatprep.subr.mxu0 0.0
          %1263 = vmatpush1.msra.mxu0 %v1236
          %1264 = vmatprep.subr.mxu0 0.0
          %1265 = vmatpush1.msra.mxu0 0.0
          %1266 = vmatprep.subr.mxu0 0.0
          %1267 = vmatpush1.msra.mxu0 0.0
          %1268 = vmatprep.subr.mxu0 0.0
          %1269 = vmatpush1.msra.mxu0 0.0
          %1270 = vmatprep.subr.mxu0 0.0
          %1271 = vmatpush1.msra.mxu0 0.0
          %1272 = vmatprep.subr.mxu0 0.0
          %1273 = vmatpush1.msra.mxu0 0.0
          %1274 = vmatprep.subr.mxu0 0.0
          %1275 = vmatpush1.msra.mxu0 0.0
          %1276 = vmatprep.subr.mxu0 0.0
          %1277 = vmatpush1.msra.mxu0 0.0
          %1278 = vmatprep.subr.mxu0 0.0
          %1279 = vmatpush1.msra.mxu0 0.0
          %1280 = vmatprep.subr.mxu0 0.0
          %1281 = vmatpush1.msra.mxu0 0.0
          %1282 = vmatprep.subr.mxu0 0.0
          %1283 = vmatpush1.msra.mxu0 0.0
          %1284 = vmatprep.subr.mxu0 0.0
          %1285 = vmatpush1.msra.mxu0 0.0
          %1286 = vmatprep.subr.mxu0 0.0
          %1287 = vmatpush1.msra.mxu0 0.0
          %1288 = vmatprep.subr.mxu0 0.0
          %1289 = vmatpush1.msra.mxu0 0.0
          %1290 = vmatprep.subr.mxu0 0.0
          %1291 = vmatpush1.msra.mxu0 0.0
          %1292 = vmatprep.subr.mxu0 0.0
          %1293 = vmatpush1.msra.mxu0 0.0
          %1294 = vmatprep.subr.mxu0 0.0
          %1295 = vmatpush1.msra.mxu0 0.0
          %1296 = vmatprep.subr.mxu0 0.0
          %1297 = vmatpush1.msra.mxu0 0.0
          %1298 = vmatprep.subr.mxu0 0.0
          %1299 = vmatpush1.msra.mxu0 0.0
          %1300 = vmatprep.subr.mxu0 0.0
          %1301 = vmatpush1.msra.mxu0 0.0
          %1302 = vmatprep.mubr.f32.mxu0 0.0
          %1303 = vmatmul.mubr.f32.gmra.mrb[0].mxu0 %v1229
          %v1304 = vpop.f32.mrb[0].mxu0
          %v1305 = vadd.f32 %v1219, %v1304
          %v1306 = vpop.f32.mrb[0].mxu0
          %1307 = vmatprep.mubr.f32.mxu0 0.0
          %1308 = vmatmul.mubr.f32.gmra.mrb[0].mxu0 %v1232
          %v1309 = vpop.f32.mrb[0].mxu0
          %v1310 = vadd.f32 %v1224, %v1309
          %v1311 = vpop.f32.mrb[0].mxu0
          %1312 = vdwg.mxu0
          %v1313 = vld [vmem:[#allocation9] sm:$0x1]
          %v1314 = vlaneseq
          %v1315 = vshrl.u32 %v1314, 7
          %v1316 = vsub.s32 0, %v1315
          %v1317 = vrot.slane %v1313, %v1316
          %v1318 = vadd.f32 %v1305, %v1317
          %v1319 = vadd.f32 %v1310, %v1317
          %v1320 = vld [vmem:[%s5] sm:$0x1]
          %v1321 = vld [vmem:[#allocation11] sm:$0x1]
          %1322 = vadd.xlane.f32.xlu0 %v1318
          %v1323 = vpop.xlane.xlu0 %1322
          %1324 = vadd.xlane.f32.xlu0 %v1319
          %v1325 = vpop.xlane.xlu0 %1324
          %v1326 = vrcp.pop 128.0
          %v1327 = vmul.f32 %v1323, %v1326
          %v1328 = vmul.f32 %v1325, %v1326
          %v1329 = vsub.f32 %v1318, %v1327
          %v1330 = vsub.f32 %v1319, %v1328
          %v1331 = vmul.f32 %v1329, %v1329
          %v1332 = vmul.f32 %v1330, %v1330
          %1333 = vadd.xlane.f32.xlu0 %v1331
          %v1334 = vpop.xlane.xlu0 %1333
          %1335 = vadd.xlane.f32.xlu0 %v1332
          %v1336 = vpop.xlane.xlu0 %1335
          %v1337 = vmul.f32 %v1334, %v1326
          %v1338 = vmul.f32 %v1336, %v1326
          %v1339 = vadd.f32 %v1337, 1e-12
          %v1340 = vadd.f32 %v1338, 1e-12
          %v1341 = vrsqrt.pop %v1339
          %v1342 = vrsqrt.pop %v1340
          %v1343 = vmul.f32 %v1329, %v1341
          %v1344 = vmul.f32 %v1330, %v1342
          %v1346 = vlaneseq
          %v1347 = vshrl.u32 %v1346, 7
          %v1348 = vsub.s32 0, %v1347
          %v1349 = vrot.slane %v1320, %v1348
          %v1351 = vmul.f32 %v1343, %v1349
          %v1352 = vmul.f32 %v1344, %v1349
          %v1354 = vlaneseq
          %v1355 = vshrl.u32 %v1354, 7
          %v1356 = vsub.s32 0, %v1355
          %v1357 = vrot.slane %v1321, %v1356
          %v1359 = vadd.f32 %v1351, %v1357
          %v1360 = vadd.f32 %v1352, %v1357
          %1361 = vst [vmem:[#allocation2] sm:$0xff] %v1359
          %1362 = vst [vmem:[#allocation2 + $0x8] sm:$0xff] %v1360
        $region164: #{tpu_custom_call.1} parent=111 // pred_fallthru
          _
        %v1363 = vld [vmem:[#allocation3] sm:$0x3]
        %v1364 = vsub.f32 1.0, %v1363
        %v1365 = vmul.f32 %v1364, -10000.0
        %v1366 = vld [vmem:[#allocation2] sm:$0xff]
        %v1367 = vld [vmem:[#allocation2 + $0x8] sm:$0xff]
        %v1368 = vpack.c.bf16 %v1367, %v1366
        %v1369 = vld [vmem:[%s902] sm:$0xff]
        %v1370 = vld [vmem:[%s902 + $0x8] sm:$0xf]
        %v1371 = vld [vmem:[%s902 + $0xc] sm:$0xff]
        %v1372 = vld [vmem:[%s902 + $0x14] sm:$0xf]
        %v1373 = vld [vmem:[%s902 + $0x18] sm:$0xff]
        %v1374 = vld [vmem:[%s902 + $0x20] sm:$0xf]
        %v1375 = vld [vmem:[%s902 + $0x24] sm:$0xff]
        %v1376 = vld [vmem:[%s902 + $0x2c] sm:$0xf]
        %v1377 = vld [vmem:[%s902 + $0x30] sm:$0xff]
        %v1378 = vld [vmem:[%s902 + $0x38] sm:$0xf]
        %v1379 = vld [vmem:[%s902 + $0x3c] sm:$0xff]
        %v1380 = vld [vmem:[%s902 + $0x44] sm:$0xf]
        %v1381 = vld [vmem:[%s902 + $0x48] sm:$0xff]
        %v1382 = vld [vmem:[%s902 + $0x50] sm:$0xf]
        %v1383 = vld [vmem:[%s902 + $0x54] sm:$0xff]
        %v1384 = vld [vmem:[%s902 + $0x5c] sm:$0xf]
        %v1385 = vld [vmem:[%s902 + $0x60] sm:$0xff]
        %v1386 = vld [vmem:[%s902 + $0x68] sm:$0xf]
        %v1387 = vld [vmem:[%s902 + $0x6c] sm:$0xff]
        %v1388 = vld [vmem:[%s902 + $0x74] sm:$0xf]
        %v1389 = vld [vmem:[%s902 + $0x78] sm:$0xff]
        %v1390 = vld [vmem:[%s902 + $0x80] sm:$0xf]
        %v1391 = vld [vmem:[%s902 + $0x84] sm:$0xff]
        %v1392 = vld [vmem:[%s902 + $0x8c] sm:$0xf]
        %v1393 = vld [vmem:[%s902 + $0x90] sm:$0xff]
        %v1394 = vld [vmem:[%s902 + $0x98] sm:$0xf]
        %v1395 = vld [vmem:[%s902 + $0x9c] sm:$0xff]
        %v1396 = vld [vmem:[%s902 + $0xa4] sm:$0xf]
        %v1397 = vld [vmem:[%s902 + $0xa8] sm:$0xff]
        %v1398 = vld [vmem:[%s902 + $0xb0] sm:$0xf]
        %v1399 = vld [vmem:[%s902 + $0xb4] sm:$0xff]
        %v1400 = vld [vmem:[%s902 + $0xbc] sm:$0xf]
        %v1401 = vld [vmem:[%s911] sm:$0x7]
        %v1403 = vlaneseq
        %v1404 = vshrl.u32 %v1403, 7
        %v1405 = vsub.s32 0, %v1404
        %v1406 = vrot.slane %v1401, %v1405
        %v1407 = vlaneseq
        %v1408 = vshrl.u32 %v1407, 7
        %v1409 = vsub.s32 1, %v1408
        %v1410 = vrot.slane %v1401, %v1409
        %v1411 = vlaneseq
        %v1412 = vshrl.u32 %v1411, 7
        %v1413 = vsub.s32 2, %v1412
        %v1414 = vrot.slane %v1401, %v1413
        %v1450 = vunpack.c.l.b16 %v1369
        %v1451 = vunpack.c.h.b16 %v1369
        %v1452 = vunpack.c.l.b16 %v1370
        %v1453 = vunpack.c.l.b16 %v1371
        %v1454 = vunpack.c.h.b16 %v1371
        %v1455 = vunpack.c.l.b16 %v1372
        %v1456 = vunpack.c.l.b16 %v1373
        %v1457 = vunpack.c.h.b16 %v1373
        %v1458 = vunpack.c.l.b16 %v1374
        %v1459 = vunpack.c.l.b16 %v1375
        %v1460 = vunpack.c.h.b16 %v1375
        %v1461 = vunpack.c.l.b16 %v1376
        %v1462 = vunpack.c.l.b16 %v1377
        %v1463 = vunpack.c.h.b16 %v1377
        %v1464 = vunpack.c.l.b16 %v1378
        %v1465 = vunpack.c.l.b16 %v1379
        %v1466 = vunpack.c.h.b16 %v1379
        %v1467 = vunpack.c.l.b16 %v1380
        %v1468 = vunpack.c.l.b16 %v1381
        %v1469 = vunpack.c.h.b16 %v1381
        %v1470 = vunpack.c.l.b16 %v1382
        %v1471 = vunpack.c.l.b16 %v1383
        %v1472 = vunpack.c.h.b16 %v1383
        %v1473 = vunpack.c.l.b16 %v1384
        %v1474 = vunpack.c.l.b16 %v1385
        %v1475 = vunpack.c.h.b16 %v1385
        %v1476 = vunpack.c.l.b16 %v1386
        %v1477 = vunpack.c.l.b16 %v1387
        %v1478 = vunpack.c.h.b16 %v1387
        %v1479 = vunpack.c.l.b16 %v1388
        %v1480 = vunpack.c.l.b16 %v1389
        %v1481 = vunpack.c.h.b16 %v1389
        %v1482 = vunpack.c.l.b16 %v1390
        %v1483 = vunpack.c.l.b16 %v1391
        %v1484 = vunpack.c.h.b16 %v1391
        %v1485 = vunpack.c.l.b16 %v1392
        %v1486 = vunpack.c.l.b16 %v1393
        %v1487 = vunpack.c.h.b16 %v1393
        %v1488 = vunpack.c.l.b16 %v1394
        %v1489 = vunpack.c.l.b16 %v1395
        %v1490 = vunpack.c.h.b16 %v1395
        %v1491 = vunpack.c.l.b16 %v1396
        %v1492 = vunpack.c.l.b16 %v1397
        %v1493 = vunpack.c.h.b16 %v1397
        %v1494 = vunpack.c.l.b16 %v1398
        %v1495 = vunpack.c.l.b16 %v1399
        %v1496 = vunpack.c.h.b16 %v1399
        %v1497 = vunpack.c.l.b16 %v1400
        %v1498 = vpack.c.b16 %v1453, %v1450
        %v1499 = vpack.c.b16 %v1454, %v1451
        %v1500 = vpack.c.b16 %v1455, %v1452
        %v1501 = vpack.c.b16 %v1459, %v1456
        %v1502 = vpack.c.b16 %v1460, %v1457
        %v1503 = vpack.c.b16 %v1461, %v1458
        %v1504 = vpack.c.b16 %v1465, %v1462
        %v1505 = vpack.c.b16 %v1466, %v1463
        %v1506 = vpack.c.b16 %v1467, %v1464
        %v1507 = vpack.c.b16 %v1471, %v1468
        %v1508 = vpack.c.b16 %v1472, %v1469
        %v1509 = vpack.c.b16 %v1473, %v1470
        %v1510 = vpack.c.b16 %v1477, %v1474
        %v1511 = vpack.c.b16 %v1478, %v1475
        %v1512 = vpack.c.b16 %v1479, %v1476
        %v1513 = vpack.c.b16 %v1483, %v1480
        %v1514 = vpack.c.b16 %v1484, %v1481
        %v1515 = vpack.c.b16 %v1485, %v1482
        %v1516 = vpack.c.b16 %v1489, %v1486
        %v1517 = vpack.c.b16 %v1490, %v1487
        %v1518 = vpack.c.b16 %v1491, %v1488
        %v1519 = vpack.c.b16 %v1495, %v1492
        %v1520 = vpack.c.b16 %v1496, %v1493
        %v1521 = vpack.c.b16 %v1497, %v1494
        %1546 = vmatprep.subr.bf16.mxu0 %v1499
        %1547 = vmatpush1.bf16.msra.mxu0 %v1498
        %1548 = vmatprep.subr.bf16.mxu0 %v1502
        %1549 = vmatpush1.bf16.msra.mxu0 %v1501
        %1550 = vmatprep.subr.bf16.mxu0 %v1505
        %1551 = vmatpush1.bf16.msra.mxu0 %v1504
        %1552 = vmatprep.subr.bf16.mxu0 %v1508
        %1553 = vmatpush1.bf16.msra.mxu0 %v1507
        %1554 = vmatprep.subr.bf16.mxu0 %v1511
        %1555 = vmatpush1.bf16.msra.mxu0 %v1510
        %1556 = vmatprep.subr.bf16.mxu0 %v1514
        %1557 = vmatpush1.bf16.msra.mxu0 %v1513
        %1558 = vmatprep.subr.bf16.mxu0 %v1517
        %1559 = vmatpush1.bf16.msra.mxu0 %v1516
        %1560 = vmatprep.subr.bf16.mxu0 %v1520
        %1561 = vmatpush1.bf16.msra.mxu0 %v1519
        %1562 = vmatprep.subr.bf16.mxu0 0
        %1563 = vmatpush1.bf16.msra.mxu0 0
        %1564 = vmatprep.subr.bf16.mxu0 0
        %1565 = vmatpush1.bf16.msra.mxu0 0
        %1566 = vmatprep.subr.bf16.mxu0 0
        %1567 = vmatpush1.bf16.msra.mxu0 0
        %1568 = vmatprep.subr.bf16.mxu0 0
        %1569 = vmatpush1.bf16.msra.mxu0 0
        %1570 = vmatprep.subr.bf16.mxu0 0
        %1571 = vmatpush1.bf16.msra.mxu0 0
        %1572 = vmatprep.subr.bf16.mxu0 0
        %1573 = vmatpush1.bf16.msra.mxu0 0
        %1574 = vmatprep.subr.bf16.mxu0 0
        %1575 = vmatpush1.bf16.msra.mxu0 0
        %1576 = vmatprep.subr.bf16.mxu0 0
        %1577 = vmatpush1.bf16.msra.mxu0 0
        %1578 = vmatprep.mubr.bf16.mxu0 0
        %1579 = vmatmul.mubr.bf16.gmra.mrb[0].mxu0 %v1368
        %v1580 = vpop.f32.mrb[0].mxu0
        %v1581 = vadd.f32 %v1406, %v1580
        %v1582 = vpop.f32.mrb[0].mxu0
        %v1583 = vadd.f32 %v1410, %v1582
        %v1584 = vpop.f32.mrb[0].mxu0
        %v1585 = vadd.f32 %v1406, %v1584
        %v1586 = vpop.f32.mrb[0].mxu0
        %v1587 = vadd.f32 %v1410, %v1586
        %1588 = vdwg.mxu0
        %1589 = vmatprep.subr.bf16.mxu0 0
        %1590 = vmatpush1.bf16.msra.mxu0 %v1500
        %1591 = vmatprep.subr.bf16.mxu0 0
        %1592 = vmatpush1.bf16.msra.mxu0 %v1503
        %1593 = vmatprep.subr.bf16.mxu0 0
        %1594 = vmatpush1.bf16.msra.mxu0 %v1506
        %1595 = vmatprep.subr.bf16.mxu0 0
        %1596 = vmatpush1.bf16.msra.mxu0 %v1509
        %1597 = vmatprep.subr.bf16.mxu0 0
        %1598 = vmatpush1.bf16.msra.mxu0 %v1512
        %1599 = vmatprep.subr.bf16.mxu0 0
        %1600 = vmatpush1.bf16.msra.mxu0 %v1515
        %1601 = vmatprep.subr.bf16.mxu0 0
        %1602 = vmatpush1.bf16.msra.mxu0 %v1518
        %1603 = vmatprep.subr.bf16.mxu0 0
        %1604 = vmatpush1.bf16.msra.mxu0 %v1521
        %1605 = vmatprep.subr.bf16.mxu0 0
        %1606 = vmatpush1.bf16.msra.mxu0 0
        %1607 = vmatprep.subr.bf16.mxu0 0
        %1608 = vmatpush1.bf16.msra.mxu0 0
        %1609 = vmatprep.subr.bf16.mxu0 0
        %1610 = vmatpush1.bf16.msra.mxu0 0
        %1611 = vmatprep.subr.bf16.mxu0 0
        %1612 = vmatpush1.bf16.msra.mxu0 0
        %1613 = vmatprep.subr.bf16.mxu0 0
        %1614 = vmatpush1.bf16.msra.mxu0 0
        %1615 = vmatprep.subr.bf16.mxu0 0
        %1616 = vmatpush1.bf16.msra.mxu0 0
        %1617 = vmatprep.subr.bf16.mxu0 0
        %1618 = vmatpush1.bf16.msra.mxu0 0
        %1619 = vmatprep.subr.bf16.mxu0 0
        %1620 = vmatpush1.bf16.msra.mxu0 0
        %1621 = vmatprep.mubr.bf16.mxu0 0
        %1622 = vmatmul.mubr.bf16.gmra.mrb[0].mxu0 %v1368
        %v1623 = vpop.f32.mrb[0].mxu0
        %v1624 = vadd.f32 %v1414, %v1623
        %v1625 = vpop.f32.mrb[0].mxu0
        %v1626 = vpop.f32.mrb[0].mxu0
        %v1627 = vadd.f32 %v1414, %v1626
        %v1628 = vpop.f32.mrb[0].mxu0
        %1629 = vdwg.mxu0
        %v1630 = vld [vmem:[%s1060] sm:$0xf]
        %v1631 = vld [vmem:[%s1060 + $0x4] sm:$0xf]
        %v1632 = vld [vmem:[%s1060 + $0x8] sm:$0xf]
        %v1633 = vld [vmem:[%s1060 + $0xc] sm:$0xf]
        %v1634 = vld [vmem:[%s1060 + $0x10] sm:$0xf]
        %v1635 = vld [vmem:[%s1060 + $0x14] sm:$0xf]
        %v1636 = vld [vmem:[%s1060 + $0x18] sm:$0xf]
        %v1637 = vld [vmem:[%s1060 + $0x1c] sm:$0xf]
        %v1638 = vld [vmem:[%s1060 + $0x20] sm:$0xf]
        %v1639 = vld [vmem:[%s1060 + $0x24] sm:$0xf]
        %v1640 = vld [vmem:[%s1060 + $0x28] sm:$0xf]
        %v1641 = vld [vmem:[%s1060 + $0x2c] sm:$0xf]
        %v1642 = vld [vmem:[%s1060 + $0x30] sm:$0xf]
        %v1643 = vld [vmem:[%s1060 + $0x34] sm:$0xf]
        %v1644 = vld [vmem:[%s1060 + $0x38] sm:$0xf]
        %v1645 = vld [vmem:[%s1060 + $0x3c] sm:$0xf]
        %v1646 = vld [vmem:[%s919] sm:$0x1]
        %vm1647 = vcmask 261120
        %v1649 = vsel %vm1647, %v1581, 0
        %v1652 = vsel %vm1647, %v1583, 0
        %1654 = vmatprep.subr.mxu0 0.0
        %1655 = vmatpush1.xpose.msra.mxu0 %v1652
        %1656 = vmatprep.subr.mxu0 0.0
        %1657 = vmatpush1.xpose.msra.mxu0 0.0
        %1658 = vmatprep.subr.mxu0 0.0
        %1659 = vmatpush1.xpose.msra.mxu0 0.0
        %1660 = vmatprep.subr.mxu0 0.0
        %1661 = vmatpush1.xpose.msra.mxu0 0.0
        %1662 = vmatprep.subr.mxu0 0.0
        %1663 = vmatpush1.xpose.msra.mxu0 0.0
        %1664 = vmatprep.subr.mxu0 0.0
        %1665 = vmatpush1.xpose.msra.mxu0 0.0
        %1666 = vmatprep.subr.mxu0 0.0
        %1667 = vmatpush1.xpose.msra.mxu0 0.0
        %1668 = vmatprep.subr.mxu0 0.0
        %1669 = vmatpush1.xpose.msra.mxu0 0.0
        %1670 = vmatprep.subr.mxu0 0.0
        %1671 = vmatpush1.xpose.msra.mxu0 0.0
        %1672 = vmatprep.subr.mxu0 0.0
        %1673 = vmatpush1.xpose.msra.mxu0 0.0
        %1674 = vmatprep.subr.mxu0 0.0
        %1675 = vmatpush1.xpose.msra.mxu0 0.0
        %1676 = vmatprep.subr.mxu0 0.0
        %1677 = vmatpush1.xpose.msra.mxu0 0.0
        %1678 = vmatprep.subr.mxu0 0.0
        %1679 = vmatpush1.xpose.msra.mxu0 0.0
        %1680 = vmatprep.subr.mxu0 0.0
        %1681 = vmatpush1.xpose.msra.mxu0 0.0
        %1682 = vmatprep.subr.mxu0 0.0
        %1683 = vmatpush1.xpose.msra.mxu0 0.0
        %1684 = vmatprep.subr.mxu0 0.0
        %1685 = vmatpush1.xpose.msra.mxu0 0.0
        %1686 = vmatprep.subr.mxu0 0.0
        %1687 = vmatpush1.xpose.msra.mxu0 0.0
        %1688 = vmatprep.subr.mxu0 0.0
        %1689 = vmatpush1.xpose.msra.mxu0 0.0
        %1690 = vmatprep.subr.mxu0 0.0
        %1691 = vmatpush1.xpose.msra.mxu0 0.0
        %1692 = vmatprep.subr.mxu0 0.0
        %1693 = vmatpush1.xpose.msra.mxu0 0.0
        %1694 = vmatprep.subr.mxu0 0.0
        %1695 = vmatpush1.xpose.msra.mxu0 0.0
        %1696 = vmatprep.subr.mxu0 0.0
        %1697 = vmatpush1.xpose.msra.mxu0 0.0
        %1698 = vmatprep.subr.mxu0 0.0
        %1699 = vmatpush1.xpose.msra.mxu0 0.0
        %1700 = vmatprep.subr.mxu0 0.0
        %1701 = vmatpush1.xpose.msra.mxu0 0.0
        %1702 = vmatprep.subr.mxu0 0.0
        %1703 = vmatpush1.xpose.msra.mxu0 0.0
        %1704 = vmatprep.subr.mxu0 0.0
        %1705 = vmatpush1.xpose.msra.mxu0 0.0
        %1706 = vmatprep.subr.mxu0 0.0
        %1707 = vmatpush1.xpose.msra.mxu0 0.0
        %1708 = vmatprep.subr.mxu0 0.0
        %1709 = vmatpush1.xpose.msra.mxu0 0.0
        %1710 = vmatprep.subr.mxu0 0.0
        %1711 = vmatpush1.xpose.msra.mxu0 0.0
        %1712 = vmatprep.subr.mxu0 0.0
        %1713 = vmatpush1.xpose.msra.mxu0 0.0
        %1714 = vmatprep.subr.mxu0 0.0
        %1715 = vmatpush1.xpose.msra.mxu0 0.0
        %1716 = vmatprep.subr.mxu0 0.0
        %1717 = vmatpush1.xpose.msra.mxu0 0.0
        %1718 = vmatprep.mubr.f32.mxu0 0.0
        %1719 = vmatmul.mubr.f32.gmra.mrb[0].mxu0 %v1649
        %v1720 = vpop.f32.mrb[0].mxu0
        %v1721 = vadd.f32 0.0, %v1720
        %v1722 = vpop.f32.mrb[0].mxu0
        %1723 = vdwg.mxu0
        %v1724 = vmul.f32 %v1721, 0.17677669
        %v1725 = vlaneseq
        %v1726 = vshrl.u32 %v1725, 7
        %v1727 = vsub.s32 0, %v1726
        %v1728 = vrot.slane %v1365, %v1727
        %v1729 = vadd.f32 %v1724, %v1728
        %vm1730 = vcmask 64512
        %v1731 = vsel %vm1730, %v1729, -inf
        %1732 = vmax.xlane.f32.xlu0 %v1731
        %v1733 = vpop.xlane.xlu0 %1732
        %v1734 = vsub.f32 %v1729, %v1733
        %v1735 = vmul.f32 %v1734, 1.442695
        %v1736 = vpow.pop %v1735
        %v1737 = vsel %vm1730, %v1736, 0.0
        %1738 = vadd.xlane.f32.xlu0 %v1737
        %v1739 = vpop.xlane.xlu0 %1738
        %v1740 = vrcp.pop %v1739
        %v1741 = vmul.f32 %v1736, %v1740
        %v1743 = vsel %vm1730, %v1741, 0
        %1745 = vmatprep.subr.mxu0 0.0
        %1746 = vmatpush1.msra.mxu0 %v1624
        %1747 = vmatprep.subr.mxu0 0.0
        %1748 = vmatpush1.msra.mxu0 0.0
        %1749 = vmatprep.subr.mxu0 0.0
        %1750 = vmatpush1.msra.mxu0 0.0
        %1751 = vmatprep.subr.mxu0 0.0
        %1752 = vmatpush1.msra.mxu0 0.0
        %1753 = vmatprep.subr.mxu0 0.0
        %1754 = vmatpush1.msra.mxu0 0.0
        %1755 = vmatprep.subr.mxu0 0.0
        %1756 = vmatpush1.msra.mxu0 0.0
        %1757 = vmatprep.subr.mxu0 0.0
        %1758 = vmatpush1.msra.mxu0 0.0
        %1759 = vmatprep.subr.mxu0 0.0
        %1760 = vmatpush1.msra.mxu0 0.0
        %1761 = vmatprep.subr.mxu0 0.0
        %1762 = vmatpush1.msra.mxu0 0.0
        %1763 = vmatprep.subr.mxu0 0.0
        %1764 = vmatpush1.msra.mxu0 0.0
        %1765 = vmatprep.subr.mxu0 0.0
        %1766 = vmatpush1.msra.mxu0 0.0
        %1767 = vmatprep.subr.mxu0 0.0
        %1768 = vmatpush1.msra.mxu0 0.0
        %1769 = vmatprep.subr.mxu0 0.0
        %1770 = vmatpush1.msra.mxu0 0.0
        %1771 = vmatprep.subr.mxu0 0.0
        %1772 = vmatpush1.msra.mxu0 0.0
        %1773 = vmatprep.subr.mxu0 0.0
        %1774 = vmatpush1.msra.mxu0 0.0
        %1775 = vmatprep.subr.mxu0 0.0
        %1776 = vmatpush1.msra.mxu0 0.0
        %1777 = vmatprep.subr.mxu0 0.0
        %1778 = vmatpush1.msra.mxu0 0.0
        %1779 = vmatprep.subr.mxu0 0.0
        %1780 = vmatpush1.msra.mxu0 0.0
        %1781 = vmatprep.subr.mxu0 0.0
        %1782 = vmatpush1.msra.mxu0 0.0
        %1783 = vmatprep.subr.mxu0 0.0
        %1784 = vmatpush1.msra.mxu0 0.0
        %1785 = vmatprep.subr.mxu0 0.0
        %1786 = vmatpush1.msra.mxu0 0.0
        %1787 = vmatprep.subr.mxu0 0.0
        %1788 = vmatpush1.msra.mxu0 0.0
        %1789 = vmatprep.subr.mxu0 0.0
        %1790 = vmatpush1.msra.mxu0 0.0
        %1791 = vmatprep.subr.mxu0 0.0
        %1792 = vmatpush1.msra.mxu0 0.0
        %1793 = vmatprep.subr.mxu0 0.0
        %1794 = vmatpush1.msra.mxu0 0.0
        %1795 = vmatprep.subr.mxu0 0.0
        %1796 = vmatpush1.msra.mxu0 0.0
        %1797 = vmatprep.subr.mxu0 0.0
        %1798 = vmatpush1.msra.mxu0 0.0
        %1799 = vmatprep.subr.mxu0 0.0
        %1800 = vmatpush1.msra.mxu0 0.0
        %1801 = vmatprep.subr.mxu0 0.0
        %1802 = vmatpush1.msra.mxu0 0.0
        %1803 = vmatprep.subr.mxu0 0.0
        %1804 = vmatpush1.msra.mxu0 0.0
        %1805 = vmatprep.subr.mxu0 0.0
        %1806 = vmatpush1.msra.mxu0 0.0
        %1807 = vmatprep.subr.mxu0 0.0
        %1808 = vmatpush1.msra.mxu0 0.0
        %1809 = vmatprep.mubr.f32.mxu0 0.0
        %1810 = vmatmul.mubr.f32.gmra.mrb[0].mxu0 %v1743
        %v1811 = vpop.f32.mrb[0].mxu0
        %v1812 = vadd.f32 0.0, %v1811
        %v1813 = vpop.f32.mrb[0].mxu0
        %1814 = vdwg.mxu0
        %v1815 = vpack.c.bf16 %v1812, %v1812
        %1816 = vrot.lane.b32.xlu0 %v1581, 96
        %v1817 = vpop.permute.xlu0 %1816
        %1818 = vrot.lane.b32.xlu0 %v1583, 96
        %v1819 = vpop.permute.xlu0 %1818
        %v1820 = vsel %vm1647, %v1817, 0
        %v1822 = vsel %vm1647, %v1819, 0
        %1824 = vmatprep.subr.mxu0 0.0
        %1825 = vmatpush1.xpose.msra.mxu0 %v1822
        %1826 = vmatprep.subr.mxu0 0.0
        %1827 = vmatpush1.xpose.msra.mxu0 0.0
        %1828 = vmatprep.subr.mxu0 0.0
        %1829 = vmatpush1.xpose.msra.mxu0 0.0
        %1830 = vmatprep.subr.mxu0 0.0
        %1831 = vmatpush1.xpose.msra.mxu0 0.0
        %1832 = vmatprep.subr.mxu0 0.0
        %1833 = vmatpush1.xpose.msra.mxu0 0.0
        %1834 = vmatprep.subr.mxu0 0.0
        %1835 = vmatpush1.xpose.msra.mxu0 0.0
        %1836 = vmatprep.subr.mxu0 0.0
        %1837 = vmatpush1.xpose.msra.mxu0 0.0
        %1838 = vmatprep.subr.mxu0 0.0
        %1839 = vmatpush1.xpose.msra.mxu0 0.0
        %1840 = vmatprep.subr.mxu0 0.0
        %1841 = vmatpush1.xpose.msra.mxu0 0.0
        %1842 = vmatprep.subr.mxu0 0.0
        %1843 = vmatpush1.xpose.msra.mxu0 0.0
        %1844 = vmatprep.subr.mxu0 0.0
        %1845 = vmatpush1.xpose.msra.mxu0 0.0
        %1846 = vmatprep.subr.mxu0 0.0
        %1847 = vmatpush1.xpose.msra.mxu0 0.0
        %1848 = vmatprep.subr.mxu0 0.0
        %1849 = vmatpush1.xpose.msra.mxu0 0.0
        %1850 = vmatprep.subr.mxu0 0.0
        %1851 = vmatpush1.xpose.msra.mxu0 0.0
        %1852 = vmatprep.subr.mxu0 0.0
        %1853 = vmatpush1.xpose.msra.mxu0 0.0
        %1854 = vmatprep.subr.mxu0 0.0
        %1855 = vmatpush1.xpose.msra.mxu0 0.0
        %1856 = vmatprep.subr.mxu0 0.0
        %1857 = vmatpush1.xpose.msra.mxu0 0.0
        %1858 = vmatprep.subr.mxu0 0.0
        %1859 = vmatpush1.xpose.msra.mxu0 0.0
        %1860 = vmatprep.subr.mxu0 0.0
        %1861 = vmatpush1.xpose.msra.mxu0 0.0
        %1862 = vmatprep.subr.mxu0 0.0
        %1863 = vmatpush1.xpose.msra.mxu0 0.0
        %1864 = vmatprep.subr.mxu0 0.0
        %1865 = vmatpush1.xpose.msra.mxu0 0.0
        %1866 = vmatprep.subr.mxu0 0.0
        %1867 = vmatpush1.xpose.msra.mxu0 0.0
        %1868 = vmatprep.subr.mxu0 0.0
        %1869 = vmatpush1.xpose.msra.mxu0 0.0
        %1870 = vmatprep.subr.mxu0 0.0
        %1871 = vmatpush1.xpose.msra.mxu0 0.0
        %1872 = vmatprep.subr.mxu0 0.0
        %1873 = vmatpush1.xpose.msra.mxu0 0.0
        %1874 = vmatprep.subr.mxu0 0.0
        %1875 = vmatpush1.xpose.msra.mxu0 0.0
        %1876 = vmatprep.subr.mxu0 0.0
        %1877 = vmatpush1.xpose.msra.mxu0 0.0
        %1878 = vmatprep.subr.mxu0 0.0
        %1879 = vmatpush1.xpose.msra.mxu0 0.0
        %1880 = vmatprep.subr.mxu0 0.0
        %1881 = vmatpush1.xpose.msra.mxu0 0.0
        %1882 = vmatprep.subr.mxu0 0.0
        %1883 = vmatpush1.xpose.msra.mxu0 0.0
        %1884 = vmatprep.subr.mxu0 0.0
        %1885 = vmatpush1.xpose.msra.mxu0 0.0
        %1886 = vmatprep.subr.mxu0 0.0
        %1887 = vmatpush1.xpose.msra.mxu0 0.0
        %1888 = vmatprep.mubr.f32.mxu0 0.0
        %1889 = vmatmul.mubr.f32.gmra.mrb[0].mxu0 %v1820
        %v1890 = vpop.f32.mrb[0].mxu0
        %v1891 = vadd.f32 0.0, %v1890
        %v1892 = vpop.f32.mrb[0].mxu0
        %1893 = vdwg.mxu0
        %v1894 = vmul.f32 %v1891, 0.17677669
        %v1895 = vadd.f32 %v1894, %v1728
        %v1896 = vsel %vm1730, %v1895, -inf
        %1897 = vmax.xlane.f32.xlu0 %v1896
        %v1898 = vpop.xlane.xlu0 %1897
        %v1899 = vsub.f32 %v1895, %v1898
        %v1900 = vmul.f32 %v1899, 1.442695
        %v1901 = vpow.pop %v1900
        %v1902 = vsel %vm1730, %v1901, 0.0
        %1903 = vadd.xlane.f32.xlu0 %v1902
        %v1904 = vpop.xlane.xlu0 %1903
        %v1905 = vrcp.pop %v1904
        %v1906 = vmul.f32 %v1901, %v1905
        %1908 = vrot.lane.b32.xlu0 %v1624, 96
        %v1909 = vpop.permute.xlu0 %1908
        %v1912 = vsel %vm1730, %v1906, 0
        %1914 = vmatprep.subr.mxu0 0.0
        %1915 = vmatpush1.msra.mxu0 %v1909
        %1916 = vmatprep.subr.mxu0 0.0
        %1917 = vmatpush1.msra.mxu0 0.0
        %1918 = vmatprep.subr.mxu0 0.0
        %1919 = vmatpush1.msra.mxu0 0.0
        %1920 = vmatprep.subr.mxu0 0.0
        %1921 = vmatpush1.msra.mxu0 0.0
        %1922 = vmatprep.subr.mxu0 0.0
        %1923 = vmatpush1.msra.mxu0 0.0
        %1924 = vmatprep.subr.mxu0 0.0
        %1925 = vmatpush1.msra.mxu0 0.0
        %1926 = vmatprep.subr.mxu0 0.0
        %1927 = vmatpush1.msra.mxu0 0.0
        %1928 = vmatprep.subr.mxu0 0.0
        %1929 = vmatpush1.msra.mxu0 0.0
        %1930 = vmatprep.subr.mxu0 0.0
        %1931 = vmatpush1.msra.mxu0 0.0
        %1932 = vmatprep.subr.mxu0 0.0
        %1933 = vmatpush1.msra.mxu0 0.0
        %1934 = vmatprep.subr.mxu0 0.0
        %1935 = vmatpush1.msra.mxu0 0.0
        %1936 = vmatprep.subr.mxu0 0.0
        %1937 = vmatpush1.msra.mxu0 0.0
        %1938 = vmatprep.subr.mxu0 0.0
        %1939 = vmatpush1.msra.mxu0 0.0
        %1940 = vmatprep.subr.mxu0 0.0
        %1941 = vmatpush1.msra.mxu0 0.0
        %1942 = vmatprep.subr.mxu0 0.0
        %1943 = vmatpush1.msra.mxu0 0.0
        %1944 = vmatprep.subr.mxu0 0.0
        %1945 = vmatpush1.msra.mxu0 0.0
        %1946 = vmatprep.subr.mxu0 0.0
        %1947 = vmatpush1.msra.mxu0 0.0
        %1948 = vmatprep.subr.mxu0 0.0
        %1949 = vmatpush1.msra.mxu0 0.0
        %1950 = vmatprep.subr.mxu0 0.0
        %1951 = vmatpush1.msra.mxu0 0.0
        %1952 = vmatprep.subr.mxu0 0.0
        %1953 = vmatpush1.msra.mxu0 0.0
        %1954 = vmatprep.subr.mxu0 0.0
        %1955 = vmatpush1.msra.mxu0 0.0
        %1956 = vmatprep.subr.mxu0 0.0
        %1957 = vmatpush1.msra.mxu0 0.0
        %1958 = vmatprep.subr.mxu0 0.0
        %1959 = vmatpush1.msra.mxu0 0.0
        %1960 = vmatprep.subr.mxu0 0.0
        %1961 = vmatpush1.msra.mxu0 0.0
        %1962 = vmatprep.subr.mxu0 0.0
        %1963 = vmatpush1.msra.mxu0 0.0
        %1964 = vmatprep.subr.mxu0 0.0
        %1965 = vmatpush1.msra.mxu0 0.0
        %1966 = vmatprep.subr.mxu0 0.0
        %1967 = vmatpush1.msra.mxu0 0.0
        %1968 = vmatprep.subr.mxu0 0.0
        %1969 = vmatpush1.msra.mxu0 0.0
        %1970 = vmatprep.subr.mxu0 0.0
        %1971 = vmatpush1.msra.mxu0 0.0
        %1972 = vmatprep.subr.mxu0 0.0
        %1973 = vmatpush1.msra.mxu0 0.0
        %1974 = vmatprep.subr.mxu0 0.0
        %1975 = vmatpush1.msra.mxu0 0.0
        %1976 = vmatprep.subr.mxu0 0.0
        %1977 = vmatpush1.msra.mxu0 0.0
        %1978 = vmatprep.mubr.f32.mxu0 0.0
        %1979 = vmatmul.mubr.f32.gmra.mrb[0].mxu0 %v1912
        %v1980 = vpop.f32.mrb[0].mxu0
        %v1981 = vadd.f32 0.0, %v1980
        %v1982 = vpop.f32.mrb[0].mxu0
        %1983 = vdwg.mxu0
        %v1984 = vpack.c.bf16 %v1981, %v1981
        %v1989 = vunpack.c.l.b16 %v1634
        %v1990 = vunpack.c.l.b16 %v1635
        %v1991 = vunpack.c.l.b16 %v1636
        %v1992 = vunpack.c.l.b16 %v1637
        %v1993 = vpack.c.b16 %v1990, %v1989
        %v1994 = vpack.c.b16 %v1992, %v1991
        %v1998 = vsel %vm1647, %v1984, 0
        %2000 = vmatprep.subr.bf16.mxu0 0
        %2001 = vmatpush1.bf16.msra.mxu0 %v1993
        %2002 = vmatprep.subr.bf16.mxu0 0
        %2003 = vmatpush1.bf16.msra.mxu0 %v1994
        %2004 = vmatprep.subr.bf16.mxu0 0
        %2005 = vmatpush1.bf16.msra.mxu0 0
        %2006 = vmatprep.subr.bf16.mxu0 0
        %2007 = vmatpush1.bf16.msra.mxu0 0
        %2008 = vmatprep.subr.bf16.mxu0 0
        %2009 = vmatpush1.bf16.msra.mxu0 0
        %2010 = vmatprep.subr.bf16.mxu0 0
        %2011 = vmatpush1.bf16.msra.mxu0 0
        %2012 = vmatprep.subr.bf16.mxu0 0
        %2013 = vmatpush1.bf16.msra.mxu0 0
        %2014 = vmatprep.subr.bf16.mxu0 0
        %2015 = vmatpush1.bf16.msra.mxu0 0
        %2016 = vmatprep.subr.bf16.mxu0 0
        %2017 = vmatpush1.bf16.msra.mxu0 0
        %2018 = vmatprep.subr.bf16.mxu0 0
        %2019 = vmatpush1.bf16.msra.mxu0 0
        %2020 = vmatprep.subr.bf16.mxu0 0
        %2021 = vmatpush1.bf16.msra.mxu0 0
        %2022 = vmatprep.subr.bf16.mxu0 0
        %2023 = vmatpush1.bf16.msra.mxu0 0
        %2024 = vmatprep.subr.bf16.mxu0 0
        %2025 = vmatpush1.bf16.msra.mxu0 0
        %2026 = vmatprep.subr.bf16.mxu0 0
        %2027 = vmatpush1.bf16.msra.mxu0 0
        %2028 = vmatprep.subr.bf16.mxu0 0
        %2029 = vmatpush1.bf16.msra.mxu0 0
        %2030 = vmatprep.subr.bf16.mxu0 0
        %2031 = vmatpush1.bf16.msra.mxu0 0
        %2032 = vmatprep.mubr.bf16.mxu0 0
        %2033 = vmatmul.mubr.bf16.gmra.mrb[0].mxu0 %v1998
        %v2034 = vpop.f32.mrb[0].mxu0
        %v2035 = vadd.f32 0.0, %v2034
        %v2036 = vpop.f32.mrb[0].mxu0
        %v2037 = vpop.f32.mrb[0].mxu0
        %v2038 = vpop.f32.mrb[0].mxu0
        %2039 = vdwg.mxu0
        %v2044 = vunpack.c.l.b16 %v1630
        %v2045 = vunpack.c.l.b16 %v1631
        %v2046 = vunpack.c.l.b16 %v1632
        %v2047 = vunpack.c.l.b16 %v1633
        %v2048 = vpack.c.b16 %v2045, %v2044
        %v2049 = vpack.c.b16 %v2047, %v2046
        %v2053 = vsel %vm1647, %v1815, 0
        %2055 = vmatprep.subr.bf16.mxu0 0
        %2056 = vmatpush1.bf16.msra.mxu0 %v2048
        %2057 = vmatprep.subr.bf16.mxu0 0
        %2058 = vmatpush1.bf16.msra.mxu0 %v2049
        %2059 = vmatprep.subr.bf16.mxu0 0
        %2060 = vmatpush1.bf16.msra.mxu0 0
        %2061 = vmatprep.subr.bf16.mxu0 0
        %2062 = vmatpush1.bf16.msra.mxu0 0
        %2063 = vmatprep.subr.bf16.mxu0 0
        %2064 = vmatpush1.bf16.msra.mxu0 0
        %2065 = vmatprep.subr.bf16.mxu0 0
        %2066 = vmatpush1.bf16.msra.mxu0 0
        %2067 = vmatprep.subr.bf16.mxu0 0
        %2068 = vmatpush1.bf16.msra.mxu0 0
        %2069 = vmatprep.subr.bf16.mxu0 0
        %2070 = vmatpush1.bf16.msra.mxu0 0
        %2071 = vmatprep.subr.bf16.mxu0 0
        %2072 = vmatpush1.bf16.msra.mxu0 0
        %2073 = vmatprep.subr.bf16.mxu0 0
        %2074 = vmatpush1.bf16.msra.mxu0 0
        %2075 = vmatprep.subr.bf16.mxu0 0
        %2076 = vmatpush1.bf16.msra.mxu0 0
        %2077 = vmatprep.subr.bf16.mxu0 0
        %2078 = vmatpush1.bf16.msra.mxu0 0
        %2079 = vmatprep.subr.bf16.mxu0 0
        %2080 = vmatpush1.bf16.msra.mxu0 0
        %2081 = vmatprep.subr.bf16.mxu0 0
        %2082 = vmatpush1.bf16.msra.mxu0 0
        %2083 = vmatprep.subr.bf16.mxu0 0
        %2084 = vmatpush1.bf16.msra.mxu0 0
        %2085 = vmatprep.subr.bf16.mxu0 0
        %2086 = vmatpush1.bf16.msra.mxu0 0
        %2087 = vmatprep.mubr.bf16.mxu0 0
        %2088 = vmatmul.mubr.bf16.gmra.mrb[0].mxu0 %v2053
        %v2089 = vpop.f32.mrb[0].mxu0
        %v2090 = vadd.f32 %v2035, %v2089
        %v2091 = vpop.f32.mrb[0].mxu0
        %v2092 = vpop.f32.mrb[0].mxu0
        %v2093 = vpop.f32.mrb[0].mxu0
        %2094 = vdwg.mxu0
        %2095 = vrot.lane.b32.xlu0 %v1581, 64
        %v2096 = vpop.permute.xlu0 %2095
        %2097 = vrot.lane.b32.xlu0 %v1583, 64
        %v2098 = vpop.permute.xlu0 %2097
        %v2099 = vsel %vm1647, %v2096, 0
        %v2101 = vsel %vm1647, %v2098, 0
        %2103 = vmatprep.subr.mxu0 0.0
        %2104 = vmatpush1.xpose.msra.mxu0 %v2101
        %2105 = vmatprep.subr.mxu0 0.0
        %2106 = vmatpush1.xpose.msra.mxu0 0.0
        %2107 = vmatprep.subr.mxu0 0.0
        %2108 = vmatpush1.xpose.msra.mxu0 0.0
        %2109 = vmatprep.subr.mxu0 0.0
        %2110 = vmatpush1.xpose.msra.mxu0 0.0
        %2111 = vmatprep.subr.mxu0 0.0
        %2112 = vmatpush1.xpose.msra.mxu0 0.0
        %2113 = vmatprep.subr.mxu0 0.0
        %2114 = vmatpush1.xpose.msra.mxu0 0.0
        %2115 = vmatprep.subr.mxu0 0.0
        %2116 = vmatpush1.xpose.msra.mxu0 0.0
        %2117 = vmatprep.subr.mxu0 0.0
        %2118 = vmatpush1.xpose.msra.mxu0 0.0
        %2119 = vmatprep.subr.mxu0 0.0
        %2120 = vmatpush1.xpose.msra.mxu0 0.0
        %2121 = vmatprep.subr.mxu0 0.0
        %2122 = vmatpush1.xpose.msra.mxu0 0.0
        %2123 = vmatprep.subr.mxu0 0.0
        %2124 = vmatpush1.xpose.msra.mxu0 0.0
        %2125 = vmatprep.subr.mxu0 0.0
        %2126 = vmatpush1.xpose.msra.mxu0 0.0
        %2127 = vmatprep.subr.mxu0 0.0
        %2128 = vmatpush1.xpose.msra.mxu0 0.0
        %2129 = vmatprep.subr.mxu0 0.0
        %2130 = vmatpush1.xpose.msra.mxu0 0.0
        %2131 = vmatprep.subr.mxu0 0.0
        %2132 = vmatpush1.xpose.msra.mxu0 0.0
        %2133 = vmatprep.subr.mxu0 0.0
        %2134 = vmatpush1.xpose.msra.mxu0 0.0
        %2135 = vmatprep.subr.mxu0 0.0
        %2136 = vmatpush1.xpose.msra.mxu0 0.0
        %2137 = vmatprep.subr.mxu0 0.0
        %2138 = vmatpush1.xpose.msra.mxu0 0.0
        %2139 = vmatprep.subr.mxu0 0.0
        %2140 = vmatpush1.xpose.msra.mxu0 0.0
        %2141 = vmatprep.subr.mxu0 0.0
        %2142 = vmatpush1.xpose.msra.mxu0 0.0
        %2143 = vmatprep.subr.mxu0 0.0
        %2144 = vmatpush1.xpose.msra.mxu0 0.0
        %2145 = vmatprep.subr.mxu0 0.0
        %2146 = vmatpush1.xpose.msra.mxu0 0.0
        %2147 = vmatprep.subr.mxu0 0.0
        %2148 = vmatpush1.xpose.msra.mxu0 0.0
        %2149 = vmatprep.subr.mxu0 0.0
        %2150 = vmatpush1.xpose.msra.mxu0 0.0
        %2151 = vmatprep.subr.mxu0 0.0
        %2152 = vmatpush1.xpose.msra.mxu0 0.0
        %2153 = vmatprep.subr.mxu0 0.0
        %2154 = vmatpush1.xpose.msra.mxu0 0.0
        %2155 = vmatprep.subr.mxu0 0.0
        %2156 = vmatpush1.xpose.msra.mxu0 0.0
        %2157 = vmatprep.subr.mxu0 0.0
        %2158 = vmatpush1.xpose.msra.mxu0 0.0
        %2159 = vmatprep.subr.mxu0 0.0
        %2160 = vmatpush1.xpose.msra.mxu0 0.0
        %2161 = vmatprep.subr.mxu0 0.0
        %2162 = vmatpush1.xpose.msra.mxu0 0.0
        %2163 = vmatprep.subr.mxu0 0.0
        %2164 = vmatpush1.xpose.msra.mxu0 0.0
        %2165 = vmatprep.subr.mxu0 0.0
        %2166 = vmatpush1.xpose.msra.mxu0 0.0
        %2167 = vmatprep.mubr.f32.mxu0 0.0
        %2168 = vmatmul.mubr.f32.gmra.mrb[0].mxu0 %v2099
        %v2169 = vpop.f32.mrb[0].mxu0
        %v2170 = vadd.f32 0.0, %v2169
        %v2171 = vpop.f32.mrb[0].mxu0
        %2172 = vdwg.mxu0
        %v2173 = vmul.f32 %v2170, 0.17677669
        %v2174 = vadd.f32 %v2173, %v1728
        %v2175 = vsel %vm1730, %v2174, -inf
        %2176 = vmax.xlane.f32.xlu0 %v2175
        %v2177 = vpop.xlane.xlu0 %2176
        %v2178 = vsub.f32 %v2174, %v2177
        %v2179 = vmul.f32 %v2178, 1.442695
        %v2180 = vpow.pop %v2179
        %v2181 = vsel %vm1730, %v2180, 0.0
        %2182 = vadd.xlane.f32.xlu0 %v2181
        %v2183 = vpop.xlane.xlu0 %2182
        %v2184 = vrcp.pop %v2183
        %v2185 = vmul.f32 %v2180, %v2184
        %2186 = vrot.lane.b32.xlu0 %v1624, 64
        %v2187 = vpop.permute.xlu0 %2186
        %v2190 = vsel %vm1730, %v2185, 0
        %2192 = vmatprep.subr.mxu0 0.0
        %2193 = vmatpush1.msra.mxu0 %v2187
        %2194 = vmatprep.subr.mxu0 0.0
        %2195 = vmatpush1.msra.mxu0 0.0
        %2196 = vmatprep.subr.mxu0 0.0
        %2197 = vmatpush1.msra.mxu0 0.0
        %2198 = vmatprep.subr.mxu0 0.0
        %2199 = vmatpush1.msra.mxu0 0.0
        %2200 = vmatprep.subr.mxu0 0.0
        %2201 = vmatpush1.msra.mxu0 0.0
        %2202 = vmatprep.subr.mxu0 0.0
        %2203 = vmatpush1.msra.mxu0 0.0
        %2204 = vmatprep.subr.mxu0 0.0
        %2205 = vmatpush1.msra.mxu0 0.0
        %2206 = vmatprep.subr.mxu0 0.0
        %2207 = vmatpush1.msra.mxu0 0.0
        %2208 = vmatprep.subr.mxu0 0.0
        %2209 = vmatpush1.msra.mxu0 0.0
        %2210 = vmatprep.subr.mxu0 0.0
        %2211 = vmatpush1.msra.mxu0 0.0
        %2212 = vmatprep.subr.mxu0 0.0
        %2213 = vmatpush1.msra.mxu0 0.0
        %2214 = vmatprep.subr.mxu0 0.0
        %2215 = vmatpush1.msra.mxu0 0.0
        %2216 = vmatprep.subr.mxu0 0.0
        %2217 = vmatpush1.msra.mxu0 0.0
        %2218 = vmatprep.subr.mxu0 0.0
        %2219 = vmatpush1.msra.mxu0 0.0
        %2220 = vmatprep.subr.mxu0 0.0
        %2221 = vmatpush1.msra.mxu0 0.0
        %2222 = vmatprep.subr.mxu0 0.0
        %2223 = vmatpush1.msra.mxu0 0.0
        %2224 = vmatprep.subr.mxu0 0.0
        %2225 = vmatpush1.msra.mxu0 0.0
        %2226 = vmatprep.subr.mxu0 0.0
        %2227 = vmatpush1.msra.mxu0 0.0
        %2228 = vmatprep.subr.mxu0 0.0
        %2229 = vmatpush1.msra.mxu0 0.0
        %2230 = vmatprep.subr.mxu0 0.0
        %2231 = vmatpush1.msra.mxu0 0.0
        %2232 = vmatprep.subr.mxu0 0.0
        %2233 = vmatpush1.msra.mxu0 0.0
        %2234 = vmatprep.subr.mxu0 0.0
        %2235 = vmatpush1.msra.mxu0 0.0
        %2236 = vmatprep.subr.mxu0 0.0
        %2237 = vmatpush1.msra.mxu0 0.0
        %2238 = vmatprep.subr.mxu0 0.0
        %2239 = vmatpush1.msra.mxu0 0.0
        %2240 = vmatprep.subr.mxu0 0.0
        %2241 = vmatpush1.msra.mxu0 0.0
        %2242 = vmatprep.subr.mxu0 0.0
        %2243 = vmatpush1.msra.mxu0 0.0
        %2244 = vmatprep.subr.mxu0 0.0
        %2245 = vmatpush1.msra.mxu0 0.0
        %2246 = vmatprep.subr.mxu0 0.0
        %2247 = vmatpush1.msra.mxu0 0.0
        %2248 = vmatprep.subr.mxu0 0.0
        %2249 = vmatpush1.msra.mxu0 0.0
        %2250 = vmatprep.subr.mxu0 0.0
        %2251 = vmatpush1.msra.mxu0 0.0
        %2252 = vmatprep.subr.mxu0 0.0
        %2253 = vmatpush1.msra.mxu0 0.0
        %2254 = vmatprep.subr.mxu0 0.0
        %2255 = vmatpush1.msra.mxu0 0.0
        %2256 = vmatprep.mubr.f32.mxu0 0.0
        %2257 = vmatmul.mubr.f32.gmra.mrb[0].mxu0 %v2190
        %v2258 = vpop.f32.mrb[0].mxu0
        %v2259 = vadd.f32 0.0, %v2258
        %v2260 = vpop.f32.mrb[0].mxu0
        %2261 = vdwg.mxu0
        %v2262 = vpack.c.bf16 %v2259, %v2259
        %v2267 = vunpack.c.l.b16 %v1638
        %v2268 = vunpack.c.l.b16 %v1639
        %v2269 = vunpack.c.l.b16 %v1640
        %v2270 = vunpack.c.l.b16 %v1641
        %v2271 = vpack.c.b16 %v2268, %v2267
        %v2272 = vpack.c.b16 %v2270, %v2269
        %v2276 = vsel %vm1647, %v2262, 0
        %2278 = vmatprep.subr.bf16.mxu0 0
        %2279 = vmatpush1.bf16.msra.mxu0 %v2271
        %2280 = vmatprep.subr.bf16.mxu0 0
        %2281 = vmatpush1.bf16.msra.mxu0 %v2272
        %2282 = vmatprep.subr.bf16.mxu0 0
        %2283 = vmatpush1.bf16.msra.mxu0 0
        %2284 = vmatprep.subr.bf16.mxu0 0
        %2285 = vmatpush1.bf16.msra.mxu0 0
        %2286 = vmatprep.subr.bf16.mxu0 0
        %2287 = vmatpush1.bf16.msra.mxu0 0
        %2288 = vmatprep.subr.bf16.mxu0 0
        %2289 = vmatpush1.bf16.msra.mxu0 0
        %2290 = vmatprep.subr.bf16.mxu0 0
        %2291 = vmatpush1.bf16.msra.mxu0 0
        %2292 = vmatprep.subr.bf16.mxu0 0
        %2293 = vmatpush1.bf16.msra.mxu0 0
        %2294 = vmatprep.subr.bf16.mxu0 0
        %2295 = vmatpush1.bf16.msra.mxu0 0
        %2296 = vmatprep.subr.bf16.mxu0 0
        %2297 = vmatpush1.bf16.msra.mxu0 0
        %2298 = vmatprep.subr.bf16.mxu0 0
        %2299 = vmatpush1.bf16.msra.mxu0 0
        %2300 = vmatprep.subr.bf16.mxu0 0
        %2301 = vmatpush1.bf16.msra.mxu0 0
        %2302 = vmatprep.subr.bf16.mxu0 0
        %2303 = vmatpush1.bf16.msra.mxu0 0
        %2304 = vmatprep.subr.bf16.mxu0 0
        %2305 = vmatpush1.bf16.msra.mxu0 0
        %2306 = vmatprep.subr.bf16.mxu0 0
        %2307 = vmatpush1.bf16.msra.mxu0 0
        %2308 = vmatprep.subr.bf16.mxu0 0
        %2309 = vmatpush1.bf16.msra.mxu0 0
        %2310 = vmatprep.mubr.bf16.mxu0 0
        %2311 = vmatmul.mubr.bf16.gmra.mrb[0].mxu0 %v2276
        %v2312 = vpop.f32.mrb[0].mxu0
        %v2313 = vadd.f32 0.0, %v2312
        %v2314 = vpop.f32.mrb[0].mxu0
        %v2315 = vpop.f32.mrb[0].mxu0
        %v2316 = vpop.f32.mrb[0].mxu0
        %2317 = vdwg.mxu0
        %v2318 = vadd.f32 %v2090, %v2313
        %2319 = vrot.lane.b32.xlu0 %v1581, 32
        %v2320 = vpop.permute.xlu0 %2319
        %2321 = vrot.lane.b32.xlu0 %v1583, 32
        %v2322 = vpop.permute.xlu0 %2321
        %v2323 = vsel %vm1647, %v2320, 0
        %v2325 = vsel %vm1647, %v2322, 0
        %2327 = vmatprep.subr.mxu0 0.0
        %2328 = vmatpush1.xpose.msra.mxu0 %v2325
        %2329 = vmatprep.subr.mxu0 0.0
        %2330 = vmatpush1.xpose.msra.mxu0 0.0
        %2331 = vmatprep.subr.mxu0 0.0
        %2332 = vmatpush1.xpose.msra.mxu0 0.0
        %2333 = vmatprep.subr.mxu0 0.0
        %2334 = vmatpush1.xpose.msra.mxu0 0.0
        %2335 = vmatprep.subr.mxu0 0.0
        %2336 = vmatpush1.xpose.msra.mxu0 0.0
        %2337 = vmatprep.subr.mxu0 0.0
        %2338 = vmatpush1.xpose.msra.mxu0 0.0
        %2339 = vmatprep.subr.mxu0 0.0
        %2340 = vmatpush1.xpose.msra.mxu0 0.0
        %2341 = vmatprep.subr.mxu0 0.0
        %2342 = vmatpush1.xpose.msra.mxu0 0.0
        %2343 = vmatprep.subr.mxu0 0.0
        %2344 = vmatpush1.xpose.msra.mxu0 0.0
        %2345 = vmatprep.subr.mxu0 0.0
        %2346 = vmatpush1.xpose.msra.mxu0 0.0
        %2347 = vmatprep.subr.mxu0 0.0
        %2348 = vmatpush1.xpose.msra.mxu0 0.0
        %2349 = vmatprep.subr.mxu0 0.0
        %2350 = vmatpush1.xpose.msra.mxu0 0.0
        %2351 = vmatprep.subr.mxu0 0.0
        %2352 = vmatpush1.xpose.msra.mxu0 0.0
        %2353 = vmatprep.subr.mxu0 0.0
        %2354 = vmatpush1.xpose.msra.mxu0 0.0
        %2355 = vmatprep.subr.mxu0 0.0
        %2356 = vmatpush1.xpose.msra.mxu0 0.0
        %2357 = vmatprep.subr.mxu0 0.0
        %2358 = vmatpush1.xpose.msra.mxu0 0.0
        %2359 = vmatprep.subr.mxu0 0.0
        %2360 = vmatpush1.xpose.msra.mxu0 0.0
        %2361 = vmatprep.subr.mxu0 0.0
        %2362 = vmatpush1.xpose.msra.mxu0 0.0
        %2363 = vmatprep.subr.mxu0 0.0
        %2364 = vmatpush1.xpose.msra.mxu0 0.0
        %2365 = vmatprep.subr.mxu0 0.0
        %2366 = vmatpush1.xpose.msra.mxu0 0.0
        %2367 = vmatprep.subr.mxu0 0.0
        %2368 = vmatpush1.xpose.msra.mxu0 0.0
        %2369 = vmatprep.subr.mxu0 0.0
        %2370 = vmatpush1.xpose.msra.mxu0 0.0
        %2371 = vmatprep.subr.mxu0 0.0
        %2372 = vmatpush1.xpose.msra.mxu0 0.0
        %2373 = vmatprep.subr.mxu0 0.0
        %2374 = vmatpush1.xpose.msra.mxu0 0.0
        %2375 = vmatprep.subr.mxu0 0.0
        %2376 = vmatpush1.xpose.msra.mxu0 0.0
        %2377 = vmatprep.subr.mxu0 0.0
        %2378 = vmatpush1.xpose.msra.mxu0 0.0
        %2379 = vmatprep.subr.mxu0 0.0
        %2380 = vmatpush1.xpose.msra.mxu0 0.0
        %2381 = vmatprep.subr.mxu0 0.0
        %2382 = vmatpush1.xpose.msra.mxu0 0.0
        %2383 = vmatprep.subr.mxu0 0.0
        %2384 = vmatpush1.xpose.msra.mxu0 0.0
        %2385 = vmatprep.subr.mxu0 0.0
        %2386 = vmatpush1.xpose.msra.mxu0 0.0
        %2387 = vmatprep.subr.mxu0 0.0
        %2388 = vmatpush1.xpose.msra.mxu0 0.0
        %2389 = vmatprep.subr.mxu0 0.0
        %2390 = vmatpush1.xpose.msra.mxu0 0.0
        %2391 = vmatprep.mubr.f32.mxu0 0.0
        %2392 = vmatmul.mubr.f32.gmra.mrb[0].mxu0 %v2323
        %v2393 = vpop.f32.mrb[0].mxu0
        %v2394 = vadd.f32 0.0, %v2393
        %v2395 = vpop.f32.mrb[0].mxu0
        %2396 = vdwg.mxu0
        %v2397 = vmul.f32 %v2394, 0.17677669
        %v2398 = vadd.f32 %v2397, %v1728
        %v2399 = vsel %vm1730, %v2398, -inf
        %2400 = vmax.xlane.f32.xlu0 %v2399
        %v2401 = vpop.xlane.xlu0 %2400
        %v2402 = vsub.f32 %v2398, %v2401
        %v2403 = vmul.f32 %v2402, 1.442695
        %v2404 = vpow.pop %v2403
        %v2405 = vsel %vm1730, %v2404, 0.0
        %2406 = vadd.xlane.f32.xlu0 %v2405
        %v2407 = vpop.xlane.xlu0 %2406
        %v2408 = vrcp.pop %v2407
        %v2409 = vmul.f32 %v2404, %v2408
        %2410 = vrot.lane.b32.xlu0 %v1624, 32
        %v2411 = vpop.permute.xlu0 %2410
        %v2414 = vsel %vm1730, %v2409, 0
        %2416 = vmatprep.subr.mxu0 0.0
        %2417 = vmatpush1.msra.mxu0 %v2411
        %2418 = vmatprep.subr.mxu0 0.0
        %2419 = vmatpush1.msra.mxu0 0.0
        %2420 = vmatprep.subr.mxu0 0.0
        %2421 = vmatpush1.msra.mxu0 0.0
        %2422 = vmatprep.subr.mxu0 0.0
        %2423 = vmatpush1.msra.mxu0 0.0
        %2424 = vmatprep.subr.mxu0 0.0
        %2425 = vmatpush1.msra.mxu0 0.0
        %2426 = vmatprep.subr.mxu0 0.0
        %2427 = vmatpush1.msra.mxu0 0.0
        %2428 = vmatprep.subr.mxu0 0.0
        %2429 = vmatpush1.msra.mxu0 0.0
        %2430 = vmatprep.subr.mxu0 0.0
        %2431 = vmatpush1.msra.mxu0 0.0
        %2432 = vmatprep.subr.mxu0 0.0
        %2433 = vmatpush1.msra.mxu0 0.0
        %2434 = vmatprep.subr.mxu0 0.0
        %2435 = vmatpush1.msra.mxu0 0.0
        %2436 = vmatprep.subr.mxu0 0.0
        %2437 = vmatpush1.msra.mxu0 0.0
        %2438 = vmatprep.subr.mxu0 0.0
        %2439 = vmatpush1.msra.mxu0 0.0
        %2440 = vmatprep.subr.mxu0 0.0
        %2441 = vmatpush1.msra.mxu0 0.0
        %2442 = vmatprep.subr.mxu0 0.0
        %2443 = vmatpush1.msra.mxu0 0.0
        %2444 = vmatprep.subr.mxu0 0.0
        %2445 = vmatpush1.msra.mxu0 0.0
        %2446 = vmatprep.subr.mxu0 0.0
        %2447 = vmatpush1.msra.mxu0 0.0
        %2448 = vmatprep.subr.mxu0 0.0
        %2449 = vmatpush1.msra.mxu0 0.0
        %2450 = vmatprep.subr.mxu0 0.0
        %2451 = vmatpush1.msra.mxu0 0.0
        %2452 = vmatprep.subr.mxu0 0.0
        %2453 = vmatpush1.msra.mxu0 0.0
        %2454 = vmatprep.subr.mxu0 0.0
        %2455 = vmatpush1.msra.mxu0 0.0
        %2456 = vmatprep.subr.mxu0 0.0
        %2457 = vmatpush1.msra.mxu0 0.0
        %2458 = vmatprep.subr.mxu0 0.0
        %2459 = vmatpush1.msra.mxu0 0.0
        %2460 = vmatprep.subr.mxu0 0.0
        %2461 = vmatpush1.msra.mxu0 0.0
        %2462 = vmatprep.subr.mxu0 0.0
        %2463 = vmatpush1.msra.mxu0 0.0
        %2464 = vmatprep.subr.mxu0 0.0
        %2465 = vmatpush1.msra.mxu0 0.0
        %2466 = vmatprep.subr.mxu0 0.0
        %2467 = vmatpush1.msra.mxu0 0.0
        %2468 = vmatprep.subr.mxu0 0.0
        %2469 = vmatpush1.msra.mxu0 0.0
        %2470 = vmatprep.subr.mxu0 0.0
        %2471 = vmatpush1.msra.mxu0 0.0
        %2472 = vmatprep.subr.mxu0 0.0
        %2473 = vmatpush1.msra.mxu0 0.0
        %2474 = vmatprep.subr.mxu0 0.0
        %2475 = vmatpush1.msra.mxu0 0.0
        %2476 = vmatprep.subr.mxu0 0.0
        %2477 = vmatpush1.msra.mxu0 0.0
        %2478 = vmatprep.subr.mxu0 0.0
        %2479 = vmatpush1.msra.mxu0 0.0
        %2480 = vmatprep.mubr.f32.mxu0 0.0
        %2481 = vmatmul.mubr.f32.gmra.mrb[0].mxu0 %v2414
        %v2482 = vpop.f32.mrb[0].mxu0
        %v2483 = vadd.f32 0.0, %v2482
        %v2484 = vpop.f32.mrb[0].mxu0
        %2485 = vdwg.mxu0
        %v2486 = vpack.c.bf16 %v2483, %v2483
        %v2491 = vunpack.c.l.b16 %v1642
        %v2492 = vunpack.c.l.b16 %v1643
        %v2493 = vunpack.c.l.b16 %v1644
        %v2494 = vunpack.c.l.b16 %v1645
        %v2495 = vpack.c.b16 %v2492, %v2491
        %v2496 = vpack.c.b16 %v2494, %v2493
        %v2500 = vsel %vm1647, %v2486, 0
        %2502 = vmatprep.subr.bf16.mxu0 0
        %2503 = vmatpush1.bf16.msra.mxu0 %v2495
        %2504 = vmatprep.subr.bf16.mxu0 0
        %2505 = vmatpush1.bf16.msra.mxu0 %v2496
        %2506 = vmatprep.subr.bf16.mxu0 0
        %2507 = vmatpush1.bf16.msra.mxu0 0
        %2508 = vmatprep.subr.bf16.mxu0 0
        %2509 = vmatpush1.bf16.msra.mxu0 0
        %2510 = vmatprep.subr.bf16.mxu0 0
        %2511 = vmatpush1.bf16.msra.mxu0 0
        %2512 = vmatprep.subr.bf16.mxu0 0
        %2513 = vmatpush1.bf16.msra.mxu0 0
        %2514 = vmatprep.subr.bf16.mxu0 0
        %2515 = vmatpush1.bf16.msra.mxu0 0
        %2516 = vmatprep.subr.bf16.mxu0 0
        %2517 = vmatpush1.bf16.msra.mxu0 0
        %2518 = vmatprep.subr.bf16.mxu0 0
        %2519 = vmatpush1.bf16.msra.mxu0 0
        %2520 = vmatprep.subr.bf16.mxu0 0
        %2521 = vmatpush1.bf16.msra.mxu0 0
        %2522 = vmatprep.subr.bf16.mxu0 0
        %2523 = vmatpush1.bf16.msra.mxu0 0
        %2524 = vmatprep.subr.bf16.mxu0 0
        %2525 = vmatpush1.bf16.msra.mxu0 0
        %2526 = vmatprep.subr.bf16.mxu0 0
        %2527 = vmatpush1.bf16.msra.mxu0 0
        %2528 = vmatprep.subr.bf16.mxu0 0
        %2529 = vmatpush1.bf16.msra.mxu0 0
        %2530 = vmatprep.subr.bf16.mxu0 0
        %2531 = vmatpush1.bf16.msra.mxu0 0
        %2532 = vmatprep.subr.bf16.mxu0 0
        %2533 = vmatpush1.bf16.msra.mxu0 0
        %2534 = vmatprep.mubr.bf16.mxu0 0
        %2535 = vmatmul.mubr.bf16.gmra.mrb[0].mxu0 %v2500
        %v2536 = vpop.f32.mrb[0].mxu0
        %v2537 = vadd.f32 0.0, %v2536
        %v2538 = vpop.f32.mrb[0].mxu0
        %v2539 = vpop.f32.mrb[0].mxu0
        %v2540 = vpop.f32.mrb[0].mxu0
        %2541 = vdwg.mxu0
        %v2542 = vadd.f32 %v2318, %v2537
        %v2544 = vlaneseq
        %v2545 = vshrl.u32 %v2544, 7
        %v2546 = vsub.s32 0, %v2545
        %v2547 = vrot.slane %v1646, %v2546
        %v2549 = vadd.f32 %v2542, %v2547
        %v2550 = vadd.f32 %v2549, %v1366
        %v2551 = vld [vmem:[%s927] sm:$0x1]
        %v2552 = vld [vmem:[%s935] sm:$0x1]
        %2553 = vadd.xlane.f32.xlu0 %v2550
        %v2554 = vpop.xlane.xlu0 %2553
        %v2555 = vrcp.pop 128.0
        %v2556 = vmul.f32 %v2554, %v2555
        %v2557 = vsub.f32 %v2550, %v2556
        %v2558 = vmul.f32 %v2557, %v2557
        %2559 = vadd.xlane.f32.xlu0 %v2558
        %v2560 = vpop.xlane.xlu0 %2559
        %v2561 = vmul.f32 %v2560, %v2555
        %v2562 = vadd.f32 %v2561, 1e-12
        %v2563 = vrsqrt.pop %v2562
        %v2564 = vmul.f32 %v2557, %v2563
        %v2566 = vlaneseq
        %v2567 = vshrl.u32 %v2566, 7
        %v2568 = vsub.s32 0, %v2567
        %v2569 = vrot.slane %v2551, %v2568
        %v2571 = vmul.f32 %v2564, %v2569
        %v2573 = vlaneseq
        %v2574 = vshrl.u32 %v2573, 7
        %v2575 = vsub.s32 0, %v2574
        %v2576 = vrot.slane %v2552, %v2575
        %v2578 = vadd.f32 %v2571, %v2576
        %2579 = vst [vmem:[#allocation2] sm:$0xff] %v2578
        %v2581 = vsel %vm1647, %v1585, 0
        %v2584 = vsel %vm1647, %v1587, 0
        %2586 = vmatprep.subr.mxu0 0.0
        %2587 = vmatpush1.xpose.msra.mxu0 %v2584
        %2588 = vmatprep.subr.mxu0 0.0
        %2589 = vmatpush1.xpose.msra.mxu0 0.0
        %2590 = vmatprep.subr.mxu0 0.0
        %2591 = vmatpush1.xpose.msra.mxu0 0.0
        %2592 = vmatprep.subr.mxu0 0.0
        %2593 = vmatpush1.xpose.msra.mxu0 0.0
        %2594 = vmatprep.subr.mxu0 0.0
        %2595 = vmatpush1.xpose.msra.mxu0 0.0
        %2596 = vmatprep.subr.mxu0 0.0
        %2597 = vmatpush1.xpose.msra.mxu0 0.0
        %2598 = vmatprep.subr.mxu0 0.0
        %2599 = vmatpush1.xpose.msra.mxu0 0.0
        %2600 = vmatprep.subr.mxu0 0.0
        %2601 = vmatpush1.xpose.msra.mxu0 0.0
        %2602 = vmatprep.subr.mxu0 0.0
        %2603 = vmatpush1.xpose.msra.mxu0 0.0
        %2604 = vmatprep.subr.mxu0 0.0
        %2605 = vmatpush1.xpose.msra.mxu0 0.0
        %2606 = vmatprep.subr.mxu0 0.0
        %2607 = vmatpush1.xpose.msra.mxu0 0.0
        %2608 = vmatprep.subr.mxu0 0.0
        %2609 = vmatpush1.xpose.msra.mxu0 0.0
        %2610 = vmatprep.subr.mxu0 0.0
        %2611 = vmatpush1.xpose.msra.mxu0 0.0
        %2612 = vmatprep.subr.mxu0 0.0
        %2613 = vmatpush1.xpose.msra.mxu0 0.0
        %2614 = vmatprep.subr.mxu0 0.0
        %2615 = vmatpush1.xpose.msra.mxu0 0.0
        %2616 = vmatprep.subr.mxu0 0.0
        %2617 = vmatpush1.xpose.msra.mxu0 0.0
        %2618 = vmatprep.subr.mxu0 0.0
        %2619 = vmatpush1.xpose.msra.mxu0 0.0
        %2620 = vmatprep.subr.mxu0 0.0
        %2621 = vmatpush1.xpose.msra.mxu0 0.0
        %2622 = vmatprep.subr.mxu0 0.0
        %2623 = vmatpush1.xpose.msra.mxu0 0.0
        %2624 = vmatprep.subr.mxu0 0.0
        %2625 = vmatpush1.xpose.msra.mxu0 0.0
        %2626 = vmatprep.subr.mxu0 0.0
        %2627 = vmatpush1.xpose.msra.mxu0 0.0
        %2628 = vmatprep.subr.mxu0 0.0
        %2629 = vmatpush1.xpose.msra.mxu0 0.0
        %2630 = vmatprep.subr.mxu0 0.0
        %2631 = vmatpush1.xpose.msra.mxu0 0.0
        %2632 = vmatprep.subr.mxu0 0.0
        %2633 = vmatpush1.xpose.msra.mxu0 0.0
        %2634 = vmatprep.subr.mxu0 0.0
        %2635 = vmatpush1.xpose.msra.mxu0 0.0
        %2636 = vmatprep.subr.mxu0 0.0
        %2637 = vmatpush1.xpose.msra.mxu0 0.0
        %2638 = vmatprep.subr.mxu0 0.0
        %2639 = vmatpush1.xpose.msra.mxu0 0.0
        %2640 = vmatprep.subr.mxu0 0.0
        %2641 = vmatpush1.xpose.msra.mxu0 0.0
        %2642 = vmatprep.subr.mxu0 0.0
        %2643 = vmatpush1.xpose.msra.mxu0 0.0
        %2644 = vmatprep.subr.mxu0 0.0
        %2645 = vmatpush1.xpose.msra.mxu0 0.0
        %2646 = vmatprep.subr.mxu0 0.0
        %2647 = vmatpush1.xpose.msra.mxu0 0.0
        %2648 = vmatprep.subr.mxu0 0.0
        %2649 = vmatpush1.xpose.msra.mxu0 0.0
        %2650 = vmatprep.mubr.f32.mxu0 0.0
        %2651 = vmatmul.mubr.f32.gmra.mrb[0].mxu0 %v2581
        %v2652 = vpop.f32.mrb[0].mxu0
        %v2653 = vadd.f32 0.0, %v2652
        %v2654 = vpop.f32.mrb[0].mxu0
        %2655 = vdwg.mxu0
        %v2656 = vmul.f32 %v2653, 0.17677669
        %v2657 = vlaneseq
        %v2658 = vshrl.u32 %v2657, 7
        %v2659 = vsub.s32 1, %v2658
        %v2660 = vrot.slane %v1365, %v2659
        %v2661 = vadd.f32 %v2656, %v2660
        %v2662 = vsel %vm1730, %v2661, -inf
        %2663 = vmax.xlane.f32.xlu0 %v2662
        %v2664 = vpop.xlane.xlu0 %2663
        %v2665 = vsub.f32 %v2661, %v2664
        %v2666 = vmul.f32 %v2665, 1.442695
        %v2667 = vpow.pop %v2666
        %v2668 = vsel %vm1730, %v2667, 0.0
        %2669 = vadd.xlane.f32.xlu0 %v2668
        %v2670 = vpop.xlane.xlu0 %2669
        %v2671 = vrcp.pop %v2670
        %v2672 = vmul.f32 %v2667, %v2671
        %v2674 = vsel %vm1730, %v2672, 0
        %2676 = vmatprep.subr.mxu0 0.0
        %2677 = vmatpush1.msra.mxu0 %v1627
        %2678 = vmatprep.subr.mxu0 0.0
        %2679 = vmatpush1.msra.mxu0 0.0
        %2680 = vmatprep.subr.mxu0 0.0
        %2681 = vmatpush1.msra.mxu0 0.0
        %2682 = vmatprep.subr.mxu0 0.0
        %2683 = vmatpush1.msra.mxu0 0.0
        %2684 = vmatprep.subr.mxu0 0.0
        %2685 = vmatpush1.msra.mxu0 0.0
        %2686 = vmatprep.subr.mxu0 0.0
        %2687 = vmatpush1.msra.mxu0 0.0
        %2688 = vmatprep.subr.mxu0 0.0
        %2689 = vmatpush1.msra.mxu0 0.0
        %2690 = vmatprep.subr.mxu0 0.0
        %2691 = vmatpush1.msra.mxu0 0.0
        %2692 = vmatprep.subr.mxu0 0.0
        %2693 = vmatpush1.msra.mxu0 0.0
        %2694 = vmatprep.subr.mxu0 0.0
        %2695 = vmatpush1.msra.mxu0 0.0
        %2696 = vmatprep.subr.mxu0 0.0
        %2697 = vmatpush1.msra.mxu0 0.0
        %2698 = vmatprep.subr.mxu0 0.0
        %2699 = vmatpush1.msra.mxu0 0.0
        %2700 = vmatprep.subr.mxu0 0.0
        %2701 = vmatpush1.msra.mxu0 0.0
        %2702 = vmatprep.subr.mxu0 0.0
        %2703 = vmatpush1.msra.mxu0 0.0
        %2704 = vmatprep.subr.mxu0 0.0
        %2705 = vmatpush1.msra.mxu0 0.0
        %2706 = vmatprep.subr.mxu0 0.0
        %2707 = vmatpush1.msra.mxu0 0.0
        %2708 = vmatprep.subr.mxu0 0.0
        %2709 = vmatpush1.msra.mxu0 0.0
        %2710 = vmatprep.subr.mxu0 0.0
        %2711 = vmatpush1.msra.mxu0 0.0
        %2712 = vmatprep.subr.mxu0 0.0
        %2713 = vmatpush1.msra.mxu0 0.0
        %2714 = vmatprep.subr.mxu0 0.0
        %2715 = vmatpush1.msra.mxu0 0.0
        %2716 = vmatprep.subr.mxu0 0.0
        %2717 = vmatpush1.msra.mxu0 0.0
        %2718 = vmatprep.subr.mxu0 0.0
        %2719 = vmatpush1.msra.mxu0 0.0
        %2720 = vmatprep.subr.mxu0 0.0
        %2721 = vmatpush1.msra.mxu0 0.0
        %2722 = vmatprep.subr.mxu0 0.0
        %2723 = vmatpush1.msra.mxu0 0.0
        %2724 = vmatprep.subr.mxu0 0.0
        %2725 = vmatpush1.msra.mxu0 0.0
        %2726 = vmatprep.subr.mxu0 0.0
        %2727 = vmatpush1.msra.mxu0 0.0
        %2728 = vmatprep.subr.mxu0 0.0
        %2729 = vmatpush1.msra.mxu0 0.0
        %2730 = vmatprep.subr.mxu0 0.0
        %2731 = vmatpush1.msra.mxu0 0.0
        %2732 = vmatprep.subr.mxu0 0.0
        %2733 = vmatpush1.msra.mxu0 0.0
        %2734 = vmatprep.subr.mxu0 0.0
        %2735 = vmatpush1.msra.mxu0 0.0
        %2736 = vmatprep.subr.mxu0 0.0
        %2737 = vmatpush1.msra.mxu0 0.0
        %2738 = vmatprep.subr.mxu0 0.0
        %2739 = vmatpush1.msra.mxu0 0.0
        %2740 = vmatprep.mubr.f32.mxu0 0.0
        %2741 = vmatmul.mubr.f32.gmra.mrb[0].mxu0 %v2674
        %v2742 = vpop.f32.mrb[0].mxu0
        %v2743 = vadd.f32 0.0, %v2742
        %v2744 = vpop.f32.mrb[0].mxu0
        %2745 = vdwg.mxu0
        %v2746 = vpack.c.bf16 %v2743, %v2743
        %2747 = vrot.lane.b32.xlu0 %v1585, 96
        %v2748 = vpop.permute.xlu0 %2747
        %2749 = vrot.lane.b32.xlu0 %v1587, 96
        %v2750 = vpop.permute.xlu0 %2749
        %v2751 = vsel %vm1647, %v2748, 0
        %v2753 = vsel %vm1647, %v2750, 0
        %2755 = vmatprep.subr.mxu0 0.0
        %2756 = vmatpush1.xpose.msra.mxu0 %v2753
        %2757 = vmatprep.subr.mxu0 0.0
        %2758 = vmatpush1.xpose.msra.mxu0 0.0
        %2759 = vmatprep.subr.mxu0 0.0
        %2760 = vmatpush1.xpose.msra.mxu0 0.0
        %2761 = vmatprep.subr.mxu0 0.0
        %2762 = vmatpush1.xpose.msra.mxu0 0.0
        %2763 = vmatprep.subr.mxu0 0.0
        %2764 = vmatpush1.xpose.msra.mxu0 0.0
        %2765 = vmatprep.subr.mxu0 0.0
        %2766 = vmatpush1.xpose.msra.mxu0 0.0
        %2767 = vmatprep.subr.mxu0 0.0
        %2768 = vmatpush1.xpose.msra.mxu0 0.0
        %2769 = vmatprep.subr.mxu0 0.0
        %2770 = vmatpush1.xpose.msra.mxu0 0.0
        %2771 = vmatprep.subr.mxu0 0.0
        %2772 = vmatpush1.xpose.msra.mxu0 0.0
        %2773 = vmatprep.subr.mxu0 0.0
        %2774 = vmatpush1.xpose.msra.mxu0 0.0
        %2775 = vmatprep.subr.mxu0 0.0
        %2776 = vmatpush1.xpose.msra.mxu0 0.0
        %2777 = vmatprep.subr.mxu0 0.0
        %2778 = vmatpush1.xpose.msra.mxu0 0.0
        %2779 = vmatprep.subr.mxu0 0.0
        %2780 = vmatpush1.xpose.msra.mxu0 0.0
        %2781 = vmatprep.subr.mxu0 0.0
        %2782 = vmatpush1.xpose.msra.mxu0 0.0
        %2783 = vmatprep.subr.mxu0 0.0
        %2784 = vmatpush1.xpose.msra.mxu0 0.0
        %2785 = vmatprep.subr.mxu0 0.0
        %2786 = vmatpush1.xpose.msra.mxu0 0.0
        %2787 = vmatprep.subr.mxu0 0.0
        %2788 = vmatpush1.xpose.msra.mxu0 0.0
        %2789 = vmatprep.subr.mxu0 0.0
        %2790 = vmatpush1.xpose.msra.mxu0 0.0
        %2791 = vmatprep.subr.mxu0 0.0
        %2792 = vmatpush1.xpose.msra.mxu0 0.0
        %2793 = vmatprep.subr.mxu0 0.0
        %2794 = vmatpush1.xpose.msra.mxu0 0.0
        %2795 = vmatprep.subr.mxu0 0.0
        %2796 = vmatpush1.xpose.msra.mxu0 0.0
        %2797 = vmatprep.subr.mxu0 0.0
        %2798 = vmatpush1.xpose.msra.mxu0 0.0
        %2799 = vmatprep.subr.mxu0 0.0
        %2800 = vmatpush1.xpose.msra.mxu0 0.0
        %2801 = vmatprep.subr.mxu0 0.0
        %2802 = vmatpush1.xpose.msra.mxu0 0.0
        %2803 = vmatprep.subr.mxu0 0.0
        %2804 = vmatpush1.xpose.msra.mxu0 0.0
        %2805 = vmatprep.subr.mxu0 0.0
        %2806 = vmatpush1.xpose.msra.mxu0 0.0
        %2807 = vmatprep.subr.mxu0 0.0
        %2808 = vmatpush1.xpose.msra.mxu0 0.0
        %2809 = vmatprep.subr.mxu0 0.0
        %2810 = vmatpush1.xpose.msra.mxu0 0.0
        %2811 = vmatprep.subr.mxu0 0.0
        %2812 = vmatpush1.xpose.msra.mxu0 0.0
        %2813 = vmatprep.subr.mxu0 0.0
        %2814 = vmatpush1.xpose.msra.mxu0 0.0
        %2815 = vmatprep.subr.mxu0 0.0
        %2816 = vmatpush1.xpose.msra.mxu0 0.0
        %2817 = vmatprep.subr.mxu0 0.0
        %2818 = vmatpush1.xpose.msra.mxu0 0.0
        %2819 = vmatprep.mubr.f32.mxu0 0.0
        %2820 = vmatmul.mubr.f32.gmra.mrb[0].mxu0 %v2751
        %v2821 = vpop.f32.mrb[0].mxu0
        %v2822 = vadd.f32 0.0, %v2821
        %v2823 = vpop.f32.mrb[0].mxu0
        %2824 = vdwg.mxu0
        %v2825 = vmul.f32 %v2822, 0.17677669
        %v2826 = vadd.f32 %v2825, %v2660
        %v2827 = vsel %vm1730, %v2826, -inf
        %2828 = vmax.xlane.f32.xlu0 %v2827
        %v2829 = vpop.xlane.xlu0 %2828
        %v2830 = vsub.f32 %v2826, %v2829
        %v2831 = vmul.f32 %v2830, 1.442695
        %v2832 = vpow.pop %v2831
        %v2833 = vsel %vm1730, %v2832, 0.0
        %2834 = vadd.xlane.f32.xlu0 %v2833
        %v2835 = vpop.xlane.xlu0 %2834
        %v2836 = vrcp.pop %v2835
        %v2837 = vmul.f32 %v2832, %v2836
        %2839 = vrot.lane.b32.xlu0 %v1627, 96
        %v2840 = vpop.permute.xlu0 %2839
        %v2843 = vsel %vm1730, %v2837, 0
        %2845 = vmatprep.subr.mxu0 0.0
        %2846 = vmatpush1.msra.mxu0 %v2840
        %2847 = vmatprep.subr.mxu0 0.0
        %2848 = vmatpush1.msra.mxu0 0.0
        %2849 = vmatprep.subr.mxu0 0.0
        %2850 = vmatpush1.msra.mxu0 0.0
        %2851 = vmatprep.subr.mxu0 0.0
        %2852 = vmatpush1.msra.mxu0 0.0
        %2853 = vmatprep.subr.mxu0 0.0
        %2854 = vmatpush1.msra.mxu0 0.0
        %2855 = vmatprep.subr.mxu0 0.0
        %2856 = vmatpush1.msra.mxu0 0.0
        %2857 = vmatprep.subr.mxu0 0.0
        %2858 = vmatpush1.msra.mxu0 0.0
        %2859 = vmatprep.subr.mxu0 0.0
        %2860 = vmatpush1.msra.mxu0 0.0
        %2861 = vmatprep.subr.mxu0 0.0
        %2862 = vmatpush1.msra.mxu0 0.0
        %2863 = vmatprep.subr.mxu0 0.0
        %2864 = vmatpush1.msra.mxu0 0.0
        %2865 = vmatprep.subr.mxu0 0.0
        %2866 = vmatpush1.msra.mxu0 0.0
        %2867 = vmatprep.subr.mxu0 0.0
        %2868 = vmatpush1.msra.mxu0 0.0
        %2869 = vmatprep.subr.mxu0 0.0
        %2870 = vmatpush1.msra.mxu0 0.0
        %2871 = vmatprep.subr.mxu0 0.0
        %2872 = vmatpush1.msra.mxu0 0.0
        %2873 = vmatprep.subr.mxu0 0.0
        %2874 = vmatpush1.msra.mxu0 0.0
        %2875 = vmatprep.subr.mxu0 0.0
        %2876 = vmatpush1.msra.mxu0 0.0
        %2877 = vmatprep.subr.mxu0 0.0
        %2878 = vmatpush1.msra.mxu0 0.0
        %2879 = vmatprep.subr.mxu0 0.0
        %2880 = vmatpush1.msra.mxu0 0.0
        %2881 = vmatprep.subr.mxu0 0.0
        %2882 = vmatpush1.msra.mxu0 0.0
        %2883 = vmatprep.subr.mxu0 0.0
        %2884 = vmatpush1.msra.mxu0 0.0
        %2885 = vmatprep.subr.mxu0 0.0
        %2886 = vmatpush1.msra.mxu0 0.0
        %2887 = vmatprep.subr.mxu0 0.0
        %2888 = vmatpush1.msra.mxu0 0.0
        %2889 = vmatprep.subr.mxu0 0.0
        %2890 = vmatpush1.msra.mxu0 0.0
        %2891 = vmatprep.subr.mxu0 0.0
        %2892 = vmatpush1.msra.mxu0 0.0
        %2893 = vmatprep.subr.mxu0 0.0
        %2894 = vmatpush1.msra.mxu0 0.0
        %2895 = vmatprep.subr.mxu0 0.0
        %2896 = vmatpush1.msra.mxu0 0.0
        %2897 = vmatprep.subr.mxu0 0.0
        %2898 = vmatpush1.msra.mxu0 0.0
        %2899 = vmatprep.subr.mxu0 0.0
        %2900 = vmatpush1.msra.mxu0 0.0
        %2901 = vmatprep.subr.mxu0 0.0
        %2902 = vmatpush1.msra.mxu0 0.0
        %2903 = vmatprep.subr.mxu0 0.0
        %2904 = vmatpush1.msra.mxu0 0.0
        %2905 = vmatprep.subr.mxu0 0.0
        %2906 = vmatpush1.msra.mxu0 0.0
        %2907 = vmatprep.subr.mxu0 0.0
        %2908 = vmatpush1.msra.mxu0 0.0
        %2909 = vmatprep.mubr.f32.mxu0 0.0
        %2910 = vmatmul.mubr.f32.gmra.mrb[0].mxu0 %v2843
        %v2911 = vpop.f32.mrb[0].mxu0
        %v2912 = vadd.f32 0.0, %v2911
        %v2913 = vpop.f32.mrb[0].mxu0
        %2914 = vdwg.mxu0
        %v2915 = vpack.c.bf16 %v2912, %v2912
        %v2917 = vsel %vm1647, %v2915, 0
        %2919 = vmatprep.subr.bf16.mxu0 0
        %2920 = vmatpush1.bf16.msra.mxu0 %v1993
        %2921 = vmatprep.subr.bf16.mxu0 0
        %2922 = vmatpush1.bf16.msra.mxu0 %v1994
        %2923 = vmatprep.subr.bf16.mxu0 0
        %2924 = vmatpush1.bf16.msra.mxu0 0
        %2925 = vmatprep.subr.bf16.mxu0 0
        %2926 = vmatpush1.bf16.msra.mxu0 0
        %2927 = vmatprep.subr.bf16.mxu0 0
        %2928 = vmatpush1.bf16.msra.mxu0 0
        %2929 = vmatprep.subr.bf16.mxu0 0
        %2930 = vmatpush1.bf16.msra.mxu0 0
        %2931 = vmatprep.subr.bf16.mxu0 0
        %2932 = vmatpush1.bf16.msra.mxu0 0
        %2933 = vmatprep.subr.bf16.mxu0 0
        %2934 = vmatpush1.bf16.msra.mxu0 0
        %2935 = vmatprep.subr.bf16.mxu0 0
        %2936 = vmatpush1.bf16.msra.mxu0 0
        %2937 = vmatprep.subr.bf16.mxu0 0
        %2938 = vmatpush1.bf16.msra.mxu0 0
        %2939 = vmatprep.subr.bf16.mxu0 0
        %2940 = vmatpush1.bf16.msra.mxu0 0
        %2941 = vmatprep.subr.bf16.mxu0 0
        %2942 = vmatpush1.bf16.msra.mxu0 0
        %2943 = vmatprep.subr.bf16.mxu0 0
        %2944 = vmatpush1.bf16.msra.mxu0 0
        %2945 = vmatprep.subr.bf16.mxu0 0
        %2946 = vmatpush1.bf16.msra.mxu0 0
        %2947 = vmatprep.subr.bf16.mxu0 0
        %2948 = vmatpush1.bf16.msra.mxu0 0
        %2949 = vmatprep.subr.bf16.mxu0 0
        %2950 = vmatpush1.bf16.msra.mxu0 0
        %2951 = vmatprep.mubr.bf16.mxu0 0
        %2952 = vmatmul.mubr.bf16.gmra.mrb[0].mxu0 %v2917
        %v2953 = vpop.f32.mrb[0].mxu0
        %v2954 = vadd.f32 0.0, %v2953
        %v2955 = vpop.f32.mrb[0].mxu0
        %v2956 = vpop.f32.mrb[0].mxu0
        %v2957 = vpop.f32.mrb[0].mxu0
        %2958 = vdwg.mxu0
        %v2960 = vsel %vm1647, %v2746, 0
        %2962 = vmatprep.subr.bf16.mxu0 0
        %2963 = vmatpush1.bf16.msra.mxu0 %v2048
        %2964 = vmatprep.subr.bf16.mxu0 0
        %2965 = vmatpush1.bf16.msra.mxu0 %v2049
        %2966 = vmatprep.subr.bf16.mxu0 0
        %2967 = vmatpush1.bf16.msra.mxu0 0
        %2968 = vmatprep.subr.bf16.mxu0 0
        %2969 = vmatpush1.bf16.msra.mxu0 0
        %2970 = vmatprep.subr.bf16.mxu0 0
        %2971 = vmatpush1.bf16.msra.mxu0 0
        %2972 = vmatprep.subr.bf16.mxu0 0
        %2973 = vmatpush1.bf16.msra.mxu0 0
        %2974 = vmatprep.subr.bf16.mxu0 0
        %2975 = vmatpush1.bf16.msra.mxu0 0
        %2976 = vmatprep.subr.bf16.mxu0 0
        %2977 = vmatpush1.bf16.msra.mxu0 0
        %2978 = vmatprep.subr.bf16.mxu0 0
        %2979 = vmatpush1.bf16.msra.mxu0 0
        %2980 = vmatprep.subr.bf16.mxu0 0
        %2981 = vmatpush1.bf16.msra.mxu0 0
        %2982 = vmatprep.subr.bf16.mxu0 0
        %2983 = vmatpush1.bf16.msra.mxu0 0
        %2984 = vmatprep.subr.bf16.mxu0 0
        %2985 = vmatpush1.bf16.msra.mxu0 0
        %2986 = vmatprep.subr.bf16.mxu0 0
        %2987 = vmatpush1.bf16.msra.mxu0 0
        %2988 = vmatprep.subr.bf16.mxu0 0
        %2989 = vmatpush1.bf16.msra.mxu0 0
        %2990 = vmatprep.subr.bf16.mxu0 0
        %2991 = vmatpush1.bf16.msra.mxu0 0
        %2992 = vmatprep.subr.bf16.mxu0 0
        %2993 = vmatpush1.bf16.msra.mxu0 0
        %2994 = vmatprep.mubr.bf16.mxu0 0
        %2995 = vmatmul.mubr.bf16.gmra.mrb[0].mxu0 %v2960
        %v2996 = vpop.f32.mrb[0].mxu0
        %v2997 = vadd.f32 %v2954, %v2996
        %v2998 = vpop.f32.mrb[0].mxu0
        %v2999 = vpop.f32.mrb[0].mxu0
        %v3000 = vpop.f32.mrb[0].mxu0
        %3001 = vdwg.mxu0
        %3002 = vrot.lane.b32.xlu0 %v1585, 64
        %v3003 = vpop.permute.xlu0 %3002
        %3004 = vrot.lane.b32.xlu0 %v1587, 64
        %v3005 = vpop.permute.xlu0 %3004
        %v3006 = vsel %vm1647, %v3003, 0
        %v3008 = vsel %vm1647, %v3005, 0
        %3010 = vmatprep.subr.mxu0 0.0
        %3011 = vmatpush1.xpose.msra.mxu0 %v3008
        %3012 = vmatprep.subr.mxu0 0.0
        %3013 = vmatpush1.xpose.msra.mxu0 0.0
        %3014 = vmatprep.subr.mxu0 0.0
        %3015 = vmatpush1.xpose.msra.mxu0 0.0
        %3016 = vmatprep.subr.mxu0 0.0
        %3017 = vmatpush1.xpose.msra.mxu0 0.0
        %3018 = vmatprep.subr.mxu0 0.0
        %3019 = vmatpush1.xpose.msra.mxu0 0.0
        %3020 = vmatprep.subr.mxu0 0.0
        %3021 = vmatpush1.xpose.msra.mxu0 0.0
        %3022 = vmatprep.subr.mxu0 0.0
        %3023 = vmatpush1.xpose.msra.mxu0 0.0
        %3024 = vmatprep.subr.mxu0 0.0
        %3025 = vmatpush1.xpose.msra.mxu0 0.0
        %3026 = vmatprep.subr.mxu0 0.0
        %3027 = vmatpush1.xpose.msra.mxu0 0.0
        %3028 = vmatprep.subr.mxu0 0.0
        %3029 = vmatpush1.xpose.msra.mxu0 0.0
        %3030 = vmatprep.subr.mxu0 0.0
        %3031 = vmatpush1.xpose.msra.mxu0 0.0
        %3032 = vmatprep.subr.mxu0 0.0
        %3033 = vmatpush1.xpose.msra.mxu0 0.0
        %3034 = vmatprep.subr.mxu0 0.0
        %3035 = vmatpush1.xpose.msra.mxu0 0.0
        %3036 = vmatprep.subr.mxu0 0.0
        %3037 = vmatpush1.xpose.msra.mxu0 0.0
        %3038 = vmatprep.subr.mxu0 0.0
        %3039 = vmatpush1.xpose.msra.mxu0 0.0
        %3040 = vmatprep.subr.mxu0 0.0
        %3041 = vmatpush1.xpose.msra.mxu0 0.0
        %3042 = vmatprep.subr.mxu0 0.0
        %3043 = vmatpush1.xpose.msra.mxu0 0.0
        %3044 = vmatprep.subr.mxu0 0.0
        %3045 = vmatpush1.xpose.msra.mxu0 0.0
        %3046 = vmatprep.subr.mxu0 0.0
        %3047 = vmatpush1.xpose.msra.mxu0 0.0
        %3048 = vmatprep.subr.mxu0 0.0
        %3049 = vmatpush1.xpose.msra.mxu0 0.0
        %3050 = vmatprep.subr.mxu0 0.0
        %3051 = vmatpush1.xpose.msra.mxu0 0.0
        %3052 = vmatprep.subr.mxu0 0.0
        %3053 = vmatpush1.xpose.msra.mxu0 0.0
        %3054 = vmatprep.subr.mxu0 0.0
        %3055 = vmatpush1.xpose.msra.mxu0 0.0
        %3056 = vmatprep.subr.mxu0 0.0
        %3057 = vmatpush1.xpose.msra.mxu0 0.0
        %3058 = vmatprep.subr.mxu0 0.0
        %3059 = vmatpush1.xpose.msra.mxu0 0.0
        %3060 = vmatprep.subr.mxu0 0.0
        %3061 = vmatpush1.xpose.msra.mxu0 0.0
        %3062 = vmatprep.subr.mxu0 0.0
        %3063 = vmatpush1.xpose.msra.mxu0 0.0
        %3064 = vmatprep.subr.mxu0 0.0
        %3065 = vmatpush1.xpose.msra.mxu0 0.0
        %3066 = vmatprep.subr.mxu0 0.0
        %3067 = vmatpush1.xpose.msra.mxu0 0.0
        %3068 = vmatprep.subr.mxu0 0.0
        %3069 = vmatpush1.xpose.msra.mxu0 0.0
        %3070 = vmatprep.subr.mxu0 0.0
        %3071 = vmatpush1.xpose.msra.mxu0 0.0
        %3072 = vmatprep.subr.mxu0 0.0
        %3073 = vmatpush1.xpose.msra.mxu0 0.0
        %3074 = vmatprep.mubr.f32.mxu0 0.0
        %3075 = vmatmul.mubr.f32.gmra.mrb[0].mxu0 %v3006
        %v3076 = vpop.f32.mrb[0].mxu0
        %v3077 = vadd.f32 0.0, %v3076
        %v3078 = vpop.f32.mrb[0].mxu0
        %3079 = vdwg.mxu0
        %v3080 = vmul.f32 %v3077, 0.17677669
        %v3081 = vadd.f32 %v3080, %v2660
        %v3082 = vsel %vm1730, %v3081, -inf
        %3083 = vmax.xlane.f32.xlu0 %v3082
        %v3084 = vpop.xlane.xlu0 %3083
        %v3085 = vsub.f32 %v3081, %v3084
        %v3086 = vmul.f32 %v3085, 1.442695
        %v3087 = vpow.pop %v3086
        %v3088 = vsel %vm1730, %v3087, 0.0
        %3089 = vadd.xlane.f32.xlu0 %v3088
        %v3090 = vpop.xlane.xlu0 %3089
        %v3091 = vrcp.pop %v3090
        %v3092 = vmul.f32 %v3087, %v3091
        %3093 = vrot.lane.b32.xlu0 %v1627, 64
        %v3094 = vpop.permute.xlu0 %3093
        %v3097 = vsel %vm1730, %v3092, 0
        %3099 = vmatprep.subr.mxu0 0.0
        %3100 = vmatpush1.msra.mxu0 %v3094
        %3101 = vmatprep.subr.mxu0 0.0
        %3102 = vmatpush1.msra.mxu0 0.0
        %3103 = vmatprep.subr.mxu0 0.0
        %3104 = vmatpush1.msra.mxu0 0.0
        %3105 = vmatprep.subr.mxu0 0.0
        %3106 = vmatpush1.msra.mxu0 0.0
        %3107 = vmatprep.subr.mxu0 0.0
        %3108 = vmatpush1.msra.mxu0 0.0
        %3109 = vmatprep.subr.mxu0 0.0
        %3110 = vmatpush1.msra.mxu0 0.0
        %3111 = vmatprep.subr.mxu0 0.0
        %3112 = vmatpush1.msra.mxu0 0.0
        %3113 = vmatprep.subr.mxu0 0.0
        %3114 = vmatpush1.msra.mxu0 0.0
        %3115 = vmatprep.subr.mxu0 0.0
        %3116 = vmatpush1.msra.mxu0 0.0
        %3117 = vmatprep.subr.mxu0 0.0
        %3118 = vmatpush1.msra.mxu0 0.0
        %3119 = vmatprep.subr.mxu0 0.0
        %3120 = vmatpush1.msra.mxu0 0.0
        %3121 = vmatprep.subr.mxu0 0.0
        %3122 = vmatpush1.msra.mxu0 0.0
        %3123 = vmatprep.subr.mxu0 0.0
        %3124 = vmatpush1.msra.mxu0 0.0
        %3125 = vmatprep.subr.mxu0 0.0
        %3126 = vmatpush1.msra.mxu0 0.0
        %3127 = vmatprep.subr.mxu0 0.0
        %3128 = vmatpush1.msra.mxu0 0.0
        %3129 = vmatprep.subr.mxu0 0.0
        %3130 = vmatpush1.msra.mxu0 0.0
        %3131 = vmatprep.subr.mxu0 0.0
        %3132 = vmatpush1.msra.mxu0 0.0
        %3133 = vmatprep.subr.mxu0 0.0
        %3134 = vmatpush1.msra.mxu0 0.0
        %3135 = vmatprep.subr.mxu0 0.0
        %3136 = vmatpush1.msra.mxu0 0.0
        %3137 = vmatprep.subr.mxu0 0.0
        %3138 = vmatpush1.msra.mxu0 0.0
        %3139 = vmatprep.subr.mxu0 0.0
        %3140 = vmatpush1.msra.mxu0 0.0
        %3141 = vmatprep.subr.mxu0 0.0
        %3142 = vmatpush1.msra.mxu0 0.0
        %3143 = vmatprep.subr.mxu0 0.0
        %3144 = vmatpush1.msra.mxu0 0.0
        %3145 = vmatprep.subr.mxu0 0.0
        %3146 = vmatpush1.msra.mxu0 0.0
        %3147 = vmatprep.subr.mxu0 0.0
        %3148 = vmatpush1.msra.mxu0 0.0
        %3149 = vmatprep.subr.mxu0 0.0
        %3150 = vmatpush1.msra.mxu0 0.0
        %3151 = vmatprep.subr.mxu0 0.0
        %3152 = vmatpush1.msra.mxu0 0.0
        %3153 = vmatprep.subr.mxu0 0.0
        %3154 = vmatpush1.msra.mxu0 0.0
        %3155 = vmatprep.subr.mxu0 0.0
        %3156 = vmatpush1.msra.mxu0 0.0
        %3157 = vmatprep.subr.mxu0 0.0
        %3158 = vmatpush1.msra.mxu0 0.0
        %3159 = vmatprep.subr.mxu0 0.0
        %3160 = vmatpush1.msra.mxu0 0.0
        %3161 = vmatprep.subr.mxu0 0.0
        %3162 = vmatpush1.msra.mxu0 0.0
        %3163 = vmatprep.mubr.f32.mxu0 0.0
        %3164 = vmatmul.mubr.f32.gmra.mrb[0].mxu0 %v3097
        %v3165 = vpop.f32.mrb[0].mxu0
        %v3166 = vadd.f32 0.0, %v3165
        %v3167 = vpop.f32.mrb[0].mxu0
        %3168 = vdwg.mxu0
        %v3169 = vpack.c.bf16 %v3166, %v3166
        %v3171 = vsel %vm1647, %v3169, 0
        %3173 = vmatprep.subr.bf16.mxu0 0
        %3174 = vmatpush1.bf16.msra.mxu0 %v2271
        %3175 = vmatprep.subr.bf16.mxu0 0
        %3176 = vmatpush1.bf16.msra.mxu0 %v2272
        %3177 = vmatprep.subr.bf16.mxu0 0
        %3178 = vmatpush1.bf16.msra.mxu0 0
        %3179 = vmatprep.subr.bf16.mxu0 0
        %3180 = vmatpush1.bf16.msra.mxu0 0
        %3181 = vmatprep.subr.bf16.mxu0 0
        %3182 = vmatpush1.bf16.msra.mxu0 0
        %3183 = vmatprep.subr.bf16.mxu0 0
        %3184 = vmatpush1.bf16.msra.mxu0 0
        %3185 = vmatprep.subr.bf16.mxu0 0
        %3186 = vmatpush1.bf16.msra.mxu0 0
        %3187 = vmatprep.subr.bf16.mxu0 0
        %3188 = vmatpush1.bf16.msra.mxu0 0
        %3189 = vmatprep.subr.bf16.mxu0 0
        %3190 = vmatpush1.bf16.msra.mxu0 0
        %3191 = vmatprep.subr.bf16.mxu0 0
        %3192 = vmatpush1.bf16.msra.mxu0 0
        %3193 = vmatprep.subr.bf16.mxu0 0
        %3194 = vmatpush1.bf16.msra.mxu0 0
        %3195 = vmatprep.subr.bf16.mxu0 0
        %3196 = vmatpush1.bf16.msra.mxu0 0
        %3197 = vmatprep.subr.bf16.mxu0 0
        %3198 = vmatpush1.bf16.msra.mxu0 0
        %3199 = vmatprep.subr.bf16.mxu0 0
        %3200 = vmatpush1.bf16.msra.mxu0 0
        %3201 = vmatprep.subr.bf16.mxu0 0
        %3202 = vmatpush1.bf16.msra.mxu0 0
        %3203 = vmatprep.subr.bf16.mxu0 0
        %3204 = vmatpush1.bf16.msra.mxu0 0
        %3205 = vmatprep.mubr.bf16.mxu0 0
        %3206 = vmatmul.mubr.bf16.gmra.mrb[0].mxu0 %v3171
        %v3207 = vpop.f32.mrb[0].mxu0
        %v3208 = vadd.f32 0.0, %v3207
        %v3209 = vpop.f32.mrb[0].mxu0
        %v3210 = vpop.f32.mrb[0].mxu0
        %v3211 = vpop.f32.mrb[0].mxu0
        %3212 = vdwg.mxu0
        %v3213 = vadd.f32 %v2997, %v3208
        %3214 = vrot.lane.b32.xlu0 %v1585, 32
        %v3215 = vpop.permute.xlu0 %3214
        %3216 = vrot.lane.b32.xlu0 %v1587, 32
        %v3217 = vpop.permute.xlu0 %3216
        %v3218 = vsel %vm1647, %v3215, 0
        %v3220 = vsel %vm1647, %v3217, 0
        %3222 = vmatprep.subr.mxu0 0.0
        %3223 = vmatpush1.xpose.msra.mxu0 %v3220
        %3224 = vmatprep.subr.mxu0 0.0
        %3225 = vmatpush1.xpose.msra.mxu0 0.0
        %3226 = vmatprep.subr.mxu0 0.0
        %3227 = vmatpush1.xpose.msra.mxu0 0.0
        %3228 = vmatprep.subr.mxu0 0.0
        %3229 = vmatpush1.xpose.msra.mxu0 0.0
        %3230 = vmatprep.subr.mxu0 0.0
        %3231 = vmatpush1.xpose.msra.mxu0 0.0
        %3232 = vmatprep.subr.mxu0 0.0
        %3233 = vmatpush1.xpose.msra.mxu0 0.0
        %3234 = vmatprep.subr.mxu0 0.0
        %3235 = vmatpush1.xpose.msra.mxu0 0.0
        %3236 = vmatprep.subr.mxu0 0.0
        %3237 = vmatpush1.xpose.msra.mxu0 0.0
        %3238 = vmatprep.subr.mxu0 0.0
        %3239 = vmatpush1.xpose.msra.mxu0 0.0
        %3240 = vmatprep.subr.mxu0 0.0
        %3241 = vmatpush1.xpose.msra.mxu0 0.0
        %3242 = vmatprep.subr.mxu0 0.0
        %3243 = vmatpush1.xpose.msra.mxu0 0.0
        %3244 = vmatprep.subr.mxu0 0.0
        %3245 = vmatpush1.xpose.msra.mxu0 0.0
        %3246 = vmatprep.subr.mxu0 0.0
        %3247 = vmatpush1.xpose.msra.mxu0 0.0
        %3248 = vmatprep.subr.mxu0 0.0
        %3249 = vmatpush1.xpose.msra.mxu0 0.0
        %3250 = vmatprep.subr.mxu0 0.0
        %3251 = vmatpush1.xpose.msra.mxu0 0.0
        %3252 = vmatprep.subr.mxu0 0.0
        %3253 = vmatpush1.xpose.msra.mxu0 0.0
        %3254 = vmatprep.subr.mxu0 0.0
        %3255 = vmatpush1.xpose.msra.mxu0 0.0
        %3256 = vmatprep.subr.mxu0 0.0
        %3257 = vmatpush1.xpose.msra.mxu0 0.0
        %3258 = vmatprep.subr.mxu0 0.0
        %3259 = vmatpush1.xpose.msra.mxu0 0.0
        %3260 = vmatprep.subr.mxu0 0.0
        %3261 = vmatpush1.xpose.msra.mxu0 0.0
        %3262 = vmatprep.subr.mxu0 0.0
        %3263 = vmatpush1.xpose.msra.mxu0 0.0
        %3264 = vmatprep.subr.mxu0 0.0
        %3265 = vmatpush1.xpose.msra.mxu0 0.0
        %3266 = vmatprep.subr.mxu0 0.0
        %3267 = vmatpush1.xpose.msra.mxu0 0.0
        %3268 = vmatprep.subr.mxu0 0.0
        %3269 = vmatpush1.xpose.msra.mxu0 0.0
        %3270 = vmatprep.subr.mxu0 0.0
        %3271 = vmatpush1.xpose.msra.mxu0 0.0
        %3272 = vmatprep.subr.mxu0 0.0
        %3273 = vmatpush1.xpose.msra.mxu0 0.0
        %3274 = vmatprep.subr.mxu0 0.0
        %3275 = vmatpush1.xpose.msra.mxu0 0.0
        %3276 = vmatprep.subr.mxu0 0.0
        %3277 = vmatpush1.xpose.msra.mxu0 0.0
        %3278 = vmatprep.subr.mxu0 0.0
        %3279 = vmatpush1.xpose.msra.mxu0 0.0
        %3280 = vmatprep.subr.mxu0 0.0
        %3281 = vmatpush1.xpose.msra.mxu0 0.0
        %3282 = vmatprep.subr.mxu0 0.0
        %3283 = vmatpush1.xpose.msra.mxu0 0.0
        %3284 = vmatprep.subr.mxu0 0.0
        %3285 = vmatpush1.xpose.msra.mxu0 0.0
        %3286 = vmatprep.mubr.f32.mxu0 0.0
        %3287 = vmatmul.mubr.f32.gmra.mrb[0].mxu0 %v3218
        %v3288 = vpop.f32.mrb[0].mxu0
        %v3289 = vadd.f32 0.0, %v3288
        %v3290 = vpop.f32.mrb[0].mxu0
        %3291 = vdwg.mxu0
        %v3292 = vmul.f32 %v3289, 0.17677669
        %v3293 = vadd.f32 %v3292, %v2660
        %v3294 = vsel %vm1730, %v3293, -inf
        %3295 = vmax.xlane.f32.xlu0 %v3294
        %v3296 = vpop.xlane.xlu0 %3295
        %v3297 = vsub.f32 %v3293, %v3296
        %v3298 = vmul.f32 %v3297, 1.442695
        %v3299 = vpow.pop %v3298
        %v3300 = vsel %vm1730, %v3299, 0.0
        %3301 = vadd.xlane.f32.xlu0 %v3300
        %v3302 = vpop.xlane.xlu0 %3301
        %v3303 = vrcp.pop %v3302
        %v3304 = vmul.f32 %v3299, %v3303
        %3305 = vrot.lane.b32.xlu0 %v1627, 32
        %v3306 = vpop.permute.xlu0 %3305
        %v3309 = vsel %vm1730, %v3304, 0
        %3311 = vmatprep.subr.mxu0 0.0
        %3312 = vmatpush1.msra.mxu0 %v3306
        %3313 = vmatprep.subr.mxu0 0.0
        %3314 = vmatpush1.msra.mxu0 0.0
        %3315 = vmatprep.subr.mxu0 0.0
        %3316 = vmatpush1.msra.mxu0 0.0
        %3317 = vmatprep.subr.mxu0 0.0
        %3318 = vmatpush1.msra.mxu0 0.0
        %3319 = vmatprep.subr.mxu0 0.0
        %3320 = vmatpush1.msra.mxu0 0.0
        %3321 = vmatprep.subr.mxu0 0.0
        %3322 = vmatpush1.msra.mxu0 0.0
        %3323 = vmatprep.subr.mxu0 0.0
        %3324 = vmatpush1.msra.mxu0 0.0
        %3325 = vmatprep.subr.mxu0 0.0
        %3326 = vmatpush1.msra.mxu0 0.0
        %3327 = vmatprep.subr.mxu0 0.0
        %3328 = vmatpush1.msra.mxu0 0.0
        %3329 = vmatprep.subr.mxu0 0.0
        %3330 = vmatpush1.msra.mxu0 0.0
        %3331 = vmatprep.subr.mxu0 0.0
        %3332 = vmatpush1.msra.mxu0 0.0
        %3333 = vmatprep.subr.mxu0 0.0
        %3334 = vmatpush1.msra.mxu0 0.0
        %3335 = vmatprep.subr.mxu0 0.0
        %3336 = vmatpush1.msra.mxu0 0.0
        %3337 = vmatprep.subr.mxu0 0.0
        %3338 = vmatpush1.msra.mxu0 0.0
        %3339 = vmatprep.subr.mxu0 0.0
        %3340 = vmatpush1.msra.mxu0 0.0
        %3341 = vmatprep.subr.mxu0 0.0
        %3342 = vmatpush1.msra.mxu0 0.0
        %3343 = vmatprep.subr.mxu0 0.0
        %3344 = vmatpush1.msra.mxu0 0.0
        %3345 = vmatprep.subr.mxu0 0.0
        %3346 = vmatpush1.msra.mxu0 0.0
        %3347 = vmatprep.subr.mxu0 0.0
        %3348 = vmatpush1.msra.mxu0 0.0
        %3349 = vmatprep.subr.mxu0 0.0
        %3350 = vmatpush1.msra.mxu0 0.0
        %3351 = vmatprep.subr.mxu0 0.0
        %3352 = vmatpush1.msra.mxu0 0.0
        %3353 = vmatprep.subr.mxu0 0.0
        %3354 = vmatpush1.msra.mxu0 0.0
        %3355 = vmatprep.subr.mxu0 0.0
        %3356 = vmatpush1.msra.mxu0 0.0
        %3357 = vmatprep.subr.mxu0 0.0
        %3358 = vmatpush1.msra.mxu0 0.0
        %3359 = vmatprep.subr.mxu0 0.0
        %3360 = vmatpush1.msra.mxu0 0.0
        %3361 = vmatprep.subr.mxu0 0.0
        %3362 = vmatpush1.msra.mxu0 0.0
        %3363 = vmatprep.subr.mxu0 0.0
        %3364 = vmatpush1.msra.mxu0 0.0
        %3365 = vmatprep.subr.mxu0 0.0
        %3366 = vmatpush1.msra.mxu0 0.0
        %3367 = vmatprep.subr.mxu0 0.0
        %3368 = vmatpush1.msra.mxu0 0.0
        %3369 = vmatprep.subr.mxu0 0.0
        %3370 = vmatpush1.msra.mxu0 0.0
        %3371 = vmatprep.subr.mxu0 0.0
        %3372 = vmatpush1.msra.mxu0 0.0
        %3373 = vmatprep.subr.mxu0 0.0
        %3374 = vmatpush1.msra.mxu0 0.0
        %3375 = vmatprep.mubr.f32.mxu0 0.0
        %3376 = vmatmul.mubr.f32.gmra.mrb[0].mxu0 %v3309
        %v3377 = vpop.f32.mrb[0].mxu0
        %v3378 = vadd.f32 0.0, %v3377
        %v3379 = vpop.f32.mrb[0].mxu0
        %3380 = vdwg.mxu0
        %v3381 = vpack.c.bf16 %v3378, %v3378
        %v3383 = vsel %vm1647, %v3381, 0
        %3385 = vmatprep.subr.bf16.mxu0 0
        %3386 = vmatpush1.bf16.msra.mxu0 %v2495
        %3387 = vmatprep.subr.bf16.mxu0 0
        %3388 = vmatpush1.bf16.msra.mxu0 %v2496
        %3389 = vmatprep.subr.bf16.mxu0 0
        %3390 = vmatpush1.bf16.msra.mxu0 0
        %3391 = vmatprep.subr.bf16.mxu0 0
        %3392 = vmatpush1.bf16.msra.mxu0 0
        %3393 = vmatprep.subr.bf16.mxu0 0
        %3394 = vmatpush1.bf16.msra.mxu0 0
        %3395 = vmatprep.subr.bf16.mxu0 0
        %3396 = vmatpush1.bf16.msra.mxu0 0
        %3397 = vmatprep.subr.bf16.mxu0 0
        %3398 = vmatpush1.bf16.msra.mxu0 0
        %3399 = vmatprep.subr.bf16.mxu0 0
        %3400 = vmatpush1.bf16.msra.mxu0 0
        %3401 = vmatprep.subr.bf16.mxu0 0
        %3402 = vmatpush1.bf16.msra.mxu0 0
        %3403 = vmatprep.subr.bf16.mxu0 0
        %3404 = vmatpush1.bf16.msra.mxu0 0
        %3405 = vmatprep.subr.bf16.mxu0 0
        %3406 = vmatpush1.bf16.msra.mxu0 0
        %3407 = vmatprep.subr.bf16.mxu0 0
        %3408 = vmatpush1.bf16.msra.mxu0 0
        %3409 = vmatprep.subr.bf16.mxu0 0
        %3410 = vmatpush1.bf16.msra.mxu0 0
        %3411 = vmatprep.subr.bf16.mxu0 0
        %3412 = vmatpush1.bf16.msra.mxu0 0
        %3413 = vmatprep.subr.bf16.mxu0 0
        %3414 = vmatpush1.bf16.msra.mxu0 0
        %3415 = vmatprep.subr.bf16.mxu0 0
        %3416 = vmatpush1.bf16.msra.mxu0 0
        %3417 = vmatprep.mubr.bf16.mxu0 0
        %3418 = vmatmul.mubr.bf16.gmra.mrb[0].mxu0 %v3383
        %v3419 = vpop.f32.mrb[0].mxu0
        %v3420 = vadd.f32 0.0, %v3419
        %v3421 = vpop.f32.mrb[0].mxu0
        %v3422 = vpop.f32.mrb[0].mxu0
        %v3423 = vpop.f32.mrb[0].mxu0
        %3424 = vdwg.mxu0
        %v3425 = vadd.f32 %v3213, %v3420
        %v3426 = vadd.f32 %v3425, %v2547
        %v3427 = vadd.f32 %v3426, %v1367
        %v3428 = vld [vmem:[%s927] sm:$0x1]
        %v3429 = vld [vmem:[%s935] sm:$0x1]
        %3430 = vadd.xlane.f32.xlu0 %v3427
        %v3431 = vpop.xlane.xlu0 %3430
        %v3432 = vmul.f32 %v3431, %v2555
        %v3433 = vsub.f32 %v3427, %v3432
        %v3434 = vmul.f32 %v3433, %v3433
        %3435 = vadd.xlane.f32.xlu0 %v3434
        %v3436 = vpop.xlane.xlu0 %3435
        %v3437 = vmul.f32 %v3436, %v2555
        %v3438 = vadd.f32 %v3437, 1e-12
        %v3439 = vrsqrt.pop %v3438
        %v3440 = vmul.f32 %v3433, %v3439
        %v3442 = vlaneseq
        %v3443 = vshrl.u32 %v3442, 7
        %v3444 = vsub.s32 0, %v3443
        %v3445 = vrot.slane %v3428, %v3444
        %v3447 = vmul.f32 %v3440, %v3445
        %v3449 = vlaneseq
        %v3450 = vshrl.u32 %v3449, 7
        %v3451 = vsub.s32 0, %v3450
        %v3452 = vrot.slane %v3429, %v3451
        %v3454 = vadd.f32 %v3447, %v3452
        %3455 = vst [vmem:[#allocation2 + $0x8] sm:$0xff] %v3454
        %v3456 = vld [vmem:[#allocation2] sm:$0xff]
        %v3457 = vld [vmem:[#allocation2 + $0x8] sm:$0xff]
        %v3458 = vpack.c.bf16 %v3457, %v3456
        %v3459 = vld [vmem:[%s944] sm:$0xff]
        %v3460 = vld [vmem:[%s944 + $0x8] sm:$0xff]
        %v3461 = vld [vmem:[%s944 + $0x10] sm:$0xff]
        %v3462 = vld [vmem:[%s944 + $0x18] sm:$0xff]
        %v3463 = vld [vmem:[%s944 + $0x20] sm:$0xff]
        %v3464 = vld [vmem:[%s944 + $0x28] sm:$0xff]
        %v3465 = vld [vmem:[%s944 + $0x30] sm:$0xff]
        %v3466 = vld [vmem:[%s944 + $0x38] sm:$0xff]
        %v3467 = vld [vmem:[%s944 + $0x40] sm:$0xff]
        %v3468 = vld [vmem:[%s944 + $0x48] sm:$0xff]
        %v3469 = vld [vmem:[%s944 + $0x50] sm:$0xff]
        %v3470 = vld [vmem:[%s944 + $0x58] sm:$0xff]
        %v3471 = vld [vmem:[%s944 + $0x60] sm:$0xff]
        %v3472 = vld [vmem:[%s944 + $0x68] sm:$0xff]
        %v3473 = vld [vmem:[%s944 + $0x70] sm:$0xff]
        %v3474 = vld [vmem:[%s944 + $0x78] sm:$0xff]
        %v3475 = vld [vmem:[%s944 + $0x80] sm:$0xff]
        %v3476 = vld [vmem:[%s944 + $0x88] sm:$0xff]
        %v3477 = vld [vmem:[%s944 + $0x90] sm:$0xff]
        %v3478 = vld [vmem:[%s944 + $0x98] sm:$0xff]
        %v3479 = vld [vmem:[%s944 + $0xa0] sm:$0xff]
        %v3480 = vld [vmem:[%s944 + $0xa8] sm:$0xff]
        %v3481 = vld [vmem:[%s944 + $0xb0] sm:$0xff]
        %v3482 = vld [vmem:[%s944 + $0xb8] sm:$0xff]
        %v3483 = vld [vmem:[%s944 + $0xc0] sm:$0xff]
        %v3484 = vld [vmem:[%s944 + $0xc8] sm:$0xff]
        %v3485 = vld [vmem:[%s944 + $0xd0] sm:$0xff]
        %v3486 = vld [vmem:[%s944 + $0xd8] sm:$0xff]
        %v3487 = vld [vmem:[%s944 + $0xe0] sm:$0xff]
        %v3488 = vld [vmem:[%s944 + $0xe8] sm:$0xff]
        %v3489 = vld [vmem:[%s944 + $0xf0] sm:$0xff]
        %v3490 = vld [vmem:[%s944 + $0xf8] sm:$0xff]
        %v3491 = vld [vmem:[%s1064] sm:$0xf]
        %v3493 = vlaneseq
        %v3494 = vshrl.u32 %v3493, 7
        %v3495 = vsub.s32 0, %v3494
        %v3496 = vrot.slane %v3491, %v3495
        %v3497 = vlaneseq
        %v3498 = vshrl.u32 %v3497, 7
        %v3499 = vsub.s32 1, %v3498
        %v3500 = vrot.slane %v3491, %v3499
        %v3501 = vlaneseq
        %v3502 = vshrl.u32 %v3501, 7
        %v3503 = vsub.s32 2, %v3502
        %v3504 = vrot.slane %v3491, %v3503
        %v3505 = vlaneseq
        %v3506 = vshrl.u32 %v3505, 7
        %v3507 = vsub.s32 3, %v3506
        %v3508 = vrot.slane %v3491, %v3507
        %v3545 = vunpack.c.l.b16 %v3459
        %v3546 = vunpack.c.h.b16 %v3459
        %v3547 = vunpack.c.l.b16 %v3460
        %v3548 = vunpack.c.h.b16 %v3460
        %v3549 = vunpack.c.l.b16 %v3461
        %v3550 = vunpack.c.h.b16 %v3461
        %v3551 = vunpack.c.l.b16 %v3462
        %v3552 = vunpack.c.h.b16 %v3462
        %v3553 = vunpack.c.l.b16 %v3463
        %v3554 = vunpack.c.h.b16 %v3463
        %v3555 = vunpack.c.l.b16 %v3464
        %v3556 = vunpack.c.h.b16 %v3464
        %v3557 = vunpack.c.l.b16 %v3465
        %v3558 = vunpack.c.h.b16 %v3465
        %v3559 = vunpack.c.l.b16 %v3466
        %v3560 = vunpack.c.h.b16 %v3466
        %v3561 = vunpack.c.l.b16 %v3467
        %v3562 = vunpack.c.h.b16 %v3467
        %v3563 = vunpack.c.l.b16 %v3468
        %v3564 = vunpack.c.h.b16 %v3468
        %v3565 = vunpack.c.l.b16 %v3469
        %v3566 = vunpack.c.h.b16 %v3469
        %v3567 = vunpack.c.l.b16 %v3470
        %v3568 = vunpack.c.h.b16 %v3470
        %v3569 = vunpack.c.l.b16 %v3471
        %v3570 = vunpack.c.h.b16 %v3471
        %v3571 = vunpack.c.l.b16 %v3472
        %v3572 = vunpack.c.h.b16 %v3472
        %v3573 = vunpack.c.l.b16 %v3473
        %v3574 = vunpack.c.h.b16 %v3473
        %v3575 = vunpack.c.l.b16 %v3474
        %v3576 = vunpack.c.h.b16 %v3474
        %v3577 = vunpack.c.l.b16 %v3475
        %v3578 = vunpack.c.h.b16 %v3475
        %v3579 = vunpack.c.l.b16 %v3476
        %v3580 = vunpack.c.h.b16 %v3476
        %v3581 = vunpack.c.l.b16 %v3477
        %v3582 = vunpack.c.h.b16 %v3477
        %v3583 = vunpack.c.l.b16 %v3478
        %v3584 = vunpack.c.h.b16 %v3478
        %v3585 = vunpack.c.l.b16 %v3479
        %v3586 = vunpack.c.h.b16 %v3479
        %v3587 = vunpack.c.l.b16 %v3480
        %v3588 = vunpack.c.h.b16 %v3480
        %v3589 = vunpack.c.l.b16 %v3481
        %v3590 = vunpack.c.h.b16 %v3481
        %v3591 = vunpack.c.l.b16 %v3482
        %v3592 = vunpack.c.h.b16 %v3482
        %v3593 = vunpack.c.l.b16 %v3483
        %v3594 = vunpack.c.h.b16 %v3483
        %v3595 = vunpack.c.l.b16 %v3484
        %v3596 = vunpack.c.h.b16 %v3484
        %v3597 = vunpack.c.l.b16 %v3485
        %v3598 = vunpack.c.h.b16 %v3485
        %v3599 = vunpack.c.l.b16 %v3486
        %v3600 = vunpack.c.h.b16 %v3486
        %v3601 = vunpack.c.l.b16 %v3487
        %v3602 = vunpack.c.h.b16 %v3487
        %v3603 = vunpack.c.l.b16 %v3488
        %v3604 = vunpack.c.h.b16 %v3488
        %v3605 = vunpack.c.l.b16 %v3489
        %v3606 = vunpack.c.h.b16 %v3489
        %v3607 = vunpack.c.l.b16 %v3490
        %v3608 = vunpack.c.h.b16 %v3490
        %v3609 = vpack.c.b16 %v3549, %v3545
        %v3610 = vpack.c.b16 %v3550, %v3546
        %v3611 = vpack.c.b16 %v3551, %v3547
        %v3612 = vpack.c.b16 %v3552, %v3548
        %v3613 = vpack.c.b16 %v3557, %v3553
        %v3614 = vpack.c.b16 %v3558, %v3554
        %v3615 = vpack.c.b16 %v3559, %v3555
        %v3616 = vpack.c.b16 %v3560, %v3556
        %v3617 = vpack.c.b16 %v3565, %v3561
        %v3618 = vpack.c.b16 %v3566, %v3562
        %v3619 = vpack.c.b16 %v3567, %v3563
        %v3620 = vpack.c.b16 %v3568, %v3564
        %v3621 = vpack.c.b16 %v3573, %v3569
        %v3622 = vpack.c.b16 %v3574, %v3570
        %v3623 = vpack.c.b16 %v3575, %v3571
        %v3624 = vpack.c.b16 %v3576, %v3572
        %v3625 = vpack.c.b16 %v3581, %v3577
        %v3626 = vpack.c.b16 %v3582, %v3578
        %v3627 = vpack.c.b16 %v3583, %v3579
        %v3628 = vpack.c.b16 %v3584, %v3580
        %v3629 = vpack.c.b16 %v3589, %v3585
        %v3630 = vpack.c.b16 %v3590, %v3586
        %v3631 = vpack.c.b16 %v3591, %v3587
        %v3632 = vpack.c.b16 %v3592, %v3588
        %v3633 = vpack.c.b16 %v3597, %v3593
        %v3634 = vpack.c.b16 %v3598, %v3594
        %v3635 = vpack.c.b16 %v3599, %v3595
        %v3636 = vpack.c.b16 %v3600, %v3596
        %v3637 = vpack.c.b16 %v3605, %v3601
        %v3638 = vpack.c.b16 %v3606, %v3602
        %v3639 = vpack.c.b16 %v3607, %v3603
        %v3640 = vpack.c.b16 %v3608, %v3604
        %3673 = vmatprep.subr.bf16.mxu0 %v3610
        %3674 = vmatpush1.bf16.msra.mxu0 %v3609
        %3675 = vmatprep.subr.bf16.mxu0 %v3614
        %3676 = vmatpush1.bf16.msra.mxu0 %v3613
        %3677 = vmatprep.subr.bf16.mxu0 %v3618
        %3678 = vmatpush1.bf16.msra.mxu0 %v3617
        %3679 = vmatprep.subr.bf16.mxu0 %v3622
        %3680 = vmatpush1.bf16.msra.mxu0 %v3621
        %3681 = vmatprep.subr.bf16.mxu0 %v3626
        %3682 = vmatpush1.bf16.msra.mxu0 %v3625
        %3683 = vmatprep.subr.bf16.mxu0 %v3630
        %3684 = vmatpush1.bf16.msra.mxu0 %v3629
        %3685 = vmatprep.subr.bf16.mxu0 %v3634
        %3686 = vmatpush1.bf16.msra.mxu0 %v3633
        %3687 = vmatprep.subr.bf16.mxu0 %v3638
        %3688 = vmatpush1.bf16.msra.mxu0 %v3637
        %3689 = vmatprep.subr.bf16.mxu0 0
        %3690 = vmatpush1.bf16.msra.mxu0 0
        %3691 = vmatprep.subr.bf16.mxu0 0
        %3692 = vmatpush1.bf16.msra.mxu0 0
        %3693 = vmatprep.subr.bf16.mxu0 0
        %3694 = vmatpush1.bf16.msra.mxu0 0
        %3695 = vmatprep.subr.bf16.mxu0 0
        %3696 = vmatpush1.bf16.msra.mxu0 0
        %3697 = vmatprep.subr.bf16.mxu0 0
        %3698 = vmatpush1.bf16.msra.mxu0 0
        %3699 = vmatprep.subr.bf16.mxu0 0
        %3700 = vmatpush1.bf16.msra.mxu0 0
        %3701 = vmatprep.subr.bf16.mxu0 0
        %3702 = vmatpush1.bf16.msra.mxu0 0
        %3703 = vmatprep.subr.bf16.mxu0 0
        %3704 = vmatpush1.bf16.msra.mxu0 0
        %3705 = vmatprep.mubr.bf16.mxu0 0
        %3706 = vmatmul.mubr.bf16.gmra.mrb[0].mxu0 %v3458
        %v3707 = vpop.f32.mrb[0].mxu0
        %v3708 = vadd.f32 %v3496, %v3707
        %v3709 = vpop.f32.mrb[0].mxu0
        %v3710 = vadd.f32 %v3500, %v3709
        %v3711 = vpop.f32.mrb[0].mxu0
        %v3712 = vadd.f32 %v3496, %v3711
        %v3713 = vpop.f32.mrb[0].mxu0
        %v3714 = vadd.f32 %v3500, %v3713
        %3715 = vdwg.mxu0
        %3716 = vmatprep.subr.bf16.mxu0 %v3612
        %3717 = vmatpush1.bf16.msra.mxu0 %v3611
        %3718 = vmatprep.subr.bf16.mxu0 %v3616
        %3719 = vmatpush1.bf16.msra.mxu0 %v3615
        %3720 = vmatprep.subr.bf16.mxu0 %v3620
        %3721 = vmatpush1.bf16.msra.mxu0 %v3619
        %3722 = vmatprep.subr.bf16.mxu0 %v3624
        %3723 = vmatpush1.bf16.msra.mxu0 %v3623
        %3724 = vmatprep.subr.bf16.mxu0 %v3628
        %3725 = vmatpush1.bf16.msra.mxu0 %v3627
        %3726 = vmatprep.subr.bf16.mxu0 %v3632
        %3727 = vmatpush1.bf16.msra.mxu0 %v3631
        %3728 = vmatprep.subr.bf16.mxu0 %v3636
        %3729 = vmatpush1.bf16.msra.mxu0 %v3635
        %3730 = vmatprep.subr.bf16.mxu0 %v3640
        %3731 = vmatpush1.bf16.msra.mxu0 %v3639
        %3732 = vmatprep.subr.bf16.mxu0 0
        %3733 = vmatpush1.bf16.msra.mxu0 0
        %3734 = vmatprep.subr.bf16.mxu0 0
        %3735 = vmatpush1.bf16.msra.mxu0 0
        %3736 = vmatprep.subr.bf16.mxu0 0
        %3737 = vmatpush1.bf16.msra.mxu0 0
        %3738 = vmatprep.subr.bf16.mxu0 0
        %3739 = vmatpush1.bf16.msra.mxu0 0
        %3740 = vmatprep.subr.bf16.mxu0 0
        %3741 = vmatpush1.bf16.msra.mxu0 0
        %3742 = vmatprep.subr.bf16.mxu0 0
        %3743 = vmatpush1.bf16.msra.mxu0 0
        %3744 = vmatprep.subr.bf16.mxu0 0
        %3745 = vmatpush1.bf16.msra.mxu0 0
        %3746 = vmatprep.subr.bf16.mxu0 0
        %3747 = vmatpush1.bf16.msra.mxu0 0
        %3748 = vmatprep.mubr.bf16.mxu0 0
        %3749 = vmatmul.mubr.bf16.gmra.mrb[0].mxu0 %v3458
        %v3750 = vpop.f32.mrb[0].mxu0
        %v3751 = vadd.f32 %v3504, %v3750
        %v3752 = vpop.f32.mrb[0].mxu0
        %v3753 = vadd.f32 %v3508, %v3752
        %v3754 = vpop.f32.mrb[0].mxu0
        %v3755 = vadd.f32 %v3504, %v3754
        %v3756 = vpop.f32.mrb[0].mxu0
        %v3757 = vadd.f32 %v3508, %v3756
        %3758 = vdwg.mxu0
        %v3759 = vmul.f32 %v3708, 0.5
        %v3760 = vmul.f32 %v3710, 0.5
        %v3761 = vmul.f32 %v3751, 0.5
        %v3762 = vmul.f32 %v3753, 0.5
        %v3763 = vmul.f32 %v3712, 0.5
        %v3764 = vmul.f32 %v3714, 0.5
        %v3765 = vmul.f32 %v3755, 0.5
        %v3766 = vmul.f32 %v3757, 0.5
        %v3767 = vmul.f32 %v3708, 0.044715
        %v3768 = vmul.f32 %v3710, 0.044715
        %v3769 = vmul.f32 %v3751, 0.044715
        %v3770 = vmul.f32 %v3753, 0.044715
        %v3771 = vmul.f32 %v3712, 0.044715
        %v3772 = vmul.f32 %v3714, 0.044715
        %v3773 = vmul.f32 %v3755, 0.044715
        %v3774 = vmul.f32 %v3757, 0.044715
        %v3775 = vmul.f32 %v3767, %v3708
        %v3776 = vmul.f32 %v3768, %v3710
        %v3777 = vmul.f32 %v3769, %v3751
        %v3778 = vmul.f32 %v3770, %v3753
        %v3779 = vmul.f32 %v3771, %v3712
        %v3780 = vmul.f32 %v3772, %v3714
        %v3781 = vmul.f32 %v3773, %v3755
        %v3782 = vmul.f32 %v3774, %v3757
        %v3783 = vmul.f32 %v3775, %v3708
        %v3784 = vmul.f32 %v3776, %v3710
        %v3785 = vmul.f32 %v3777, %v3751
        %v3786 = vmul.f32 %v3778, %v3753
        %v3787 = vmul.f32 %v3779, %v3712
        %v3788 = vmul.f32 %v3780, %v3714
        %v3789 = vmul.f32 %v3781, %v3755
        %v3790 = vmul.f32 %v3782, %v3757
        %v3791 = vadd.f32 %v3708, %v3783
        %v3792 = vadd.f32 %v3710, %v3784
        %v3793 = vadd.f32 %v3751, %v3785
        %v3794 = vadd.f32 %v3753, %v3786
        %v3795 = vadd.f32 %v3712, %v3787
        %v3796 = vadd.f32 %v3714, %v3788
        %v3797 = vadd.f32 %v3755, %v3789
        %v3798 = vadd.f32 %v3757, %v3790
        %v3799 = vmul.f32 %v3791, 0.7978846
        %v3800 = vmul.f32 %v3792, 0.7978846
        %v3801 = vmul.f32 %v3793, 0.7978846
        %v3802 = vmul.f32 %v3794, 0.7978846
        %v3803 = vmul.f32 %v3795, 0.7978846
        %v3804 = vmul.f32 %v3796, 0.7978846
        %v3805 = vmul.f32 %v3797, 0.7978846
        %v3806 = vmul.f32 %v3798, 0.7978846
        %v3807 = vtanh.pop %v3799
        %v3808 = vtanh.pop %v3800
        %v3809 = vtanh.pop %v3801
        %v3810 = vtanh.pop %v3802
        %v3811 = vtanh.pop %v3803
        %v3812 = vtanh.pop %v3804
        %v3813 = vtanh.pop %v3805
        %v3814 = vtanh.pop %v3806
        %v3815 = vadd.f32 %v3807, 1.0
        %v3816 = vadd.f32 %v3808, 1.0
        %v3817 = vadd.f32 %v3809, 1.0
        %v3818 = vadd.f32 %v3810, 1.0
        %v3819 = vadd.f32 %v3811, 1.0
        %v3820 = vadd.f32 %v3812, 1.0
        %v3821 = vadd.f32 %v3813, 1.0
        %v3822 = vadd.f32 %v3814, 1.0
        %v3823 = vmul.f32 %v3759, %v3815
        %v3824 = vmul.f32 %v3760, %v3816
        %v3825 = vmul.f32 %v3761, %v3817
        %v3826 = vmul.f32 %v3762, %v3818
        %v3827 = vmul.f32 %v3763, %v3819
        %v3828 = vmul.f32 %v3764, %v3820
        %v3829 = vmul.f32 %v3765, %v3821
        %v3830 = vmul.f32 %v3766, %v3822
        %v3831 = vpack.c.bf16 %v3827, %v3823
        %v3832 = vpack.c.bf16 %v3828, %v3824
        %v3833 = vpack.c.bf16 %v3829, %v3825
        %v3834 = vpack.c.bf16 %v3830, %v3826
        %v3835 = vld [vmem:[%s953] sm:$0xf]
        %v3836 = vld [vmem:[%s953 + $0x4] sm:$0xf]
        %v3837 = vld [vmem:[%s953 + $0x8] sm:$0xf]
        %v3838 = vld [vmem:[%s953 + $0xc] sm:$0xf]
        %v3839 = vld [vmem:[%s953 + $0x10] sm:$0xf]
        %v3840 = vld [vmem:[%s953 + $0x14] sm:$0xf]
        %v3841 = vld [vmem:[%s953 + $0x18] sm:$0xf]
        %v3842 = vld [vmem:[%s953 + $0x1c] sm:$0xf]
        %v3843 = vld [vmem:[%s953 + $0x20] sm:$0xf]
        %v3844 = vld [vmem:[%s953 + $0x24] sm:$0xf]
        %v3845 = vld [vmem:[%s953 + $0x28] sm:$0xf]
        %v3846 = vld [vmem:[%s953 + $0x2c] sm:$0xf]
        %v3847 = vld [vmem:[%s953 + $0x30] sm:$0xf]
        %v3848 = vld [vmem:[%s953 + $0x34] sm:$0xf]
        %v3849 = vld [vmem:[%s953 + $0x38] sm:$0xf]
        %v3850 = vld [vmem:[%s953 + $0x3c] sm:$0xf]
        %v3851 = vld [vmem:[%s953 + $0x40] sm:$0xf]
        %v3852 = vld [vmem:[%s953 + $0x44] sm:$0xf]
        %v3853 = vld [vmem:[%s953 + $0x48] sm:$0xf]
        %v3854 = vld [vmem:[%s953 + $0x4c] sm:$0xf]
        %v3855 = vld [vmem:[%s953 + $0x50] sm:$0xf]
        %v3856 = vld [vmem:[%s953 + $0x54] sm:$0xf]
        %v3857 = vld [vmem:[%s953 + $0x58] sm:$0xf]
        %v3858 = vld [vmem:[%s953 + $0x5c] sm:$0xf]
        %v3859 = vld [vmem:[%s953 + $0x60] sm:$0xf]
        %v3860 = vld [vmem:[%s953 + $0x64] sm:$0xf]
        %v3861 = vld [vmem:[%s953 + $0x68] sm:$0xf]
        %v3862 = vld [vmem:[%s953 + $0x6c] sm:$0xf]
        %v3863 = vld [vmem:[%s953 + $0x70] sm:$0xf]
        %v3864 = vld [vmem:[%s953 + $0x74] sm:$0xf]
        %v3865 = vld [vmem:[%s953 + $0x78] sm:$0xf]
        %v3866 = vld [vmem:[%s953 + $0x7c] sm:$0xf]
        %v3867 = vld [vmem:[%s953 + $0x80] sm:$0xf]
        %v3868 = vld [vmem:[%s953 + $0x84] sm:$0xf]
        %v3869 = vld [vmem:[%s953 + $0x88] sm:$0xf]
        %v3870 = vld [vmem:[%s953 + $0x8c] sm:$0xf]
        %v3871 = vld [vmem:[%s953 + $0x90] sm:$0xf]
        %v3872 = vld [vmem:[%s953 + $0x94] sm:$0xf]
        %v3873 = vld [vmem:[%s953 + $0x98] sm:$0xf]
        %v3874 = vld [vmem:[%s953 + $0x9c] sm:$0xf]
        %v3875 = vld [vmem:[%s953 + $0xa0] sm:$0xf]
        %v3876 = vld [vmem:[%s953 + $0xa4] sm:$0xf]
        %v3877 = vld [vmem:[%s953 + $0xa8] sm:$0xf]
        %v3878 = vld [vmem:[%s953 + $0xac] sm:$0xf]
        %v3879 = vld [vmem:[%s953 + $0xb0] sm:$0xf]
        %v3880 = vld [vmem:[%s953 + $0xb4] sm:$0xf]
        %v3881 = vld [vmem:[%s953 + $0xb8] sm:$0xf]
        %v3882 = vld [vmem:[%s953 + $0xbc] sm:$0xf]
        %v3883 = vld [vmem:[%s953 + $0xc0] sm:$0xf]
        %v3884 = vld [vmem:[%s953 + $0xc4] sm:$0xf]
        %v3885 = vld [vmem:[%s953 + $0xc8] sm:$0xf]
        %v3886 = vld [vmem:[%s953 + $0xcc] sm:$0xf]
        %v3887 = vld [vmem:[%s953 + $0xd0] sm:$0xf]
        %v3888 = vld [vmem:[%s953 + $0xd4] sm:$0xf]
        %v3889 = vld [vmem:[%s953 + $0xd8] sm:$0xf]
        %v3890 = vld [vmem:[%s953 + $0xdc] sm:$0xf]
        %v3891 = vld [vmem:[%s953 + $0xe0] sm:$0xf]
        %v3892 = vld [vmem:[%s953 + $0xe4] sm:$0xf]
        %v3893 = vld [vmem:[%s953 + $0xe8] sm:$0xf]
        %v3894 = vld [vmem:[%s953 + $0xec] sm:$0xf]
        %v3895 = vld [vmem:[%s953 + $0xf0] sm:$0xf]
        %v3896 = vld [vmem:[%s953 + $0xf4] sm:$0xf]
        %v3897 = vld [vmem:[%s953 + $0xf8] sm:$0xf]
        %v3898 = vld [vmem:[%s953 + $0xfc] sm:$0xf]
        %v3899 = vld [vmem:[%s1067] sm:$0x1]
        %v3901 = vlaneseq
        %v3902 = vshrl.u32 %v3901, 7
        %v3903 = vsub.s32 0, %v3902
        %v3904 = vrot.slane %v3899, %v3903
        %v3970 = vunpack.c.l.b16 %v3835
        %v3971 = vunpack.c.l.b16 %v3836
        %v3972 = vunpack.c.l.b16 %v3837
        %v3973 = vunpack.c.l.b16 %v3838
        %v3974 = vunpack.c.l.b16 %v3839
        %v3975 = vunpack.c.l.b16 %v3840
        %v3976 = vunpack.c.l.b16 %v3841
        %v3977 = vunpack.c.l.b16 %v3842
        %v3978 = vunpack.c.l.b16 %v3843
        %v3979 = vunpack.c.l.b16 %v3844
        %v3980 = vunpack.c.l.b16 %v3845
        %v3981 = vunpack.c.l.b16 %v3846
        %v3982 = vunpack.c.l.b16 %v3847
        %v3983 = vunpack.c.l.b16 %v3848
        %v3984 = vunpack.c.l.b16 %v3849
        %v3985 = vunpack.c.l.b16 %v3850
        %v3986 = vunpack.c.l.b16 %v3851
        %v3987 = vunpack.c.l.b16 %v3852
        %v3988 = vunpack.c.l.b16 %v3853
        %v3989 = vunpack.c.l.b16 %v3854
        %v3990 = vunpack.c.l.b16 %v3855
        %v3991 = vunpack.c.l.b16 %v3856
        %v3992 = vunpack.c.l.b16 %v3857
        %v3993 = vunpack.c.l.b16 %v3858
        %v3994 = vunpack.c.l.b16 %v3859
        %v3995 = vunpack.c.l.b16 %v3860
        %v3996 = vunpack.c.l.b16 %v3861
        %v3997 = vunpack.c.l.b16 %v3862
        %v3998 = vunpack.c.l.b16 %v3863
        %v3999 = vunpack.c.l.b16 %v3864
        %v4000 = vunpack.c.l.b16 %v3865
        %v4001 = vunpack.c.l.b16 %v3866
        %v4002 = vunpack.c.l.b16 %v3867
        %v4003 = vunpack.c.l.b16 %v3868
        %v4004 = vunpack.c.l.b16 %v3869
        %v4005 = vunpack.c.l.b16 %v3870
        %v4006 = vunpack.c.l.b16 %v3871
        %v4007 = vunpack.c.l.b16 %v3872
        %v4008 = vunpack.c.l.b16 %v3873
        %v4009 = vunpack.c.l.b16 %v3874
        %v4010 = vunpack.c.l.b16 %v3875
        %v4011 = vunpack.c.l.b16 %v3876
        %v4012 = vunpack.c.l.b16 %v3877
        %v4013 = vunpack.c.l.b16 %v3878
        %v4014 = vunpack.c.l.b16 %v3879
        %v4015 = vunpack.c.l.b16 %v3880
        %v4016 = vunpack.c.l.b16 %v3881
        %v4017 = vunpack.c.l.b16 %v3882
        %v4018 = vunpack.c.l.b16 %v3883
        %v4019 = vunpack.c.l.b16 %v3884
        %v4020 = vunpack.c.l.b16 %v3885
        %v4021 = vunpack.c.l.b16 %v3886
        %v4022 = vunpack.c.l.b16 %v3887
        %v4023 = vunpack.c.l.b16 %v3888
        %v4024 = vunpack.c.l.b16 %v3889
        %v4025 = vunpack.c.l.b16 %v3890
        %v4026 = vunpack.c.l.b16 %v3891
        %v4027 = vunpack.c.l.b16 %v3892
        %v4028 = vunpack.c.l.b16 %v3893
        %v4029 = vunpack.c.l.b16 %v3894
        %v4030 = vunpack.c.l.b16 %v3895
        %v4031 = vunpack.c.l.b16 %v3896
        %v4032 = vunpack.c.l.b16 %v3897
        %v4033 = vunpack.c.l.b16 %v3898
        %v4034 = vpack.c.b16 %v3971, %v3970
        %v4035 = vpack.c.b16 %v3973, %v3972
        %v4036 = vpack.c.b16 %v3975, %v3974
        %v4037 = vpack.c.b16 %v3977, %v3976
        %v4038 = vpack.c.b16 %v3979, %v3978
        %v4039 = vpack.c.b16 %v3981, %v3980
        %v4040 = vpack.c.b16 %v3983, %v3982
        %v4041 = vpack.c.b16 %v3985, %v3984
        %v4042 = vpack.c.b16 %v3987, %v3986
        %v4043 = vpack.c.b16 %v3989, %v3988
        %v4044 = vpack.c.b16 %v3991, %v3990
        %v4045 = vpack.c.b16 %v3993, %v3992
        %v4046 = vpack.c.b16 %v3995, %v3994
        %v4047 = vpack.c.b16 %v3997, %v3996
        %v4048 = vpack.c.b16 %v3999, %v3998
        %v4049 = vpack.c.b16 %v4001, %v4000
        %v4050 = vpack.c.b16 %v4003, %v4002
        %v4051 = vpack.c.b16 %v4005, %v4004
        %v4052 = vpack.c.b16 %v4007, %v4006
        %v4053 = vpack.c.b16 %v4009, %v4008
        %v4054 = vpack.c.b16 %v4011, %v4010
        %v4055 = vpack.c.b16 %v4013, %v4012
        %v4056 = vpack.c.b16 %v4015, %v4014
        %v4057 = vpack.c.b16 %v4017, %v4016
        %v4058 = vpack.c.b16 %v4019, %v4018
        %v4059 = vpack.c.b16 %v4021, %v4020
        %v4060 = vpack.c.b16 %v4023, %v4022
        %v4061 = vpack.c.b16 %v4025, %v4024
        %v4062 = vpack.c.b16 %v4027, %v4026
        %v4063 = vpack.c.b16 %v4029, %v4028
        %v4064 = vpack.c.b16 %v4031, %v4030
        %v4065 = vpack.c.b16 %v4033, %v4032
        %4098 = vmatprep.subr.bf16.mxu0 0
        %4099 = vmatpush1.bf16.msra.mxu0 %v4034
        %4100 = vmatprep.subr.bf16.mxu0 0
        %4101 = vmatpush1.bf16.msra.mxu0 %v4035
        %4102 = vmatprep.subr.bf16.mxu0 0
        %4103 = vmatpush1.bf16.msra.mxu0 %v4036
        %4104 = vmatprep.subr.bf16.mxu0 0
        %4105 = vmatpush1.bf16.msra.mxu0 %v4037
        %4106 = vmatprep.subr.bf16.mxu0 0
        %4107 = vmatpush1.bf16.msra.mxu0 %v4038
        %4108 = vmatprep.subr.bf16.mxu0 0
        %4109 = vmatpush1.bf16.msra.mxu0 %v4039
        %4110 = vmatprep.subr.bf16.mxu0 0
        %4111 = vmatpush1.bf16.msra.mxu0 %v4040
        %4112 = vmatprep.subr.bf16.mxu0 0
        %4113 = vmatpush1.bf16.msra.mxu0 %v4041
        %4114 = vmatprep.subr.bf16.mxu0 0
        %4115 = vmatpush1.bf16.msra.mxu0 %v4042
        %4116 = vmatprep.subr.bf16.mxu0 0
        %4117 = vmatpush1.bf16.msra.mxu0 %v4043
        %4118 = vmatprep.subr.bf16.mxu0 0
        %4119 = vmatpush1.bf16.msra.mxu0 %v4044
        %4120 = vmatprep.subr.bf16.mxu0 0
        %4121 = vmatpush1.bf16.msra.mxu0 %v4045
        %4122 = vmatprep.subr.bf16.mxu0 0
        %4123 = vmatpush1.bf16.msra.mxu0 %v4046
        %4124 = vmatprep.subr.bf16.mxu0 0
        %4125 = vmatpush1.bf16.msra.mxu0 %v4047
        %4126 = vmatprep.subr.bf16.mxu0 0
        %4127 = vmatpush1.bf16.msra.mxu0 %v4048
        %4128 = vmatprep.subr.bf16.mxu0 0
        %4129 = vmatpush1.bf16.msra.mxu0 %v4049
        %4130 = vmatprep.mubr.bf16.mxu0 %v3832
        %4131 = vmatmul.mubr.bf16.gmra.mrb[0].mxu0 %v3831
        %v4132 = vpop.f32.mrb[0].mxu0
        %v4133 = vadd.f32 %v3904, %v4132
        %v4134 = vpop.f32.mrb[0].mxu0
        %v4135 = vpop.f32.mrb[0].mxu0
        %v4136 = vadd.f32 %v3904, %v4135
        %v4137 = vpop.f32.mrb[0].mxu0
        %4138 = vdwg.mxu0
        %4139 = vmatprep.subr.bf16.mxu0 0
        %4140 = vmatpush1.bf16.msra.mxu0 %v4050
        %4141 = vmatprep.subr.bf16.mxu0 0
        %4142 = vmatpush1.bf16.msra.mxu0 %v4051
        %4143 = vmatprep.subr.bf16.mxu0 0
        %4144 = vmatpush1.bf16.msra.mxu0 %v4052
        %4145 = vmatprep.subr.bf16.mxu0 0
        %4146 = vmatpush1.bf16.msra.mxu0 %v4053
        %4147 = vmatprep.subr.bf16.mxu0 0
        %4148 = vmatpush1.bf16.msra.mxu0 %v4054
        %4149 = vmatprep.subr.bf16.mxu0 0
        %4150 = vmatpush1.bf16.msra.mxu0 %v4055
        %4151 = vmatprep.subr.bf16.mxu0 0
        %4152 = vmatpush1.bf16.msra.mxu0 %v4056
        %4153 = vmatprep.subr.bf16.mxu0 0
        %4154 = vmatpush1.bf16.msra.mxu0 %v4057
        %4155 = vmatprep.subr.bf16.mxu0 0
        %4156 = vmatpush1.bf16.msra.mxu0 %v4058
        %4157 = vmatprep.subr.bf16.mxu0 0
        %4158 = vmatpush1.bf16.msra.mxu0 %v4059
        %4159 = vmatprep.subr.bf16.mxu0 0
        %4160 = vmatpush1.bf16.msra.mxu0 %v4060
        %4161 = vmatprep.subr.bf16.mxu0 0
        %4162 = vmatpush1.bf16.msra.mxu0 %v4061
        %4163 = vmatprep.subr.bf16.mxu0 0
        %4164 = vmatpush1.bf16.msra.mxu0 %v4062
        %4165 = vmatprep.subr.bf16.mxu0 0
        %4166 = vmatpush1.bf16.msra.mxu0 %v4063
        %4167 = vmatprep.subr.bf16.mxu0 0
        %4168 = vmatpush1.bf16.msra.mxu0 %v4064
        %4169 = vmatprep.subr.bf16.mxu0 0
        %4170 = vmatpush1.bf16.msra.mxu0 %v4065
        %4171 = vmatprep.mubr.bf16.mxu0 %v3834
        %4172 = vmatmul.mubr.bf16.gmra.mrb[0].mxu0 %v3833
        %v4173 = vpop.f32.mrb[0].mxu0
        %v4174 = vadd.f32 %v4133, %v4173
        %v4175 = vpop.f32.mrb[0].mxu0
        %v4176 = vpop.f32.mrb[0].mxu0
        %v4177 = vadd.f32 %v4136, %v4176
        %v4178 = vpop.f32.mrb[0].mxu0
        %4179 = vdwg.mxu0
        %v4180 = vadd.f32 %v4174, %v3456
        %v4181 = vadd.f32 %v4177, %v3457
        %v4182 = vld [vmem:[%s1070] sm:$0x1]
        %v4183 = vld [vmem:[%s1073] sm:$0x1]
        %4184 = vadd.xlane.f32.xlu0 %v4180
        %v4185 = vpop.xlane.xlu0 %4184
        %4186 = vadd.xlane.f32.xlu0 %v4181
        %v4187 = vpop.xlane.xlu0 %4186
        %v4188 = vmul.f32 %v4185, %v2555
        %v4189 = vmul.f32 %v4187, %v2555
        %v4190 = vsub.f32 %v4180, %v4188
        %v4191 = vsub.f32 %v4181, %v4189
        %v4192 = vmul.f32 %v4190, %v4190
        %v4193 = vmul.f32 %v4191, %v4191
        %4194 = vadd.xlane.f32.xlu0 %v4192
        %v4195 = vpop.xlane.xlu0 %4194
        %4196 = vadd.xlane.f32.xlu0 %v4193
        %v4197 = vpop.xlane.xlu0 %4196
        %v4198 = vmul.f32 %v4195, %v2555
        %v4199 = vmul.f32 %v4197, %v2555
        %v4200 = vadd.f32 %v4198, 1e-12
        %v4201 = vadd.f32 %v4199, 1e-12
        %v4202 = vrsqrt.pop %v4200
        %v4203 = vrsqrt.pop %v4201
        %v4204 = vmul.f32 %v4190, %v4202
        %v4205 = vmul.f32 %v4191, %v4203
        %v4207 = vlaneseq
        %v4208 = vshrl.u32 %v4207, 7
        %v4209 = vsub.s32 0, %v4208
        %v4210 = vrot.slane %v4182, %v4209
        %v4212 = vmul.f32 %v4204, %v4210
        %v4213 = vmul.f32 %v4205, %v4210
        %v4215 = vlaneseq
        %v4216 = vshrl.u32 %v4215, 7
        %v4217 = vsub.s32 0, %v4216
        %v4218 = vrot.slane %v4183, %v4217
        %v4220 = vadd.f32 %v4212, %v4218
        %v4221 = vadd.f32 %v4213, %v4218
        %4222 = vst [vmem:[#allocation2] sm:$0xff] %v4220
        %4223 = vst [vmem:[#allocation2 + $0x8] sm:$0xff] %v4221
        %p4224 = scmp.eq.s32.totalorder %s50, 1
        // Predicated region
        $region165: #{tpu_custom_call.1} parent=111 // pred_check
          %p4225 = pneg %p4224
        $region166: #{tpu_custom_call.1} parent=111 // pred_check_branch
          %4227 = sbr.rel (%p4225) target = $region168
        $region167: #{tpu_custom_call.1} parent=111 // pred_region
          %v4228 = vld [vmem:[#allocation2] sm:$0xff]
          %v4229 = vld [vmem:[#allocation2 + $0x8] sm:$0xff]
          %v4230 = vlaneseq
          %v4231 = vshrl.u32 %v4230, 7
          %v4232 = vlaneseq
          %v4233 = vand.u32 %v4232, 127
          %v4234 = vmul.u32 %v4231, 8
          %vm4235 = vcmp.eq.s32.totalorder %v4233, %v4234
          %v4236 = vsel %vm4235, 1, 0
          %v4237 = vcvt.s32.f32 %v4236
          %vm4238 = vcmask 130048
          %v4240 = vsel %vm4238, %v4237, 0
          %4242 = vmatprep.subr.mxu0 0.0
          %4243 = vmatpush1.msra.mxu0 %v4228
          %4244 = vmatprep.subr.mxu0 0.0
          %4245 = vmatpush1.msra.mxu0 %v4229
          %4246 = vmatprep.subr.mxu0 0.0
          %4247 = vmatpush1.msra.mxu0 0.0
          %4248 = vmatprep.subr.mxu0 0.0
          %4249 = vmatpush1.msra.mxu0 0.0
          %4250 = vmatprep.subr.mxu0 0.0
          %4251 = vmatpush1.msra.mxu0 0.0
          %4252 = vmatprep.subr.mxu0 0.0
          %4253 = vmatpush1.msra.mxu0 0.0
          %4254 = vmatprep.subr.mxu0 0.0
          %4255 = vmatpush1.msra.mxu0 0.0
          %4256 = vmatprep.subr.mxu0 0.0
          %4257 = vmatpush1.msra.mxu0 0.0
          %4258 = vmatprep.subr.mxu0 0.0
          %4259 = vmatpush1.msra.mxu0 0.0
          %4260 = vmatprep.subr.mxu0 0.0
          %4261 = vmatpush1.msra.mxu0 0.0
          %4262 = vmatprep.subr.mxu0 0.0
          %4263 = vmatpush1.msra.mxu0 0.0
          %4264 = vmatprep.subr.mxu0 0.0
          %4265 = vmatpush1.msra.mxu0 0.0
          %4266 = vmatprep.subr.mxu0 0.0
          %4267 = vmatpush1.msra.mxu0 0.0
          %4268 = vmatprep.subr.mxu0 0.0
          %4269 = vmatpush1.msra.mxu0 0.0
          %4270 = vmatprep.subr.mxu0 0.0
          %4271 = vmatpush1.msra.mxu0 0.0
          %4272 = vmatprep.subr.mxu0 0.0
          %4273 = vmatpush1.msra.mxu0 0.0
          %4274 = vmatprep.subr.mxu0 0.0
          %4275 = vmatpush1.msra.mxu0 0.0
          %4276 = vmatprep.subr.mxu0 0.0
          %4277 = vmatpush1.msra.mxu0 0.0
          %4278 = vmatprep.subr.mxu0 0.0
          %4279 = vmatpush1.msra.mxu0 0.0
          %4280 = vmatprep.subr.mxu0 0.0
          %4281 = vmatpush1.msra.mxu0 0.0
          %4282 = vmatprep.subr.mxu0 0.0
          %4283 = vmatpush1.msra.mxu0 0.0
          %4284 = vmatprep.subr.mxu0 0.0
          %4285 = vmatpush1.msra.mxu0 0.0
          %4286 = vmatprep.subr.mxu0 0.0
          %4287 = vmatpush1.msra.mxu0 0.0
          %4288 = vmatprep.subr.mxu0 0.0
          %4289 = vmatpush1.msra.mxu0 0.0
          %4290 = vmatprep.subr.mxu0 0.0
          %4291 = vmatpush1.msra.mxu0 0.0
          %4292 = vmatprep.subr.mxu0 0.0
          %4293 = vmatpush1.msra.mxu0 0.0
          %4294 = vmatprep.subr.mxu0 0.0
          %4295 = vmatpush1.msra.mxu0 0.0
          %4296 = vmatprep.subr.mxu0 0.0
          %4297 = vmatpush1.msra.mxu0 0.0
          %4298 = vmatprep.subr.mxu0 0.0
          %4299 = vmatpush1.msra.mxu0 0.0
          %4300 = vmatprep.subr.mxu0 0.0
          %4301 = vmatpush1.msra.mxu0 0.0
          %4302 = vmatprep.subr.mxu0 0.0
          %4303 = vmatpush1.msra.mxu0 0.0
          %4304 = vmatprep.subr.mxu0 0.0
          %4305 = vmatpush1.msra.mxu0 0.0
          %4306 = vmatprep.mubr.f32.mxu0 0.0
          %4307 = vmatmul.mubr.f32.gmra.mrb[0].mxu0 %v4240
          %v4308 = vpop.f32.mrb[0].mxu0
          %v4309 = vadd.f32 0.0, %v4308
          %v4310 = vpop.f32.mrb[0].mxu0
          %4311 = vdwg.mxu0
          %v4312 = vpack.c.bf16 %v4309, %v4309
          %v4313 = vld [vmem:[%s19] sm:$0xf]
          %v4314 = vld [vmem:[%s19 + $0x4] sm:$0xf]
          %v4315 = vld [vmem:[%s19 + $0x8] sm:$0xf]
          %v4316 = vld [vmem:[%s19 + $0xc] sm:$0xf]
          %v4317 = vld [vmem:[%s19 + $0x10] sm:$0xf]
          %v4318 = vld [vmem:[%s19 + $0x14] sm:$0xf]
          %v4319 = vld [vmem:[%s19 + $0x18] sm:$0xf]
          %v4320 = vld [vmem:[%s19 + $0x1c] sm:$0xf]
          %v4321 = vld [vmem:[%s19 + $0x20] sm:$0xf]
          %v4322 = vld [vmem:[%s19 + $0x24] sm:$0xf]
          %v4323 = vld [vmem:[%s19 + $0x28] sm:$0xf]
          %v4324 = vld [vmem:[%s19 + $0x2c] sm:$0xf]
          %v4325 = vld [vmem:[%s19 + $0x30] sm:$0xf]
          %v4326 = vld [vmem:[%s19 + $0x34] sm:$0xf]
          %v4327 = vld [vmem:[%s19 + $0x38] sm:$0xf]
          %v4328 = vld [vmem:[%s19 + $0x3c] sm:$0xf]
          %v4329 = vld [vmem:[%s20] sm:$0x1]
          %v4331 = vlaneseq
          %v4332 = vshrl.u32 %v4331, 7
          %v4333 = vsub.s32 0, %v4332
          %v4334 = vrot.slane %v4329, %v4333
          %v4352 = vunpack.c.l.b16 %v4313
          %v4353 = vunpack.c.l.b16 %v4314
          %v4354 = vunpack.c.l.b16 %v4315
          %v4355 = vunpack.c.l.b16 %v4316
          %v4356 = vunpack.c.l.b16 %v4317
          %v4357 = vunpack.c.l.b16 %v4318
          %v4358 = vunpack.c.l.b16 %v4319
          %v4359 = vunpack.c.l.b16 %v4320
          %v4360 = vunpack.c.l.b16 %v4321
          %v4361 = vunpack.c.l.b16 %v4322
          %v4362 = vunpack.c.l.b16 %v4323
          %v4363 = vunpack.c.l.b16 %v4324
          %v4364 = vunpack.c.l.b16 %v4325
          %v4365 = vunpack.c.l.b16 %v4326
          %v4366 = vunpack.c.l.b16 %v4327
          %v4367 = vunpack.c.l.b16 %v4328
          %v4368 = vpack.c.b16 %v4353, %v4352
          %v4369 = vpack.c.b16 %v4355, %v4354
          %v4370 = vpack.c.b16 %v4357, %v4356
          %v4371 = vpack.c.b16 %v4359, %v4358
          %v4372 = vpack.c.b16 %v4361, %v4360
          %v4373 = vpack.c.b16 %v4363, %v4362
          %v4374 = vpack.c.b16 %v4365, %v4364
          %v4375 = vpack.c.b16 %v4367, %v4366
          %4384 = vmatprep.subr.bf16.mxu0 0
          %4385 = vmatpush1.bf16.msra.mxu0 %v4368
          %4386 = vmatprep.subr.bf16.mxu0 0
          %4387 = vmatpush1.bf16.msra.mxu0 %v4369
          %4388 = vmatprep.subr.bf16.mxu0 0
          %4389 = vmatpush1.bf16.msra.mxu0 %v4370
          %4390 = vmatprep.subr.bf16.mxu0 0
          %4391 = vmatpush1.bf16.msra.mxu0 %v4371
          %4392 = vmatprep.subr.bf16.mxu0 0
          %4393 = vmatpush1.bf16.msra.mxu0 %v4372
          %4394 = vmatprep.subr.bf16.mxu0 0
          %4395 = vmatpush1.bf16.msra.mxu0 %v4373
          %4396 = vmatprep.subr.bf16.mxu0 0
          %4397 = vmatpush1.bf16.msra.mxu0 %v4374
          %4398 = vmatprep.subr.bf16.mxu0 0
          %4399 = vmatpush1.bf16.msra.mxu0 %v4375
          %4400 = vmatprep.subr.bf16.mxu0 0
          %4401 = vmatpush1.bf16.msra.mxu0 0
          %4402 = vmatprep.subr.bf16.mxu0 0
          %4403 = vmatpush1.bf16.msra.mxu0 0
          %4404 = vmatprep.subr.bf16.mxu0 0
          %4405 = vmatpush1.bf16.msra.mxu0 0
          %4406 = vmatprep.subr.bf16.mxu0 0
          %4407 = vmatpush1.bf16.msra.mxu0 0
          %4408 = vmatprep.subr.bf16.mxu0 0
          %4409 = vmatpush1.bf16.msra.mxu0 0
          %4410 = vmatprep.subr.bf16.mxu0 0
          %4411 = vmatpush1.bf16.msra.mxu0 0
          %4412 = vmatprep.subr.bf16.mxu0 0
          %4413 = vmatpush1.bf16.msra.mxu0 0
          %4414 = vmatprep.subr.bf16.mxu0 0
          %4415 = vmatpush1.bf16.msra.mxu0 0
          %4416 = vmatprep.mubr.bf16.mxu0 0
          %4417 = vmatmul.mubr.bf16.gmra.mrb[0].mxu0 %v4312
          %v4418 = vpop.f32.mrb[0].mxu0
          %v4419 = vadd.f32 %v4334, %v4418
          %v4420 = vpop.f32.mrb[0].mxu0
          %v4421 = vpop.f32.mrb[0].mxu0
          %v4422 = vpop.f32.mrb[0].mxu0
          %4423 = vdwg.mxu0
          %v4424 = vtanh.pop %v4419
          %v4425 = vld [vmem:[%s21] sm:$0xff]
          %v4426 = vld [vmem:[%s21 + $0x8] sm:$0xff]
          %v4427 = vld [vmem:[%s21 + $0x10] sm:$0xff]
          %v4428 = vld [vmem:[%s21 + $0x18] sm:$0xff]
          %v4429 = vld [vmem:[%s21 + $0x20] sm:$0xff]
          %v4430 = vld [vmem:[%s21 + $0x28] sm:$0xff]
          %v4431 = vld [vmem:[%s21 + $0x30] sm:$0xff]
          %v4432 = vld [vmem:[%s21 + $0x38] sm:$0xff]
          %v4433 = vld [vmem:[%s21 + $0x40] sm:$0xff]
          %v4434 = vld [vmem:[%s21 + $0x48] sm:$0xff]
          %v4435 = vld [vmem:[%s21 + $0x50] sm:$0xff]
          %v4436 = vld [vmem:[%s21 + $0x58] sm:$0xff]
          %v4437 = vld [vmem:[%s21 + $0x60] sm:$0xff]
          %v4438 = vld [vmem:[%s21 + $0x68] sm:$0xff]
          %v4439 = vld [vmem:[%s21 + $0x70] sm:$0xff]
          %v4440 = vld [vmem:[%s21 + $0x78] sm:$0xff]
          %v4441 = vld [vmem:[%s22] sm:$0x1]
          %v4443 = vlaneseq
          %v4444 = vshrl.u32 %v4443, 7
          %v4445 = vsub.s32 0, %v4444
          %v4446 = vrot.slane %v4441, %v4445
          %4448 = vmatprep.subr.mxu0 0.0
          %4449 = vmatpush1.msra.mxu0 %v4425
          %4450 = vmatprep.subr.mxu0 0.0
          %4451 = vmatpush1.msra.mxu0 %v4426
          %4452 = vmatprep.subr.mxu0 0.0
          %4453 = vmatpush1.msra.mxu0 %v4427
          %4454 = vmatprep.subr.mxu0 0.0
          %4455 = vmatpush1.msra.mxu0 %v4428
          %4456 = vmatprep.subr.mxu0 0.0
          %4457 = vmatpush1.msra.mxu0 %v4429
          %4458 = vmatprep.subr.mxu0 0.0
          %4459 = vmatpush1.msra.mxu0 %v4430
          %4460 = vmatprep.subr.mxu0 0.0
          %4461 = vmatpush1.msra.mxu0 %v4431
          %4462 = vmatprep.subr.mxu0 0.0
          %4463 = vmatpush1.msra.mxu0 %v4432
          %4464 = vmatprep.subr.mxu0 0.0
          %4465 = vmatpush1.msra.mxu0 %v4433
          %4466 = vmatprep.subr.mxu0 0.0
          %4467 = vmatpush1.msra.mxu0 %v4434
          %4468 = vmatprep.subr.mxu0 0.0
          %4469 = vmatpush1.msra.mxu0 %v4435
          %4470 = vmatprep.subr.mxu0 0.0
          %4471 = vmatpush1.msra.mxu0 %v4436
          %4472 = vmatprep.subr.mxu0 0.0
          %4473 = vmatpush1.msra.mxu0 %v4437
          %4474 = vmatprep.subr.mxu0 0.0
          %4475 = vmatpush1.msra.mxu0 %v4438
          %4476 = vmatprep.subr.mxu0 0.0
          %4477 = vmatpush1.msra.mxu0 %v4439
          %4478 = vmatprep.subr.mxu0 0.0
          %4479 = vmatpush1.msra.mxu0 %v4440
          %4480 = vmatprep.subr.mxu0 0.0
          %4481 = vmatpush1.msra.mxu0 0.0
          %4482 = vmatprep.subr.mxu0 0.0
          %4483 = vmatpush1.msra.mxu0 0.0
          %4484 = vmatprep.subr.mxu0 0.0
          %4485 = vmatpush1.msra.mxu0 0.0
          %4486 = vmatprep.subr.mxu0 0.0
          %4487 = vmatpush1.msra.mxu0 0.0
          %4488 = vmatprep.subr.mxu0 0.0
          %4489 = vmatpush1.msra.mxu0 0.0
          %4490 = vmatprep.subr.mxu0 0.0
          %4491 = vmatpush1.msra.mxu0 0.0
          %4492 = vmatprep.subr.mxu0 0.0
          %4493 = vmatpush1.msra.mxu0 0.0
          %4494 = vmatprep.subr.mxu0 0.0
          %4495 = vmatpush1.msra.mxu0 0.0
          %4496 = vmatprep.subr.mxu0 0.0
          %4497 = vmatpush1.msra.mxu0 0.0
          %4498 = vmatprep.subr.mxu0 0.0
          %4499 = vmatpush1.msra.mxu0 0.0
          %4500 = vmatprep.subr.mxu0 0.0
          %4501 = vmatpush1.msra.mxu0 0.0
          %4502 = vmatprep.subr.mxu0 0.0
          %4503 = vmatpush1.msra.mxu0 0.0
          %4504 = vmatprep.subr.mxu0 0.0
          %4505 = vmatpush1.msra.mxu0 0.0
          %4506 = vmatprep.subr.mxu0 0.0
          %4507 = vmatpush1.msra.mxu0 0.0
          %4508 = vmatprep.subr.mxu0 0.0
          %4509 = vmatpush1.msra.mxu0 0.0
          %4510 = vmatprep.subr.mxu0 0.0
          %4511 = vmatpush1.msra.mxu0 0.0
          %4512 = vmatprep.mubr.f32.mxu0 0.0
          %4513 = vmatmul.mubr.f32.gmra.mrb[0].mxu0 %v4424
          %v4514 = vpop.f32.mrb[0].mxu0
          %v4515 = vadd.f32 %v4446, %v4514
          %v4516 = vpop.f32.mrb[0].mxu0
          %4517 = vdwg.mxu0
          %vm4518 = vcmask 41984
          %4519 = vst.msk [vmem:[#allocation23] sm:$0x3] %vm4518, %v4515
        $region168: #{tpu_custom_call.1} parent=111 // pred_fallthru
          _
        // Predicated region
        $region169: #{tpu_custom_call.1} parent=111 // pred_check
          %p4520 = pneg %p606
        $region170: #{tpu_custom_call.1} parent=111 // pred_check_branch
          %4522 = sbr.rel (%p4520) target = $region172
        $region171: #{tpu_custom_call.1} parent=111 // pred_region
          %s4524 = ssub.s32 32, 32
          %4525 = vsyncadd [#allocation5], %s4524
          %s4527 = sshll.u32 [#allocation23], 4
          %s4528 = int_to_ptr.vmem [resolvable:$true] %s4527
          %4530 = dma.vmem_to_hbm [thread:$0]  %s4528, 32, %s23, [#allocation5]
        $region172: #{tpu_custom_call.1} parent=111 // pred_fallthru
          _
        // Predicated region
        $region173: #{tpu_custom_call.1} parent=111 // pred_check
          %p4531 = pneg %p606
        $region174: #{tpu_custom_call.1} parent=111 // pred_check_branch
          %4533 = sbr.rel (%p4531) target = $region176
        $region175: #{tpu_custom_call.1} parent=111 // pred_region
          %4534 = dma.done [#allocation5], 32
        $region176: #{tpu_custom_call.1} parent=111 // pred_fallthru
          _
      $region112: #{tpu_custom_call.1} parent=5 // pred_fallthru
        _
      %p4535 = scmp.le.s32.totalorder 2, %s45
      // Predicated region
      $region177: #{tpu_custom_call.1} parent=5 // pred_check
        %p4536 = pneg %p4535
      $region178: #{tpu_custom_call.1} parent=5 // pred_check_branch
        %4538 = sbr.rel (%p4536) target = $region180
      $region179: #{tpu_custom_call.1} parent=5 // pred_region
        %s4539 = ssub.s32 %s45, 2
      $region180: #{tpu_custom_call.1} parent=5 // pred_fallthru
        _
    $region6: #{tpu_custom_call.1} parent=1 // loop_footer
      %s49 = sadd.s32 1, %s45
    $region7: #{tpu_custom_call.1} parent=1 // loop_footer_branch
      %44 = sbr.rel target = $region3
    $region8: #{tpu_custom_call.1} parent=1 // loop_exit
      _
    %4540 = vsyncpa [#allocation4], 1
    %s4541 = scalar_lea.sflag [#allocation4], 1
    %4542 = vsyncpa %s4541, 1
    %4543 = vsyncpa [#allocation7], 1
    %4544 = vsyncpa [#allocation10], 1
    %4545 = vsyncpa [#allocation13], 1
    %s4546 = scalar_lea.sflag [#allocation13], 1
    %4547 = vsyncpa %s4546, 1
    %4548 = vsyncpa [#allocation16], 1
    %s4549 = scalar_lea.sflag [#allocation16], 1
    %4550 = vsyncpa %s4549, 1
    %4551 = vsyncpa [#allocation19], 1
    %s4552 = scalar_lea.sflag [#allocation19], 1
    %4553 = vsyncpa %s4552, 1
    %4554 = vsyncpa [#allocation22], 1
    %s4555 = scalar_lea.sflag [#allocation22], 1
    %4556 = vsyncpa %s4555, 1
    %4557 = vsyncpa [#allocation5], 1
    %s4558 = scalar_lea.sflag [#allocation5], 1
    %4559 = vsyncpa %s4558, 1

</llo_original>
